<compile_context>
chip_gen: v6e
topology: v6e:2x2x1
jax: 0.10.0
libtpu: 0.0.40
codegen_flags: <defaults>
</compile_context>

<pallas_src>
import functools

import jax
import jax.numpy as jnp
from jax.experimental import pallas as pl
from jax.experimental.pallas import tpu as pltpu

FEATURE_SIZE = 1664
HIDDEN = 128
N_STEP = 11
N_EXP = 2
MAX_LEN = 20.0

CONV_K = 7
CONV_S = 2
CONV_P = 3
C_IN = 4
C_OUT = 64
C_OUT_PAD = 128                       # conv out channels padded 64 -> 128 (lane dense)
PATCH_K = CONV_K * CONV_K * C_IN      # 196 taps per output pixel
K_PAD = 256                           # contraction padded to the 256-deep MXU
N_HEADS_OUT = N_STEP + N_EXP + 1 + 1  # MtFc: fc1(11) | fc2(2) | fc3(1) | fc4(1)
HEADS_PAD = 128                       # lane-dense head output
ROWS_PER_CHUNK_TARGET = 2048


def _round_up(x, m):
    return ((x + m - 1) // m) * m


# --------------------- fused conv0 + ReLU + GAP + projection ----------------

def _conv_gap_proj_kernel(x_ref, wk_ref, wproj_ref, o_ref, gap_acc, *, inv_hw):
    # grid = (batch, row-chunk); the row-chunk axis is the reduction axis.
    s = pl.program_id(1)

    @pl.when(s == 0)
    def _init():
        gap_acc[...] = jnp.zeros_like(gap_acc)

    # Whole 7x7x4 / stride-2 conv for this chunk as ONE full-depth MXU matmul:
    # (chunk, 256) bf16 @ (256, 128) bf16 -> f32. Zero-padded patch rows,
    # contraction taps and output channels all contribute exactly 0.
    acc = jnp.dot(x_ref[...], wk_ref[...], preferred_element_type=jnp.float32)
    acc = jnp.maximum(acc, 0.0)                        # ReLU before global pool
    # VALU-only partial GAP: fold rows onto 8 sublanes (vreg-wise adds); the
    # 8 -> 1 cross-sublane collapse (XLU) runs once in the finalize step.
    gap_acc[...] += jnp.sum(acc.reshape(-1, 8, C_OUT_PAD), axis=0)

    @pl.when(s == pl.num_programs(1) - 1)
    def _finalize():
        pooled = jnp.sum(gap_acc[...], axis=0, keepdims=True) * inv_hw
        feats = pooled.astype(jnp.bfloat16)            # (1, 128)
        o_ref[...] = jnp.dot(feats, wproj_ref[...],
                             preferred_element_type=jnp.float32)


def conv_gap_project(x_nchw, wk, wproj):
    """Conv2d(4,64,k=7,s=2,p=3,bias=False) -> ReLU -> global-avg-pool ->
    Linear(64->1664), fully fused in one gridded Pallas call."""
    B, C, Hi, Wi = x_nchw.shape
    assert C == C_IN
    Ho = (Hi + 2 * CONV_P - CONV_K) // CONV_S + 1
    Wo = (Wi + 2 * CONV_P - CONV_K) // CONV_S + 1
    Hp, Wp = Hi + 2 * CONV_P, Wi + 2 * CONV_P
    # the stride-2 tap slices below stay in range for k=7, s=2, p=3 arithmetic
    assert Hp >= CONV_S * (Ho - 1) + CONV_K
    assert Wp >= CONV_S * (Wo - 1) + CONV_K

    # ---- glue: one lane-dense im2col pass (bf16, last dim padded to 256) ----
    x_nhwc = x_nchw.transpose(0, 2, 3, 1).astype(jnp.bfloat16)
    xp = jnp.pad(x_nhwc, ((0, 0), (CONV_P, CONV_P), (CONV_P, CONV_P), (0, 0)))
    pieces = [xp[:, kh:kh + CONV_S * (Ho - 1) + 1:CONV_S,
                 kw:kw + CONV_S * (Wo - 1) + 1:CONV_S, :]
              for kh in range(CONV_K) for kw in range(CONV_K)]
    pieces.append(jnp.zeros((B, Ho, Wo, K_PAD - PATCH_K), jnp.bfloat16))
    patches = jnp.concatenate(pieces, axis=-1)          # (B, Ho, Wo, 256)

    # Flat-row chunking (no divisor requirement): the ragged tail is zero
    # padded, which adds exactly 0 to the bias-free ReLU'd GAP sum.
    total = Ho * Wo
    nch = 1 if total <= 16 else max(2, pl.cdiv(total, ROWS_PER_CHUNK_TARGET))
    chunk = _round_up(pl.cdiv(total, nch), 8)
    total_pad = nch * chunk
    patches = patches.reshape(B, total, K_PAD)
    if total_pad > total:
        patches = jnp.pad(patches, ((0, 0), (0, total_pad - total), (0, 0)))

    kernel = functools.partial(_conv_gap_proj_kernel, inv_hw=1.0 / float(total))
    flops = int(2 * B * nch * chunk * K_PAD * C_OUT_PAD
                + 2 * B * C_OUT_PAD * FEATURE_SIZE)
    bytes_accessed = int(patches.size * 2 + wk.size * 2 + wproj.size * 2
                         + B * FEATURE_SIZE * 4)

    # TODO(synk): for B == 1 on v7x (2 TensorCores) the batch-parallel axis
    # leaves a core idle; splitting the chunk reduction across cores (two
    # partial GAP accumulators) would recover ~2x there.
    out = pl.pallas_call(
        kernel,
        out_shape=jax.ShapeDtypeStruct((B, 1, FEATURE_SIZE), jnp.float32),
        grid=(B, nch),
        in_specs=[
            pl.BlockSpec((None, chunk, K_PAD), lambda b, s: (b, s, 0)),
            pl.BlockSpec((K_PAD, C_OUT_PAD), lambda b, s: (0, 0)),
            pl.BlockSpec((C_OUT_PAD, FEATURE_SIZE), lambda b, s: (0, 0)),
        ],
        out_specs=pl.BlockSpec((None, 1, FEATURE_SIZE), lambda b, s: (b, 0, 0)),
        scratch_shapes=[pltpu.VMEM((8, C_OUT_PAD), jnp.float32)],
        compiler_params=pltpu.CompilerParams(
            dimension_semantics=("parallel", "arbitrary"),
            vmem_limit_bytes=16 * 1024 * 1024),
        cost_estimate=pl.CostEstimate(flops=flops, transcendentals=0,
                                      bytes_accessed=bytes_accessed),
    )(patches, wk, wproj)
    return out.reshape(B, FEATURE_SIZE)


# ---------------- fused x-gates + LSTMCell recurrence + MtFc heads ----------

def _rnn_heads_kernel(feat_ref, wih_ref, bih_ref, whh_ref, bhh_ref,
                      whd_ref, bhd_ref, o_ref):
    H = HIDDEN
    T = feat_ref.shape[0]
    # input->hidden gate pre-activations for all steps in one MXU matmul
    xg = (jnp.dot(feat_ref[...], wih_ref[...],
                  preferred_element_type=jnp.float32) + bih_ref[...])
    h = jnp.zeros((1, H), jnp.float32)
    c = jnp.zeros((1, H), jnp.float32)
    hs = []
    # T is small and static -> fully static unroll (LLO sees across steps).
    # Elementwise gate math stays in f32 (v5e VPU/EUP have no bf16 path);
    # only the MXU operands are bf16.
    for t in range(T):
        gates = (xg[t:t + 1, :]
                 + jnp.dot(h.astype(jnp.bfloat16), whh_ref[...],
                           preferred_element_type=jnp.float32)
                 + bhh_ref[...])
        i = jax.nn.sigmoid(gates[:, 0:H])
        f = jax.nn.sigmoid(gates[:, H:2 * H])
        g = jnp.tanh(gates[:, 2 * H:3 * H])
        o = jax.nn.sigmoid(gates[:, 3 * H:4 * H])
        c = f * c + i * g                 # cell state kept in f32
        h = o * jnp.tanh(c)
        hs.append(h)
    hid = jnp.concatenate(hs, axis=0)     # (T, 128)
    # fused MtFc heads (padded to 128 lanes) as the epilogue
    o_ref[...] = (jnp.dot(hid.astype(jnp.bfloat16), whd_ref[...],
                          preferred_element_type=jnp.float32) + bhd_ref[...])


def rnn_heads(features, w_ih_t, b_ih, w_hh_t, b_hh, w_heads, b_heads):
    T = features.shape[0]
    flops = int(2 * T * FEATURE_SIZE * 4 * HIDDEN       # x gates
                + 2 * T * HIDDEN * 4 * HIDDEN           # recurrent gates
                + 2 * T * HIDDEN * HEADS_PAD)           # heads
    bytes_accessed = int(T * FEATURE_SIZE * 2 + w_ih_t.size * 2
                         + w_hh_t.size * 2 + w_heads.size * 2
                         + (b_ih.size + b_hh.size + b_heads.size) * 4
                         + T * HEADS_PAD * 4)
    return pl.pallas_call(
        _rnn_heads_kernel,
        out_shape=jax.ShapeDtypeStruct((T, HEADS_PAD), jnp.float32),
        compiler_params=pltpu.CompilerParams(
            vmem_limit_bytes=16 * 1024 * 1024),
        cost_estimate=pl.CostEstimate(flops=flops,
                                      transcendentals=int(T * 5 * HIDDEN),
                                      bytes_accessed=bytes_accessed),
    )(features.astype(jnp.bfloat16), w_ih_t, b_ih, w_hh_t, b_hh,
      w_heads, b_heads)


# ------------------------------- parameters ---------------------------------

def init_params(key):
    ks = jax.random.split(key, 6)
    # conv0: channels 0:3 "pretrained", channel 3 = mean of RGB (as in initCNN)
    conv_w3 = jax.random.normal(ks[0], (C_OUT, 3, CONV_K, CONV_K),
                                jnp.float32) * 0.05
    conv_w = jnp.concatenate(
        [conv_w3, jnp.mean(conv_w3, axis=1, keepdims=True)], axis=1)
    proj_w = jax.random.normal(ks[1], (C_OUT, FEATURE_SIZE), jnp.float32) * 0.05
    w_ih = jax.random.normal(ks[2], (4 * HIDDEN, FEATURE_SIZE),
                             jnp.float32) * 0.02
    w_hh = jax.random.normal(ks[3], (4 * HIDDEN, HIDDEN), jnp.float32) * 0.02
    b_ih = jnp.zeros((4 * HIDDEN,), jnp.float32)
    b_hh = jnp.zeros((4 * HIDDEN,), jnp.float32)
    w_heads = jax.random.normal(ks[4], (HIDDEN, N_HEADS_OUT), jnp.float32) * 0.05
    b_heads = jax.random.normal(ks[5], (N_HEADS_OUT,), jnp.float32) * 0.01
    return dict(conv_w=conv_w, proj_w=proj_w, w_ih=w_ih, w_hh=w_hh,
                b_ih=b_ih, b_hh=b_hh, w_heads=w_heads, b_heads=b_heads)


def pack_params(p):
    """Pre-pack weights in kernel-friendly (bf16, padded, lane-dense) layouts."""
    # conv: (oc, c, kh, kw) -> single (kh*kw*c, oc) matrix, padded to (256,128)
    # to match the (kh, kw, c) ordering of the im2col lane dim.
    wk = p["conv_w"].transpose(2, 3, 1, 0).reshape(PATCH_K, C_OUT)
    wk = jnp.pad(wk, ((0, K_PAD - PATCH_K),
                      (0, C_OUT_PAD - C_OUT))).astype(jnp.bfloat16)
    wproj = jnp.pad(p["proj_w"],
                    ((0, C_OUT_PAD - C_OUT), (0, 0))).astype(jnp.bfloat16)
    w_ih_t = p["w_ih"].T.astype(jnp.bfloat16)            # (1664, 512)
    b_ih = p["b_ih"].reshape(1, -1).astype(jnp.float32)
    w_hh_t = p["w_hh"].T.astype(jnp.bfloat16)            # (128, 512)
    b_hh = p["b_hh"].reshape(1, -1).astype(jnp.float32)
    w_heads = jnp.pad(p["w_heads"],
                      ((0, 0), (0, HEADS_PAD - N_HEADS_OUT))).astype(jnp.bfloat16)
    b_heads = jnp.pad(p["b_heads"],
                      (0, HEADS_PAD - N_HEADS_OUT)).reshape(1, -1).astype(jnp.float32)
    return dict(wk=wk, wproj=wproj, w_ih_t=w_ih_t, b_ih=b_ih,
                w_hh_t=w_hh_t, b_hh=b_hh, w_heads=w_heads, b_heads=b_heads)


# --------------------------------- forward ----------------------------------

def catrsdnet1_forward(packed, X, elapsed_time=None):
    # forwardCNN preprocessing: relative-time channel appended to RGB (glue).
    if elapsed_time is not None:
        assert X.shape[1] == 3, "provide RGB only if elapsed time is set"
        rel_time = elapsed_time / MAX_LEN
        time_ch = jnp.ones_like(X[:, :1]) * rel_time[:, None, None, None]
        X = jnp.concatenate([X, time_ch], axis=1).astype(jnp.float32)
    else:
        assert X.shape[1] == 4, "provide RGB+time channel if elapsed time not set"
        X = X.astype(jnp.float32)

    # CNN feature extractor (classifier == Identity), fully fused Pallas call.
    # TODO(synk): densenet169 dense blocks are an external pretrained backbone;
    # replaced by a deterministic conv0 -> ReLU -> global-avg-pool -> linear
    # (bias-free) surrogate to 1664-d features (relu-before-pool matches
    # densenet's final relu->avgpool ordering).
    features = conv_gap_project(X, packed["wk"], packed["wproj"])   # (B, 1664)

    # Rnn_Model1: LSTMCell over the leading dim (batch-as-time steps, Dropout
    # p=0 masks are identity) fused with the MtFc heads in one Pallas call.
    # TODO(synk): stateful=True last-state caching is Python-side module state.
    y = rnn_heads(features, packed["w_ih_t"], packed["b_ih"],
                  packed["w_hh_t"], packed["b_hh"],
                  packed["w_heads"], packed["b_heads"])             # (T, 128)

    step = y[:, :N_STEP]
    experience = y[:, N_STEP:N_STEP + N_EXP]
    rsd = y[:, N_STEP + N_EXP:N_STEP + N_EXP + 1]
    s = y[:, N_STEP + N_EXP + 1:N_STEP + N_EXP + 2]
    return step, experience, rsd, s


if __name__ == "__main__":
    key = jax.random.PRNGKey(0)
    k_param, k_x = jax.random.split(key)
    params = init_params(k_param)
    packed = pack_params(params)

    # batch=2 video frames, RGB 16x16, elapsed time in minutes (<= max_len=20)
    X = jax.random.normal(k_x, (2, 3, 16, 16), jnp.float32)
    elapsed_time = jnp.array([3.0, 7.5], jnp.float32)

    fwd = jax.jit(catrsdnet1_forward)
    step, experience, rsd, s = fwd(packed, X, elapsed_time)
    jax.block_until_ready((step, experience, rsd, s))

    assert step.shape == (2, N_STEP)
    assert experience.shape == (2, N_EXP)
    assert rsd.shape == (2, 1)
    assert s.shape == (2, 1)
    assert bool(jnp.all(jnp.isfinite(step)))
    assert bool(jnp.all(jnp.isfinite(experience)))
    assert bool(jnp.all(jnp.isfinite(rsd)))
    assert bool(jnp.all(jnp.isfinite(s)))
    print("KERNEL_OK")
</pallas_src>

<mosaic_0001>
module attributes {stable_mosaic.version = 11 : i64} {
  func.func @_conv_gap_proj_kernel(%arg0: i32, %arg1: i32, %arg2: memref<1x32x256xbf16, #tpu.memory_space<vmem>>, %arg3: memref<256x128xbf16, #tpu.memory_space<vmem>>, %arg4: memref<128x1664xbf16, #tpu.memory_space<vmem>>, %arg5: memref<1x1x1664xf32, #tpu.memory_space<vmem>>, %arg6: memref<8x128xf32, #tpu.memory_space<vmem>>) attributes {dimension_semantics = [#tpu.dimension_semantics<parallel>, #tpu.dimension_semantics<arbitrary>], iteration_bounds = array<i64: 2, 2>, scalar_prefetch = 0 : i64, scratch_operands = 1 : i64, tpu.core_type = #tpu.core_type<tc>, window_params = [{transform_indices = @transform_0, window_bounds = array<i64: 1, 32, 256>}, {pipeline_mode = #tpu.pipeline_mode<synchronous>, transform_indices = @transform_1, window_bounds = array<i64: 256, 128>}, {pipeline_mode = #tpu.pipeline_mode<synchronous>, transform_indices = @transform_2, window_bounds = array<i64: 128, 1664>}, {transform_indices = @transform_3, window_bounds = array<i64: 1, 1, 1664>}]} {
    %c0_i32 = arith.constant 0 : i32
    %0 = arith.cmpi eq, %arg1, %c0_i32 : i32
    %1 = arith.extui %0 : i1 to i32
    %c0_i32_0 = arith.constant 0 : i32
    %2 = arith.cmpi ne, %1, %c0_i32_0 : i32
    scf.if %2 {
      %cst_12 = arith.constant 0.000000e+00 : f32
      %17 = vector.broadcast %cst_12 : f32 to vector<8x128xf32>
      %c0_13 = arith.constant 0 : index
      %c0_14 = arith.constant 0 : index
      %18 = vector.load %arg6[%c0_13, %c0_14] : memref<8x128xf32, #tpu.memory_space<vmem>>, vector<8x128xf32>
      tpu.vector_store %arg6[%c0_13, %c0_14], %17 {strides = array<i32>} : memref<8x128xf32, #tpu.memory_space<vmem>>, vector<8x128xf32>,
    } else {
    }
    %c0 = arith.constant 0 : index
    %c0_1 = arith.constant 0 : index
    %c0_2 = arith.constant 0 : index
    %3 = vector.load %arg2[%c0, %c0_1, %c0_2] : memref<1x32x256xbf16, #tpu.memory_space<vmem>>, vector<1x32x256xbf16>
    %4 = vector.shape_cast %3 : vector<1x32x256xbf16> to vector<32x256xbf16>
    %c0_3 = arith.constant 0 : index
    %c0_4 = arith.constant 0 : index
    %5 = vector.load %arg3[%c0_3, %c0_4] : memref<256x128xbf16, #tpu.memory_space<vmem>>, vector<256x128xbf16>
    %cst = arith.constant dense<0.000000e+00> : vector<32x128xf32>
    %6 = tpu.matmul %4, %5, %cst {dimension_numbers = #tpu.dot_dimension_numbers<[1], [0], [0], [1], [0, 0, 1, 1], [], []>} : vector<32x256xbf16>, vector<256x128xbf16>, vector<32x128xf32> -> vector<32x128xf32>
    %cst_5 = arith.constant 0.000000e+00 : f32
    %7 = vector.broadcast %cst_5 : f32 to vector<32x128xf32>
    %8 = arith.maximumf %6, %7 : vector<32x128xf32>
    %c0_6 = arith.constant 0 : index
    %c0_7 = arith.constant 0 : index
    %9 = vector.load %arg6[%c0_6, %c0_7] : memref<8x128xf32, #tpu.memory_space<vmem>>, vector<8x128xf32>
    %10 = vector.shape_cast %8 : vector<32x128xf32> to vector<4x8x128xf32>
    %cst_8 = arith.constant dense<0.000000e+00> : vector<8x128xf32>
    %11 = vector.multi_reduction <add>, %10, %cst_8 [0] : vector<4x8x128xf32> to vector<8x128xf32>
    %12 = arith.addf %9, %11 : vector<8x128xf32>
    %c0_9 = arith.constant 0 : index
    %c0_10 = arith.constant 0 : index
    %13 = vector.load %arg6[%c0_9, %c0_10] : memref<8x128xf32, #tpu.memory_space<vmem>>, vector<8x128xf32>
    tpu.vector_store %arg6[%c0_9, %c0_10], %12 {strides = array<i32>} : memref<8x128xf32, #tpu.memory_space<vmem>>, vector<8x128xf32>,
    %c1_i32 = arith.constant 1 : i32
    %14 = arith.cmpi eq, %arg1, %c1_i32 : i32
    %15 = arith.extui %14 : i1 to i32
    %c0_i32_11 = arith.constant 0 : i32
    %16 = arith.cmpi ne, %15, %c0_i32_11 : i32
    scf.if %16 {
      %c0_12 = arith.constant 0 : index
      %c0_13 = arith.constant 0 : index
      %17 = vector.load %arg6[%c0_12, %c0_13] : memref<8x128xf32, #tpu.memory_space<vmem>>, vector<8x128xf32>
      %cst_14 = arith.constant dense<0.000000e+00> : vector<128xf32>
      %18 = vector.multi_reduction <add>, %17, %cst_14 [0] : vector<8x128xf32> to vector<128xf32>
      %19 = vector.shape_cast %18 : vector<128xf32> to vector<1x128xf32>
      %cst_15 = arith.constant 1.562500e-02 : f32
      %20 = vector.broadcast %cst_15 : f32 to vector<1x128xf32>
      %21 = arith.mulf %19, %20 : vector<1x128xf32>
      %22 = arith.truncf %21 : vector<1x128xf32> to vector<1x128xbf16>
      %c0_16 = arith.constant 0 : index
      %c0_17 = arith.constant 0 : index
      %23 = vector.load %arg4[%c0_16, %c0_17] : memref<128x1664xbf16, #tpu.memory_space<vmem>>, vector<128x1664xbf16>
      %cst_18 = arith.constant dense<0.000000e+00> : vector<1x1664xf32>
      %24 = tpu.matmul %22, %23, %cst_18 {dimension_numbers = #tpu.dot_dimension_numbers<[1], [0], [0], [1], [0, 0, 1, 1], [], []>} : vector<1x128xbf16>, vector<128x1664xbf16>, vector<1x1664xf32> -> vector<1x1664xf32>
      %c0_19 = arith.constant 0 : index
      %c0_20 = arith.constant 0 : index
      %c0_21 = arith.constant 0 : index
      %25 = vector.load %arg5[%c0_19, %c0_20, %c0_21] : memref<1x1x1664xf32, #tpu.memory_space<vmem>>, vector<1x1x1664xf32>
      %26 = vector.shape_cast %25 : vector<1x1x1664xf32> to vector<1x1664xf32>
      %27 = vector.shape_cast %24 : vector<1x1664xf32> to vector<1x1x1664xf32>
      tpu.vector_store %arg5[%c0_19, %c0_20, %c0_21], %27 {strides = array<i32>} : memref<1x1x1664xf32, #tpu.memory_space<vmem>>, vector<1x1x1664xf32>,
    } else {
    }
    return
  }
  func.func @transform_0(%arg0: i32, %arg1: i32) -> (i32, i32, i32) {
    %c0_i32 = arith.constant 0 : i32
    %c0_i32_0 = arith.constant 0 : i32
    return %arg0, %arg1, %c0_i32 : i32, i32, i32
  }
  func.func @transform_1(%arg0: i32, %arg1: i32) -> (i32, i32) {
    %c0_i32 = arith.constant 0 : i32
    %c0_i32_0 = arith.constant 0 : i32
    %c0_i32_1 = arith.constant 0 : i32
    return %c0_i32, %c0_i32_0 : i32, i32
  }
  func.func @transform_2(%arg0: i32, %arg1: i32) -> (i32, i32) {
    %c0_i32 = arith.constant 0 : i32
    %c0_i32_0 = arith.constant 0 : i32
    %c0_i32_1 = arith.constant 0 : i32
    return %c0_i32, %c0_i32_0 : i32, i32
  }
  func.func @transform_3(%arg0: i32, %arg1: i32) -> (i32, i32, i32) {
    %c0_i32 = arith.constant 0 : i32
    %c0_i32_0 = arith.constant 0 : i32
    %c0_i32_1 = arith.constant 0 : i32
    return %arg0, %c0_i32, %c0_i32_0 : i32, i32, i32
  }
}

module attributes {stable_mosaic.version = 11 : i64} {
  func.func @_rnn_heads_kernel(%arg0: memref<2x1664xbf16, #tpu.memory_space<vmem>>, %arg1: memref<1664x512xbf16, #tpu.memory_space<vmem>>, %arg2: memref<1x512xf32, #tpu.memory_space<vmem>>, %arg3: memref<128x512xbf16, #tpu.memory_space<vmem>>, %arg4: memref<1x512xf32, #tpu.memory_space<vmem>>, %arg5: memref<128x128xbf16, #tpu.memory_space<vmem>>, %arg6: memref<1x128xf32, #tpu.memory_space<vmem>>, %arg7: memref<2x128xf32, #tpu.memory_space<vmem>>) attributes {dimension_semantics = [], scalar_prefetch = 0 : i64, scratch_operands = 0 : i64, tpu.core_type = #tpu.core_type<tc>} {
    %c0 = arith.constant 0 : index
    %c0_0 = arith.constant 0 : index
    %0 = vector.load %arg0[%c0, %c0_0] : memref<2x1664xbf16, #tpu.memory_space<vmem>>, vector<2x1664xbf16>
    %c0_1 = arith.constant 0 : index
    %c0_2 = arith.constant 0 : index
    %1 = vector.load %arg1[%c0_1, %c0_2] : memref<1664x512xbf16, #tpu.memory_space<vmem>>, vector<1664x512xbf16>
    %cst = arith.constant dense<0.000000e+00> : vector<2x512xf32>
    %2 = tpu.matmul %0, %1, %cst {dimension_numbers = #tpu.dot_dimension_numbers<[1], [0], [0], [1], [0, 0, 1, 1], [], []>} : vector<2x1664xbf16>, vector<1664x512xbf16>, vector<2x512xf32> -> vector<2x512xf32>
    %c0_3 = arith.constant 0 : index
    %c0_4 = arith.constant 0 : index
    %3 = vector.load %arg2[%c0_3, %c0_4] : memref<1x512xf32, #tpu.memory_space<vmem>>, vector<1x512xf32>
    %4 = vector.broadcast %3 : vector<1x512xf32> to vector<2x512xf32>
    %5 = arith.addf %2, %4 : vector<2x512xf32>
    %cst_5 = arith.constant 0.000000e+00 : f32
    %6 = vector.broadcast %cst_5 : f32 to vector<1x128xf32>
    %cst_6 = arith.constant 0.000000e+00 : f32
    %7 = vector.broadcast %cst_6 : f32 to vector<1x128xf32>
    %8 = vector.extract_strided_slice %5 {offsets = [0, 0], sizes = [1, 512], strides = [1, 1]} : vector<2x512xf32> to vector<1x512xf32>
    %9 = arith.truncf %6 : vector<1x128xf32> to vector<1x128xbf16>
    %c0_7 = arith.constant 0 : index
    %c0_8 = arith.constant 0 : index
    %10 = vector.load %arg3[%c0_7, %c0_8] : memref<128x512xbf16, #tpu.memory_space<vmem>>, vector<128x512xbf16>
    %cst_9 = arith.constant dense<0.000000e+00> : vector<1x512xf32>
    %11 = tpu.matmul %9, %10, %cst_9 {dimension_numbers = #tpu.dot_dimension_numbers<[1], [0], [0], [1], [0, 0, 1, 1], [], []>} : vector<1x128xbf16>, vector<128x512xbf16>, vector<1x512xf32> -> vector<1x512xf32>
    %12 = arith.addf %8, %11 : vector<1x512xf32>
    %c0_10 = arith.constant 0 : index
    %c0_11 = arith.constant 0 : index
    %13 = vector.load %arg4[%c0_10, %c0_11] : memref<1x512xf32, #tpu.memory_space<vmem>>, vector<1x512xf32>
    %14 = arith.addf %12, %13 : vector<1x512xf32>
    %15 = vector.extract_strided_slice %14 {offsets = [0, 0], sizes = [1, 128], strides = [1, 1]} : vector<1x512xf32> to vector<1x128xf32>
    %16 = arith.negf %15 : vector<1x128xf32>
    %17 = math.exp %16 : vector<1x128xf32>
    %cst_12 = arith.constant 1.000000e+00 : f32
    %18 = vector.broadcast %cst_12 : f32 to vector<1x128xf32>
    %19 = arith.addf %18, %17 : vector<1x128xf32>
    %20 = arith.divf %18, %19 : vector<1x128xf32>
    %21 = vector.extract_strided_slice %14 {offsets = [0, 128], sizes = [1, 128], strides = [1, 1]} : vector<1x512xf32> to vector<1x128xf32>
    %22 = arith.negf %21 : vector<1x128xf32>
    %23 = math.exp %22 : vector<1x128xf32>
    %cst_13 = arith.constant 1.000000e+00 : f32
    %24 = vector.broadcast %cst_13 : f32 to vector<1x128xf32>
    %25 = arith.addf %24, %23 : vector<1x128xf32>
    %26 = arith.divf %24, %25 : vector<1x128xf32>
    %27 = vector.extract_strided_slice %14 {offsets = [0, 256], sizes = [1, 128], strides = [1, 1]} : vector<1x512xf32> to vector<1x128xf32>
    %28 = math.tanh %27 : vector<1x128xf32>
    %29 = vector.extract_strided_slice %14 {offsets = [0, 384], sizes = [1, 128], strides = [1, 1]} : vector<1x512xf32> to vector<1x128xf32>
    %30 = arith.negf %29 : vector<1x128xf32>
    %31 = math.exp %30 : vector<1x128xf32>
    %cst_14 = arith.constant 1.000000e+00 : f32
    %32 = vector.broadcast %cst_14 : f32 to vector<1x128xf32>
    %33 = arith.addf %32, %31 : vector<1x128xf32>
    %34 = arith.divf %32, %33 : vector<1x128xf32>
    %35 = arith.mulf %26, %7 : vector<1x128xf32>
    %36 = arith.mulf %20, %28 : vector<1x128xf32>
    %37 = arith.addf %35, %36 : vector<1x128xf32>
    %38 = math.tanh %37 : vector<1x128xf32>
    %39 = arith.mulf %34, %38 : vector<1x128xf32>
    %40 = vector.extract_strided_slice %5 {offsets = [1, 0], sizes = [1, 512], strides = [1, 1]} : vector<2x512xf32> to vector<1x512xf32>
    %41 = arith.truncf %39 : vector<1x128xf32> to vector<1x128xbf16>
    %c0_15 = arith.constant 0 : index
    %c0_16 = arith.constant 0 : index
    %42 = vector.load %arg3[%c0_15, %c0_16] : memref<128x512xbf16, #tpu.memory_space<vmem>>, vector<128x512xbf16>
    %cst_17 = arith.constant dense<0.000000e+00> : vector<1x512xf32>
    %43 = tpu.matmul %41, %42, %cst_17 {dimension_numbers = #tpu.dot_dimension_numbers<[1], [0], [0], [1], [0, 0, 1, 1], [], []>} : vector<1x128xbf16>, vector<128x512xbf16>, vector<1x512xf32> -> vector<1x512xf32>
    %44 = arith.addf %40, %43 : vector<1x512xf32>
    %c0_18 = arith.constant 0 : index
    %c0_19 = arith.constant 0 : index
    %45 = vector.load %arg4[%c0_18, %c0_19] : memref<1x512xf32, #tpu.memory_space<vmem>>, vector<1x512xf32>
    %46 = arith.addf %44, %45 : vector<1x512xf32>
    %47 = vector.extract_strided_slice %46 {offsets = [0, 0], sizes = [1, 128], strides = [1, 1]} : vector<1x512xf32> to vector<1x128xf32>
    %48 = arith.negf %47 : vector<1x128xf32>
    %49 = math.exp %48 : vector<1x128xf32>
    %cst_20 = arith.constant 1.000000e+00 : f32
    %50 = vector.broadcast %cst_20 : f32 to vector<1x128xf32>
    %51 = arith.addf %50, %49 : vector<1x128xf32>
    %52 = arith.divf %50, %51 : vector<1x128xf32>
    %53 = vector.extract_strided_slice %46 {offsets = [0, 128], sizes = [1, 128], strides = [1, 1]} : vector<1x512xf32> to vector<1x128xf32>
    %54 = arith.negf %53 : vector<1x128xf32>
    %55 = math.exp %54 : vector<1x128xf32>
    %cst_21 = arith.constant 1.000000e+00 : f32
    %56 = vector.broadcast %cst_21 : f32 to vector<1x128xf32>
    %57 = arith.addf %56, %55 : vector<1x128xf32>
    %58 = arith.divf %56, %57 : vector<1x128xf32>
    %59 = vector.extract_strided_slice %46 {offsets = [0, 256], sizes = [1, 128], strides = [1, 1]} : vector<1x512xf32> to vector<1x128xf32>
    %60 = math.tanh %59 : vector<1x128xf32>
    %61 = vector.extract_strided_slice %46 {offsets = [0, 384], sizes = [1, 128], strides = [1, 1]} : vector<1x512xf32> to vector<1x128xf32>
    %62 = arith.negf %61 : vector<1x128xf32>
    %63 = math.exp %62 : vector<1x128xf32>
    %cst_22 = arith.constant 1.000000e+00 : f32
    %64 = vector.broadcast %cst_22 : f32 to vector<1x128xf32>
    %65 = arith.addf %64, %63 : vector<1x128xf32>
    %66 = arith.divf %64, %65 : vector<1x128xf32>
    %67 = arith.mulf %58, %37 : vector<1x128xf32>
    %68 = arith.mulf %52, %60 : vector<1x128xf32>
    %69 = arith.addf %67, %68 : vector<1x128xf32>
    %70 = math.tanh %69 : vector<1x128xf32>
    %71 = arith.mulf %66, %70 : vector<1x128xf32>
    %72 = tpu.concatenate %39, %71 in 0 : vector<1x128xf32>, vector<1x128xf32> -> vector<2x128xf32>
    %73 = arith.truncf %72 : vector<2x128xf32> to vector<2x128xbf16>
    %c0_23 = arith.constant 0 : index
    %c0_24 = arith.constant 0 : index
    %74 = vector.load %arg5[%c0_23, %c0_24] : memref<128x128xbf16, #tpu.memory_space<vmem>>, vector<128x128xbf16>
    %cst_25 = arith.constant dense<0.000000e+00> : vector<2x128xf32>
    %75 = tpu.matmul %73, %74, %cst_25 {dimension_numbers = #tpu.dot_dimension_numbers<[1], [0], [0], [1], [0, 0, 1, 1], [], []>} : vector<2x128xbf16>, vector<128x128xbf16>, vector<2x128xf32> -> vector<2x128xf32>
    %c0_26 = arith.constant 0 : index
    %c0_27 = arith.constant 0 : index
    %76 = vector.load %arg6[%c0_26, %c0_27] : memref<1x128xf32, #tpu.memory_space<vmem>>, vector<1x128xf32>
    %77 = vector.broadcast %76 : vector<1x128xf32> to vector<2x128xf32>
    %78 = arith.addf %75, %77 : vector<2x128xf32>
    %c0_28 = arith.constant 0 : index
    %c0_29 = arith.constant 0 : index
    %79 = vector.load %arg7[%c0_28, %c0_29] : memref<2x128xf32, #tpu.memory_space<vmem>>, vector<2x128xf32>
    tpu.vector_store %arg7[%c0_28, %c0_29], %78 {strides = array<i32>} : memref<2x128xf32, #tpu.memory_space<vmem>>, vector<2x128xf32>,
    return
  }
}

</mosaic_0001>

<llo_original>
// kernel: catrsdnet1_forward.2
$region0: #{catrsdnet1_forward.2}
  #allocation0 [shape = 'u32[]', space=smem, size = 0x4, offset = 0x4, fixed_abs, tag = 'smem constant byte address 0x4 - core index']
  #allocation1 [shape = 'u32[144,128]{1,0:T(1,128)}', space=vmem, size = 0x12000, scoped, tag = 'internal scratch']
  #allocation2 [shape = 'f32[8,128]{1,0:T(8,128)}', space=vmem, size = 0x1000, scoped, tag = 'scratch operand']
  %s0 = inlined_call_operand.vmem [shape: bf16[2,64,256], index: 0, kind: input, shape index: {}]
  %s1 = inlined_call_operand.vmem [shape: bf16[256,128], index: 1, kind: input, shape index: {}]
  %s2 = inlined_call_operand.vmem [shape: bf16[128,1664], index: 2, kind: input, shape index: {}]
  %s3 = inlined_call_operand.vmem [shape: f32[2,1,1664], index: 3, kind: output, shape index: {}]
  %s4 = sld [smem:[#allocation0]]
  $region53: #{catrsdnet1_forward.2} parent=0
    _
  %s6 = ssub.s32 1, %s4
  %s7 = scalar_select 0, %s6, %s4
  loop: start=0, step=1, limit=6
  $region2: #{catrsdnet1_forward.2} parent=0 // loop_pre_header
    _
  $region3: #{catrsdnet1_forward.2} parent=0 // loop_header
    %s9 = sphi 0, %s13
    %p10 = scmp.ge.s32.totalorder %s9, 6
    %s16 = sphi 0, %s28
    %s17 = sphi 0, %s24
    %s18 = sphi 0, %s16
    %s19 = sphi 0, %s17
    %s20 = sphi 0, %s18
    %s21 = sphi 0, %s19
    %s33 = sphi 0, %s35
    %s36 = sphi 0, %s33
    %s37 = sphi 0, %s36
    %s53 = sphi 0, %s37
    %s57 = sphi 0, %s57
    %s59 = sphi 0, %s57
    %s60 = sphi 0, %s59
    %s74 = sphi 0, %s60
    %s78 = sphi 0, %s78
    %s80 = sphi 0, %s78
    %s81 = sphi 0, %s80
    %s95 = sphi 0, %s81
    %s101 = sphi 0, %s103
    %s104 = sphi 0, %s101
    %s105 = sphi 0, %s104
    %s121 = sphi 0, %s105
  $region4: #{catrsdnet1_forward.2} parent=0 // loop_header_branch
    %12 = sbr.rel (%p10) target = $region8
  $region5: #{catrsdnet1_forward.2} parent=0 // loop_body
    %s14 = ssub.s32 %s9, 1
    %s15 = ssub.s32 %s9, 2
    %s22 = sadd.s32 1, %s17
    %p23 = scmp.ge.s32.totalorder %s22, 2
    %s24 = scalar_select %p23, 0, %s22
    %s25 = sadd.s32 1, %s16
    %s26 = scalar_select %p23, %s25, %s16
    %p27 = scmp.ge.s32.totalorder %s26, 2
    %s28 = scalar_select %p27, 0, %s26
    %s29 = ssub.s32 %s16, %s28
    %s30 = ssub.s32 %s17, %s24
    %s31 = sor.u32 %s29, %s30
    %p32 = scmp.eq.s32.totalorder %s31, 0
    %s34 = sadd.s32 %s33, 1
    %s35 = scalar_select %p32, %s33, %s34
    %p38 = pneg %p32
    %p39 = scmp.eq.s32.totalorder %s9, 3
    %p40 = por %p38, %p39
    %p41 = scmp.ne.s32.totalorder %s33, %s36
    %p42 = scmp.eq.s32.totalorder %s9, 0
    %p43 = por %p41, %p42
    %p44 = scmp.ne.s32.totalorder %s33, %s36
    %p45 = scmp.eq.s32.totalorder %s14, 3
    %p46 = por %p44, %p45
    %p47 = scmp.ne.s32.totalorder %s36, %s37
    %p48 = scmp.eq.s32.totalorder %s14, 0
    %p49 = por %p47, %p48
    %p50 = scmp.ne.s32.totalorder %s36, %s37
    %p51 = scmp.eq.s32.totalorder %s15, 3
    %p52 = por %p50, %p51
    %p54 = scmp.ne.s32.totalorder %s37, %s53
    %p55 = scmp.eq.s32.totalorder %s15, 0
    %p56 = por %p54, %p55
    %s58 = sadd.s32 %s57, 1
    %p61 = scmp.eq.s32.totalorder %s9, 3
    %p62 = scmp.ne.s32.totalorder %s57, %s59
    %p63 = scmp.eq.s32.totalorder %s9, 0
    %p64 = por %p62, %p63
    %p65 = scmp.ne.s32.totalorder %s57, %s59
    %p66 = scmp.eq.s32.totalorder %s14, 3
    %p67 = por %p65, %p66
    %p68 = scmp.ne.s32.totalorder %s59, %s60
    %p69 = scmp.eq.s32.totalorder %s14, 0
    %p70 = por %p68, %p69
    %p71 = scmp.ne.s32.totalorder %s59, %s60
    %p72 = scmp.eq.s32.totalorder %s15, 3
    %p73 = por %p71, %p72
    %p75 = scmp.ne.s32.totalorder %s60, %s74
    %p76 = scmp.eq.s32.totalorder %s15, 0
    %p77 = por %p75, %p76
    %s79 = sadd.s32 %s78, 1
    %p82 = scmp.eq.s32.totalorder %s9, 3
    %p83 = scmp.ne.s32.totalorder %s78, %s80
    %p84 = scmp.eq.s32.totalorder %s9, 0
    %p85 = por %p83, %p84
    %p86 = scmp.ne.s32.totalorder %s78, %s80
    %p87 = scmp.eq.s32.totalorder %s14, 3
    %p88 = por %p86, %p87
    %p89 = scmp.ne.s32.totalorder %s80, %s81
    %p90 = scmp.eq.s32.totalorder %s14, 0
    %p91 = por %p89, %p90
    %p92 = scmp.ne.s32.totalorder %s80, %s81
    %p93 = scmp.eq.s32.totalorder %s15, 3
    %p94 = por %p92, %p93
    %p96 = scmp.ne.s32.totalorder %s81, %s95
    %p97 = scmp.eq.s32.totalorder %s15, 0
    %p98 = por %p96, %p97
    %s99 = ssub.s32 %s16, %s28
    %p100 = scmp.eq.s32.totalorder %s99, 0
    %s102 = sadd.s32 %s101, 1
    %s103 = scalar_select %p100, %s101, %s102
    %p106 = pneg %p100
    %p107 = scmp.eq.s32.totalorder %s9, 3
    %p108 = por %p106, %p107
    %p109 = scmp.ne.s32.totalorder %s101, %s104
    %p110 = scmp.eq.s32.totalorder %s9, 0
    %p111 = por %p109, %p110
    %p112 = scmp.ne.s32.totalorder %s101, %s104
    %p113 = scmp.eq.s32.totalorder %s14, 3
    %p114 = por %p112, %p113
    %p115 = scmp.ne.s32.totalorder %s104, %s105
    %p116 = scmp.eq.s32.totalorder %s14, 0
    %p117 = por %p115, %p116
    %p118 = scmp.ne.s32.totalorder %s104, %s105
    %p119 = scmp.eq.s32.totalorder %s15, 3
    %p120 = por %p118, %p119
    %p122 = scmp.ne.s32.totalorder %s105, %s121
    %p123 = scmp.eq.s32.totalorder %s15, 0
    %p124 = por %p122, %p123
    %p125 = scmp.le.s32.totalorder 1, %s9
    %p126 = scmp.lt.s32.totalorder %s9, 5
    %p127 = pnand %p125, %p126
    %p128 = pneg %p127
    // Predicated region
    $region9: #{catrsdnet1_forward.2} parent=5 // pred_check
      _
    $region10: #{catrsdnet1_forward.2} parent=5 // pred_check_branch
      %130 = sbr.rel (%p127) target = $region12
    $region11: #{catrsdnet1_forward.2} parent=5 // pred_region
      %s131 = ssub.s32 %s9, 1
      // Predicated region
      $region13: #{catrsdnet1_forward.2} parent=11 // pred_check
        %p132 = pneg %p70
      $region14: #{catrsdnet1_forward.2} parent=11 // pred_check_branch
        %134 = sbr.rel (%p132) target = $region16
      $region15: #{catrsdnet1_forward.2} parent=11 // pred_region
        _
      $region16: #{catrsdnet1_forward.2} parent=11 // pred_fallthru
        _
      // Predicated region
      $region17: #{catrsdnet1_forward.2} parent=11 // pred_check
        %p135 = pneg %p91
      $region18: #{catrsdnet1_forward.2} parent=11 // pred_check_branch
        %137 = sbr.rel (%p135) target = $region20
      $region19: #{catrsdnet1_forward.2} parent=11 // pred_region
        _
      $region20: #{catrsdnet1_forward.2} parent=11 // pred_fallthru
        _
    $region12: #{catrsdnet1_forward.2} parent=5 // pred_fallthru
      _
    %p138 = scmp.lt.s32.totalorder %s9, 4
    // Predicated region
    $region21: #{catrsdnet1_forward.2} parent=5 // pred_check
      %p139 = pneg %p138
    $region22: #{catrsdnet1_forward.2} parent=5 // pred_check_branch
      %141 = sbr.rel (%p139) target = $region24
    $region23: #{catrsdnet1_forward.2} parent=5 // pred_region
      // Predicated region
      $region25: #{catrsdnet1_forward.2} parent=23 // pred_check
        %p142 = pneg %p43
      $region26: #{catrsdnet1_forward.2} parent=23 // pred_check_branch
        %144 = sbr.rel (%p142) target = $region28
      $region27: #{catrsdnet1_forward.2} parent=23 // pred_region
        %s145 = smul.u32 4, %s17
        %p146 = scmp.lt.s32.totalorder %s16, 1
        %s147 = scalar_select %p146, %s16, 1
        %p148 = scmp.lt.s32.totalorder %s145, 7
        %s149 = scalar_select %p148, %s145, 7
        %s150 = smul.addr %s149, 2
        %s151 = smul.addr %s147, 16
        %s152 = sadd.s32 %s150, %s151
        %s153 = smul.addr %s152, 4
        %s154 = scalar_lea.vmem %s0, %s153
        %s155 = smul.u32 4, %s17
      $region28: #{catrsdnet1_forward.2} parent=23 // pred_fallthru
        _
    $region24: #{catrsdnet1_forward.2} parent=5 // pred_fallthru
      _
    %p156 = scmp.le.s32.totalorder 1, %s9
    %p157 = scmp.lt.s32.totalorder %s9, 5
    %p158 = pnand %p156, %p157
    %p159 = pneg %p158
    // Predicated region
    $region29: #{catrsdnet1_forward.2} parent=5 // pred_check
      _
    $region30: #{catrsdnet1_forward.2} parent=5 // pred_check_branch
      %161 = sbr.rel (%p158) target = $region32
    $region31: #{catrsdnet1_forward.2} parent=5 // pred_region
      %s162 = ssub.s32 %s9, 1
      %s163 = smul.u32 4, %s19
      %p164 = scmp.lt.s32.totalorder %s18, 1
      %s165 = scalar_select %p164, %s18, 1
      %p166 = scmp.lt.s32.totalorder %s163, 7
      %s167 = scalar_select %p166, %s163, 7
      %s168 = smul.addr %s167, 2
      %s169 = smul.addr %s165, 16
      %s170 = sadd.s32 %s168, %s169
      %s171 = smul.addr %s170, 4
      %s172 = scalar_lea.vmem %s0, %s171
      %p173 = pneg %p49
      %p174 = pneg %p46
      %p175 = pneg %p70
      %p176 = pneg %p67
      %p177 = pneg %p91
      %p178 = pneg %p88
      %p179 = pneg %p117
      %p180 = pneg %p114
      %p181 = scmp.lt.s32.totalorder %s18, 1
      %s182 = scalar_select %p181, %s18, 1
      %s183 = smul.addr %s182, 13
      %s184 = scalar_lea.vmem %s3, %s183
      %s185 = smul.u32 4, %s19
      %p186 = scmp.lt.s32.totalorder %s18, 1
      %s187 = scalar_select %p186, %s18, 1
      %p188 = scmp.lt.s32.totalorder %s185, 7
      %s189 = scalar_select %p188, %s185, 7
      %s190 = smul.addr %s189, 2
      %s191 = smul.addr %s187, 16
      %s192 = sadd.s32 %s190, %s191
      %s193 = smul.addr %s192, 4
      %s194 = scalar_lea.vmem %s0, %s193
      %s195 = smul.u32 4, %s19
      %p196 = scmp.lt.s32.totalorder %s18, 1
      %s197 = scalar_select %p196, %s18, 1
      %s198 = smul.addr %s197, 13
      %s199 = scalar_lea.vmem %s3, %s198
      %p201 = scmp.eq.s32.totalorder %s19, 0
      // Predicated region
      $region33: #{catrsdnet1_forward.2} parent=31 // pred_check
        %p202 = pneg %p201
      $region34: #{catrsdnet1_forward.2} parent=31 // pred_check_branch
        %204 = sbr.rel (%p202) target = $region36
      $region35: #{catrsdnet1_forward.2} parent=31 // pred_region
        %205 = vst [vmem:[#allocation2] sm:$0xff] 0.0
      $region36: #{catrsdnet1_forward.2} parent=31 // pred_fallthru
        _
      %v206 = vld [vmem:[%s194] sm:$0xff]
      %v207 = vld [vmem:[%s194 + $0x8] sm:$0xff]
      %v208 = vld [vmem:[%s194 + $0x10] sm:$0xff]
      %v209 = vld [vmem:[%s194 + $0x18] sm:$0xff]
      %v210 = vld [vmem:[%s1] sm:$0xf]
      %v211 = vld [vmem:[%s1 + $0x4] sm:$0xf]
      %v212 = vld [vmem:[%s1 + $0x8] sm:$0xf]
      %v213 = vld [vmem:[%s1 + $0xc] sm:$0xf]
      %v214 = vld [vmem:[%s1 + $0x10] sm:$0xf]
      %v215 = vld [vmem:[%s1 + $0x14] sm:$0xf]
      %v216 = vld [vmem:[%s1 + $0x18] sm:$0xf]
      %v217 = vld [vmem:[%s1 + $0x1c] sm:$0xf]
      %v218 = vld [vmem:[%s1 + $0x20] sm:$0xf]
      %v219 = vld [vmem:[%s1 + $0x24] sm:$0xf]
      %v220 = vld [vmem:[%s1 + $0x28] sm:$0xf]
      %v221 = vld [vmem:[%s1 + $0x2c] sm:$0xf]
      %v222 = vld [vmem:[%s1 + $0x30] sm:$0xf]
      %v223 = vld [vmem:[%s1 + $0x34] sm:$0xf]
      %v224 = vld [vmem:[%s1 + $0x38] sm:$0xf]
      %v225 = vld [vmem:[%s1 + $0x3c] sm:$0xf]
      %v226 = vld [vmem:[%s1 + $0x40] sm:$0xf]
      %v227 = vld [vmem:[%s1 + $0x44] sm:$0xf]
      %v228 = vld [vmem:[%s1 + $0x48] sm:$0xf]
      %v229 = vld [vmem:[%s1 + $0x4c] sm:$0xf]
      %v230 = vld [vmem:[%s1 + $0x50] sm:$0xf]
      %v231 = vld [vmem:[%s1 + $0x54] sm:$0xf]
      %v232 = vld [vmem:[%s1 + $0x58] sm:$0xf]
      %v233 = vld [vmem:[%s1 + $0x5c] sm:$0xf]
      %v234 = vld [vmem:[%s1 + $0x60] sm:$0xf]
      %v235 = vld [vmem:[%s1 + $0x64] sm:$0xf]
      %v236 = vld [vmem:[%s1 + $0x68] sm:$0xf]
      %v237 = vld [vmem:[%s1 + $0x6c] sm:$0xf]
      %v238 = vld [vmem:[%s1 + $0x70] sm:$0xf]
      %v239 = vld [vmem:[%s1 + $0x74] sm:$0xf]
      %v240 = vld [vmem:[%s1 + $0x78] sm:$0xf]
      %v241 = vld [vmem:[%s1 + $0x7c] sm:$0xf]
      %v246 = vunpack.c.l.b16 %v206
      %v247 = vunpack.c.h.b16 %v206
      %v248 = vunpack.c.l.b16 %v207
      %v249 = vunpack.c.h.b16 %v207
      %v250 = vunpack.c.l.b16 %v208
      %v251 = vunpack.c.h.b16 %v208
      %v252 = vunpack.c.l.b16 %v209
      %v253 = vunpack.c.h.b16 %v209
      %v254 = vpack.c.b16 %v248, %v246
      %v255 = vpack.c.b16 %v249, %v247
      %v256 = vpack.c.b16 %v252, %v250
      %v257 = vpack.c.b16 %v253, %v251
      %v294 = vunpack.c.l.b16 %v210
      %v295 = vunpack.c.l.b16 %v211
      %v296 = vunpack.c.l.b16 %v212
      %v297 = vunpack.c.l.b16 %v213
      %v298 = vunpack.c.l.b16 %v214
      %v299 = vunpack.c.l.b16 %v215
      %v300 = vunpack.c.l.b16 %v216
      %v301 = vunpack.c.l.b16 %v217
      %v302 = vunpack.c.l.b16 %v218
      %v303 = vunpack.c.l.b16 %v219
      %v304 = vunpack.c.l.b16 %v220
      %v305 = vunpack.c.l.b16 %v221
      %v306 = vunpack.c.l.b16 %v222
      %v307 = vunpack.c.l.b16 %v223
      %v308 = vunpack.c.l.b16 %v224
      %v309 = vunpack.c.l.b16 %v225
      %v310 = vunpack.c.l.b16 %v226
      %v311 = vunpack.c.l.b16 %v227
      %v312 = vunpack.c.l.b16 %v228
      %v313 = vunpack.c.l.b16 %v229
      %v314 = vunpack.c.l.b16 %v230
      %v315 = vunpack.c.l.b16 %v231
      %v316 = vunpack.c.l.b16 %v232
      %v317 = vunpack.c.l.b16 %v233
      %v318 = vunpack.c.l.b16 %v234
      %v319 = vunpack.c.l.b16 %v235
      %v320 = vunpack.c.l.b16 %v236
      %v321 = vunpack.c.l.b16 %v237
      %v322 = vunpack.c.l.b16 %v238
      %v323 = vunpack.c.l.b16 %v239
      %v324 = vunpack.c.l.b16 %v240
      %v325 = vunpack.c.l.b16 %v241
      %v326 = vpack.c.b16 %v295, %v294
      %v327 = vpack.c.b16 %v297, %v296
      %v328 = vpack.c.b16 %v299, %v298
      %v329 = vpack.c.b16 %v301, %v300
      %v330 = vpack.c.b16 %v303, %v302
      %v331 = vpack.c.b16 %v305, %v304
      %v332 = vpack.c.b16 %v307, %v306
      %v333 = vpack.c.b16 %v309, %v308
      %v334 = vpack.c.b16 %v311, %v310
      %v335 = vpack.c.b16 %v313, %v312
      %v336 = vpack.c.b16 %v315, %v314
      %v337 = vpack.c.b16 %v317, %v316
      %v338 = vpack.c.b16 %v319, %v318
      %v339 = vpack.c.b16 %v321, %v320
      %v340 = vpack.c.b16 %v323, %v322
      %v341 = vpack.c.b16 %v325, %v324
      %358 = vmatprep.subr.bf16.mxu0 0
      %359 = vmatpush1.bf16.msra.mxu0 %v333
      %360 = vmatprep.subr.bf16.mxu0 0
      %361 = vmatpush1.bf16.msra.mxu0 %v332
      %362 = vmatprep.subr.bf16.mxu0 0
      %363 = vmatpush1.bf16.msra.mxu0 %v331
      %364 = vmatprep.subr.bf16.mxu0 0
      %365 = vmatpush1.bf16.msra.mxu0 %v330
      %366 = vmatprep.subr.bf16.mxu0 0
      %367 = vmatpush1.bf16.msra.mxu0 %v329
      %368 = vmatprep.subr.bf16.mxu0 0
      %369 = vmatpush1.bf16.msra.mxu0 %v328
      %370 = vmatprep.subr.bf16.mxu0 0
      %371 = vmatpush1.bf16.msra.mxu0 %v327
      %372 = vmatprep.subr.bf16.mxu0 0
      %373 = vmatpush1.bf16.msra.mxu0 %v326
      %374 = vmatprep.subr.bf16.mxu0 0
      %375 = vmatpush2.bf16.msra.mxu0 %v341
      %376 = vmatprep.subr.bf16.mxu0 0
      %377 = vmatpush2.bf16.msra.mxu0 %v340
      %378 = vmatprep.subr.bf16.mxu0 0
      %379 = vmatpush2.bf16.msra.mxu0 %v339
      %380 = vmatprep.subr.bf16.mxu0 0
      %381 = vmatpush2.bf16.msra.mxu0 %v338
      %382 = vmatprep.subr.bf16.mxu0 0
      %383 = vmatpush2.bf16.msra.mxu0 %v337
      %384 = vmatprep.subr.bf16.mxu0 0
      %385 = vmatpush2.bf16.msra.mxu0 %v336
      %386 = vmatprep.subr.bf16.mxu0 0
      %387 = vmatpush2.bf16.msra.mxu0 %v335
      %388 = vmatprep.subr.bf16.mxu0 0
      %389 = vmatpush2.bf16.msra.mxu0 %v334
      %390 = vmatprep.mubr.bf16.mxu0 %v255
      %391 = vmatmul.mubr.bf16.gmra.mxu0 %v254
      %v392 = vpop.f32.mrf.mxu0
      %v393 = vadd.f32 0.0, %v392
      %v394 = vpop.f32.mrf.mxu0
      %v395 = vpop.f32.mrf.mxu0
      %v396 = vadd.f32 0.0, %v395
      %v397 = vpop.f32.mrf.mxu0
      %398 = vmatprep.mubr.bf16.mxu0 %v257
      %399 = vmatmul.mubr.bf16.gmra.mxu0 %v256
      %v400 = vpop.f32.mrf.mxu0
      %v401 = vadd.f32 0.0, %v400
      %v402 = vpop.f32.mrf.mxu0
      %v403 = vpop.f32.mrf.mxu0
      %v404 = vadd.f32 0.0, %v403
      %v405 = vpop.f32.mrf.mxu0
      %406 = vdwg.mxu0
      %v407 = vmax.f32 %v393, 0.0
      %v408 = vmax.f32 %v396, 0.0
      %v409 = vmax.f32 %v401, 0.0
      %v410 = vmax.f32 %v404, 0.0
      %v411 = vld [vmem:[#allocation2] sm:$0xff]
      %v412 = vadd.f32 %v407, %v408
      %v413 = vadd.f32 %v412, %v409
      %v414 = vadd.f32 %v413, %v410
      %v415 = vadd.f32 %v411, %v414
      %416 = vst [vmem:[#allocation2] sm:$0xff] %v415
      %p417 = scmp.eq.s32.totalorder %s19, 1
      // Predicated region
      $region37: #{catrsdnet1_forward.2} parent=31 // pred_check
        %p418 = pneg %p417
      $region38: #{catrsdnet1_forward.2} parent=31 // pred_check_branch
        %420 = sbr.rel (%p418) target = $region40
      $region39: #{catrsdnet1_forward.2} parent=31 // pred_region
        %v421 = vld [vmem:[#allocation2] sm:$0xff]
        %v422 = vrot.slane %v421, 4
        %v423 = vadd.f32 %v421, %v422
        %v424 = vrot.slane %v423, 2
        %v425 = vadd.f32 %v423, %v424
        %v426 = vrot.slane %v425, 1
        %v427 = vadd.f32 %v425, %v426
        %v428 = vmul.f32 %v427, 0.015625
        %v429 = vpack.c.bf16 %v428, %v428
        %v430 = vld [vmem:[%s2] sm:$0xff]
        %v431 = vld [vmem:[%s2 + $0x8] sm:$0xff]
        %v432 = vld [vmem:[%s2 + $0x10] sm:$0xff]
        %v433 = vld [vmem:[%s2 + $0x18] sm:$0xff]
        %v434 = vld [vmem:[%s2 + $0x20] sm:$0xff]
        %v435 = vld [vmem:[%s2 + $0x28] sm:$0xff]
        %v436 = vld [vmem:[%s2 + $0x30] sm:$0xf]
        %v437 = vld [vmem:[%s2 + $0x34] sm:$0xff]
        %v438 = vld [vmem:[%s2 + $0x3c] sm:$0xff]
        %v439 = vld [vmem:[%s2 + $0x44] sm:$0xff]
        %v440 = vld [vmem:[%s2 + $0x4c] sm:$0xff]
        %v441 = vld [vmem:[%s2 + $0x54] sm:$0xff]
        %v442 = vld [vmem:[%s2 + $0x5c] sm:$0xff]
        %v443 = vld [vmem:[%s2 + $0x64] sm:$0xf]
        %v444 = vld [vmem:[%s2 + $0x68] sm:$0xff]
        %v445 = vld [vmem:[%s2 + $0x70] sm:$0xff]
        %v446 = vld [vmem:[%s2 + $0x78] sm:$0xff]
        %v447 = vld [vmem:[%s2 + $0x80] sm:$0xff]
        %v448 = vld [vmem:[%s2 + $0x88] sm:$0xff]
        %v449 = vld [vmem:[%s2 + $0x90] sm:$0xff]
        %v450 = vld [vmem:[%s2 + $0x98] sm:$0xf]
        %v451 = vld [vmem:[%s2 + $0x9c] sm:$0xff]
        %v452 = vld [vmem:[%s2 + $0xa4] sm:$0xff]
        %v453 = vld [vmem:[%s2 + $0xac] sm:$0xff]
        %v454 = vld [vmem:[%s2 + $0xb4] sm:$0xff]
        %v455 = vld [vmem:[%s2 + $0xbc] sm:$0xff]
        %v456 = vld [vmem:[%s2 + $0xc4] sm:$0xff]
        %v457 = vld [vmem:[%s2 + $0xcc] sm:$0xf]
        %v458 = vld [vmem:[%s2 + $0xd0] sm:$0xff]
        %v459 = vld [vmem:[%s2 + $0xd8] sm:$0xff]
        %v460 = vld [vmem:[%s2 + $0xe0] sm:$0xff]
        %v461 = vld [vmem:[%s2 + $0xe8] sm:$0xff]
        %v462 = vld [vmem:[%s2 + $0xf0] sm:$0xff]
        %v463 = vld [vmem:[%s2 + $0xf8] sm:$0xff]
        %v464 = vld [vmem:[%s2 + $0x100] sm:$0xf]
        %v465 = vld [vmem:[%s2 + $0x104] sm:$0xff]
        %v466 = vld [vmem:[%s2 + $0x10c] sm:$0xff]
        %v467 = vld [vmem:[%s2 + $0x114] sm:$0xff]
        %v468 = vld [vmem:[%s2 + $0x11c] sm:$0xff]
        %v469 = vld [vmem:[%s2 + $0x124] sm:$0xff]
        %v470 = vld [vmem:[%s2 + $0x12c] sm:$0xff]
        %v471 = vld [vmem:[%s2 + $0x134] sm:$0xf]
        %v472 = vld [vmem:[%s2 + $0x138] sm:$0xff]
        %v473 = vld [vmem:[%s2 + $0x140] sm:$0xff]
        %v474 = vld [vmem:[%s2 + $0x148] sm:$0xff]
        %v475 = vld [vmem:[%s2 + $0x150] sm:$0xff]
        %v476 = vld [vmem:[%s2 + $0x158] sm:$0xff]
        %v477 = vld [vmem:[%s2 + $0x160] sm:$0xff]
        %v478 = vld [vmem:[%s2 + $0x168] sm:$0xf]
        %v479 = vld [vmem:[%s2 + $0x16c] sm:$0xff]
        %v480 = vld [vmem:[%s2 + $0x174] sm:$0xff]
        %v481 = vld [vmem:[%s2 + $0x17c] sm:$0xff]
        %v482 = vld [vmem:[%s2 + $0x184] sm:$0xff]
        %v483 = vld [vmem:[%s2 + $0x18c] sm:$0xff]
        %v484 = vld [vmem:[%s2 + $0x194] sm:$0xff]
        %v485 = vld [vmem:[%s2 + $0x19c] sm:$0xf]
        %v486 = vld [vmem:[%s2 + $0x1a0] sm:$0xff]
        %v487 = vld [vmem:[%s2 + $0x1a8] sm:$0xff]
        %v488 = vld [vmem:[%s2 + $0x1b0] sm:$0xff]
        %v489 = vld [vmem:[%s2 + $0x1b8] sm:$0xff]
        %v490 = vld [vmem:[%s2 + $0x1c0] sm:$0xff]
        %v491 = vld [vmem:[%s2 + $0x1c8] sm:$0xff]
        %v492 = vld [vmem:[%s2 + $0x1d0] sm:$0xf]
        %v493 = vld [vmem:[%s2 + $0x1d4] sm:$0xff]
        %v494 = vld [vmem:[%s2 + $0x1dc] sm:$0xff]
        %v495 = vld [vmem:[%s2 + $0x1e4] sm:$0xff]
        %v496 = vld [vmem:[%s2 + $0x1ec] sm:$0xff]
        %v497 = vld [vmem:[%s2 + $0x1f4] sm:$0xff]
        %v498 = vld [vmem:[%s2 + $0x1fc] sm:$0xff]
        %v499 = vld [vmem:[%s2 + $0x204] sm:$0xf]
        %v500 = vld [vmem:[%s2 + $0x208] sm:$0xff]
        %v501 = vld [vmem:[%s2 + $0x210] sm:$0xff]
        %v502 = vld [vmem:[%s2 + $0x218] sm:$0xff]
        %v503 = vld [vmem:[%s2 + $0x220] sm:$0xff]
        %v504 = vld [vmem:[%s2 + $0x228] sm:$0xff]
        %v505 = vld [vmem:[%s2 + $0x230] sm:$0xff]
        %v506 = vld [vmem:[%s2 + $0x238] sm:$0xf]
        %v507 = vld [vmem:[%s2 + $0x23c] sm:$0xff]
        %v508 = vld [vmem:[%s2 + $0x244] sm:$0xff]
        %v509 = vld [vmem:[%s2 + $0x24c] sm:$0xff]
        %v510 = vld [vmem:[%s2 + $0x254] sm:$0xff]
        %v511 = vld [vmem:[%s2 + $0x25c] sm:$0xff]
        %v512 = vld [vmem:[%s2 + $0x264] sm:$0xff]
        %v513 = vld [vmem:[%s2 + $0x26c] sm:$0xf]
        %v514 = vld [vmem:[%s2 + $0x270] sm:$0xff]
        %v515 = vld [vmem:[%s2 + $0x278] sm:$0xff]
        %v516 = vld [vmem:[%s2 + $0x280] sm:$0xff]
        %v517 = vld [vmem:[%s2 + $0x288] sm:$0xff]
        %v518 = vld [vmem:[%s2 + $0x290] sm:$0xff]
        %v519 = vld [vmem:[%s2 + $0x298] sm:$0xff]
        %v520 = vld [vmem:[%s2 + $0x2a0] sm:$0xf]
        %v521 = vld [vmem:[%s2 + $0x2a4] sm:$0xff]
        %v522 = vld [vmem:[%s2 + $0x2ac] sm:$0xff]
        %v523 = vld [vmem:[%s2 + $0x2b4] sm:$0xff]
        %v524 = vld [vmem:[%s2 + $0x2bc] sm:$0xff]
        %v525 = vld [vmem:[%s2 + $0x2c4] sm:$0xff]
        %v526 = vld [vmem:[%s2 + $0x2cc] sm:$0xff]
        %v527 = vld [vmem:[%s2 + $0x2d4] sm:$0xf]
        %v528 = vld [vmem:[%s2 + $0x2d8] sm:$0xff]
        %v529 = vld [vmem:[%s2 + $0x2e0] sm:$0xff]
        %v530 = vld [vmem:[%s2 + $0x2e8] sm:$0xff]
        %v531 = vld [vmem:[%s2 + $0x2f0] sm:$0xff]
        %v532 = vld [vmem:[%s2 + $0x2f8] sm:$0xff]
        %v533 = vld [vmem:[%s2 + $0x300] sm:$0xff]
        %v534 = vld [vmem:[%s2 + $0x308] sm:$0xf]
        %v535 = vld [vmem:[%s2 + $0x30c] sm:$0xff]
        %v536 = vld [vmem:[%s2 + $0x314] sm:$0xff]
        %v537 = vld [vmem:[%s2 + $0x31c] sm:$0xff]
        %v538 = vld [vmem:[%s2 + $0x324] sm:$0xff]
        %v539 = vld [vmem:[%s2 + $0x32c] sm:$0xff]
        %v540 = vld [vmem:[%s2 + $0x334] sm:$0xff]
        %v541 = vld [vmem:[%s2 + $0x33c] sm:$0xf]
        %v654 = vunpack.c.l.b16 %v430
        %v655 = vunpack.c.h.b16 %v430
        %v656 = vunpack.c.l.b16 %v431
        %v657 = vunpack.c.h.b16 %v431
        %v658 = vunpack.c.l.b16 %v432
        %v659 = vunpack.c.h.b16 %v432
        %v660 = vunpack.c.l.b16 %v433
        %v661 = vunpack.c.h.b16 %v433
        %v662 = vunpack.c.l.b16 %v434
        %v663 = vunpack.c.h.b16 %v434
        %v664 = vunpack.c.l.b16 %v435
        %v665 = vunpack.c.h.b16 %v435
        %v666 = vunpack.c.l.b16 %v436
        %v667 = vunpack.c.l.b16 %v437
        %v668 = vunpack.c.h.b16 %v437
        %v669 = vunpack.c.l.b16 %v438
        %v670 = vunpack.c.h.b16 %v438
        %v671 = vunpack.c.l.b16 %v439
        %v672 = vunpack.c.h.b16 %v439
        %v673 = vunpack.c.l.b16 %v440
        %v674 = vunpack.c.h.b16 %v440
        %v675 = vunpack.c.l.b16 %v441
        %v676 = vunpack.c.h.b16 %v441
        %v677 = vunpack.c.l.b16 %v442
        %v678 = vunpack.c.h.b16 %v442
        %v679 = vunpack.c.l.b16 %v443
        %v680 = vunpack.c.l.b16 %v444
        %v681 = vunpack.c.h.b16 %v444
        %v682 = vunpack.c.l.b16 %v445
        %v683 = vunpack.c.h.b16 %v445
        %v684 = vunpack.c.l.b16 %v446
        %v685 = vunpack.c.h.b16 %v446
        %v686 = vunpack.c.l.b16 %v447
        %v687 = vunpack.c.h.b16 %v447
        %v688 = vunpack.c.l.b16 %v448
        %v689 = vunpack.c.h.b16 %v448
        %v690 = vunpack.c.l.b16 %v449
        %v691 = vunpack.c.h.b16 %v449
        %v692 = vunpack.c.l.b16 %v450
        %v693 = vunpack.c.l.b16 %v451
        %v694 = vunpack.c.h.b16 %v451
        %v695 = vunpack.c.l.b16 %v452
        %v696 = vunpack.c.h.b16 %v452
        %v697 = vunpack.c.l.b16 %v453
        %v698 = vunpack.c.h.b16 %v453
        %v699 = vunpack.c.l.b16 %v454
        %v700 = vunpack.c.h.b16 %v454
        %v701 = vunpack.c.l.b16 %v455
        %v702 = vunpack.c.h.b16 %v455
        %v703 = vunpack.c.l.b16 %v456
        %v704 = vunpack.c.h.b16 %v456
        %v705 = vunpack.c.l.b16 %v457
        %v706 = vunpack.c.l.b16 %v458
        %v707 = vunpack.c.h.b16 %v458
        %v708 = vunpack.c.l.b16 %v459
        %v709 = vunpack.c.h.b16 %v459
        %v710 = vunpack.c.l.b16 %v460
        %v711 = vunpack.c.h.b16 %v460
        %v712 = vunpack.c.l.b16 %v461
        %v713 = vunpack.c.h.b16 %v461
        %v714 = vunpack.c.l.b16 %v462
        %v715 = vunpack.c.h.b16 %v462
        %v716 = vunpack.c.l.b16 %v463
        %v717 = vunpack.c.h.b16 %v463
        %v718 = vunpack.c.l.b16 %v464
        %v719 = vunpack.c.l.b16 %v465
        %v720 = vunpack.c.h.b16 %v465
        %v721 = vunpack.c.l.b16 %v466
        %v722 = vunpack.c.h.b16 %v466
        %v723 = vunpack.c.l.b16 %v467
        %v724 = vunpack.c.h.b16 %v467
        %v725 = vunpack.c.l.b16 %v468
        %v726 = vunpack.c.h.b16 %v468
        %v727 = vunpack.c.l.b16 %v469
        %v728 = vunpack.c.h.b16 %v469
        %v729 = vunpack.c.l.b16 %v470
        %v730 = vunpack.c.h.b16 %v470
        %v731 = vunpack.c.l.b16 %v471
        %v732 = vunpack.c.l.b16 %v472
        %v733 = vunpack.c.h.b16 %v472
        %v734 = vunpack.c.l.b16 %v473
        %v735 = vunpack.c.h.b16 %v473
        %v736 = vunpack.c.l.b16 %v474
        %v737 = vunpack.c.h.b16 %v474
        %v738 = vunpack.c.l.b16 %v475
        %v739 = vunpack.c.h.b16 %v475
        %v740 = vunpack.c.l.b16 %v476
        %v741 = vunpack.c.h.b16 %v476
        %v742 = vunpack.c.l.b16 %v477
        %v743 = vunpack.c.h.b16 %v477
        %v744 = vunpack.c.l.b16 %v478
        %v745 = vunpack.c.l.b16 %v479
        %v746 = vunpack.c.h.b16 %v479
        %v747 = vunpack.c.l.b16 %v480
        %v748 = vunpack.c.h.b16 %v480
        %v749 = vunpack.c.l.b16 %v481
        %v750 = vunpack.c.h.b16 %v481
        %v751 = vunpack.c.l.b16 %v482
        %v752 = vunpack.c.h.b16 %v482
        %v753 = vunpack.c.l.b16 %v483
        %v754 = vunpack.c.h.b16 %v483
        %v755 = vunpack.c.l.b16 %v484
        %v756 = vunpack.c.h.b16 %v484
        %v757 = vunpack.c.l.b16 %v485
        %v758 = vunpack.c.l.b16 %v486
        %v759 = vunpack.c.h.b16 %v486
        %v760 = vunpack.c.l.b16 %v487
        %v761 = vunpack.c.h.b16 %v487
        %v762 = vunpack.c.l.b16 %v488
        %v763 = vunpack.c.h.b16 %v488
        %v764 = vunpack.c.l.b16 %v489
        %v765 = vunpack.c.h.b16 %v489
        %v766 = vunpack.c.l.b16 %v490
        %v767 = vunpack.c.h.b16 %v490
        %v768 = vunpack.c.l.b16 %v491
        %v769 = vunpack.c.h.b16 %v491
        %v770 = vunpack.c.l.b16 %v492
        %v771 = vunpack.c.l.b16 %v493
        %v772 = vunpack.c.h.b16 %v493
        %v773 = vunpack.c.l.b16 %v494
        %v774 = vunpack.c.h.b16 %v494
        %v775 = vunpack.c.l.b16 %v495
        %v776 = vunpack.c.h.b16 %v495
        %v777 = vunpack.c.l.b16 %v496
        %v778 = vunpack.c.h.b16 %v496
        %v779 = vunpack.c.l.b16 %v497
        %v780 = vunpack.c.h.b16 %v497
        %v781 = vunpack.c.l.b16 %v498
        %v782 = vunpack.c.h.b16 %v498
        %v783 = vunpack.c.l.b16 %v499
        %v784 = vunpack.c.l.b16 %v500
        %v785 = vunpack.c.h.b16 %v500
        %v786 = vunpack.c.l.b16 %v501
        %v787 = vunpack.c.h.b16 %v501
        %v788 = vunpack.c.l.b16 %v502
        %v789 = vunpack.c.h.b16 %v502
        %v790 = vunpack.c.l.b16 %v503
        %v791 = vunpack.c.h.b16 %v503
        %v792 = vunpack.c.l.b16 %v504
        %v793 = vunpack.c.h.b16 %v504
        %v794 = vunpack.c.l.b16 %v505
        %v795 = vunpack.c.h.b16 %v505
        %v796 = vunpack.c.l.b16 %v506
        %v797 = vunpack.c.l.b16 %v507
        %v798 = vunpack.c.h.b16 %v507
        %v799 = vunpack.c.l.b16 %v508
        %v800 = vunpack.c.h.b16 %v508
        %v801 = vunpack.c.l.b16 %v509
        %v802 = vunpack.c.h.b16 %v509
        %v803 = vunpack.c.l.b16 %v510
        %v804 = vunpack.c.h.b16 %v510
        %v805 = vunpack.c.l.b16 %v511
        %v806 = vunpack.c.h.b16 %v511
        %v807 = vunpack.c.l.b16 %v512
        %v808 = vunpack.c.h.b16 %v512
        %v809 = vunpack.c.l.b16 %v513
        %v810 = vunpack.c.l.b16 %v514
        %v811 = vunpack.c.h.b16 %v514
        %v812 = vunpack.c.l.b16 %v515
        %v813 = vunpack.c.h.b16 %v515
        %v814 = vunpack.c.l.b16 %v516
        %v815 = vunpack.c.h.b16 %v516
        %v816 = vunpack.c.l.b16 %v517
        %v817 = vunpack.c.h.b16 %v517
        %v818 = vunpack.c.l.b16 %v518
        %v819 = vunpack.c.h.b16 %v518
        %v820 = vunpack.c.l.b16 %v519
        %v821 = vunpack.c.h.b16 %v519
        %v822 = vunpack.c.l.b16 %v520
        %v823 = vunpack.c.l.b16 %v521
        %v824 = vunpack.c.h.b16 %v521
        %v825 = vunpack.c.l.b16 %v522
        %v826 = vunpack.c.h.b16 %v522
        %v827 = vunpack.c.l.b16 %v523
        %v828 = vunpack.c.h.b16 %v523
        %v829 = vunpack.c.l.b16 %v524
        %v830 = vunpack.c.h.b16 %v524
        %v831 = vunpack.c.l.b16 %v525
        %v832 = vunpack.c.h.b16 %v525
        %v833 = vunpack.c.l.b16 %v526
        %v834 = vunpack.c.h.b16 %v526
        %v835 = vunpack.c.l.b16 %v527
        %v836 = vunpack.c.l.b16 %v528
        %v837 = vunpack.c.h.b16 %v528
        %v838 = vunpack.c.l.b16 %v529
        %v839 = vunpack.c.h.b16 %v529
        %v840 = vunpack.c.l.b16 %v530
        %v841 = vunpack.c.h.b16 %v530
        %v842 = vunpack.c.l.b16 %v531
        %v843 = vunpack.c.h.b16 %v531
        %v844 = vunpack.c.l.b16 %v532
        %v845 = vunpack.c.h.b16 %v532
        %v846 = vunpack.c.l.b16 %v533
        %v847 = vunpack.c.h.b16 %v533
        %v848 = vunpack.c.l.b16 %v534
        %v849 = vunpack.c.l.b16 %v535
        %v850 = vunpack.c.h.b16 %v535
        %v851 = vunpack.c.l.b16 %v536
        %v852 = vunpack.c.h.b16 %v536
        %v853 = vunpack.c.l.b16 %v537
        %v854 = vunpack.c.h.b16 %v537
        %v855 = vunpack.c.l.b16 %v538
        %v856 = vunpack.c.h.b16 %v538
        %v857 = vunpack.c.l.b16 %v539
        %v858 = vunpack.c.h.b16 %v539
        %v859 = vunpack.c.l.b16 %v540
        %v860 = vunpack.c.h.b16 %v540
        %v861 = vunpack.c.l.b16 %v541
        %v862 = vpack.c.b16 %v667, %v654
        %v863 = vpack.c.b16 %v668, %v655
        %v864 = vpack.c.b16 %v669, %v656
        %v865 = vpack.c.b16 %v670, %v657
        %v866 = vpack.c.b16 %v671, %v658
        %v867 = vpack.c.b16 %v672, %v659
        %v868 = vpack.c.b16 %v673, %v660
        %v869 = vpack.c.b16 %v674, %v661
        %v870 = vpack.c.b16 %v675, %v662
        %v871 = vpack.c.b16 %v676, %v663
        %v872 = vpack.c.b16 %v677, %v664
        %v873 = vpack.c.b16 %v678, %v665
        %v874 = vpack.c.b16 %v679, %v666
        %v875 = vpack.c.b16 %v693, %v680
        %v876 = vpack.c.b16 %v694, %v681
        %v877 = vpack.c.b16 %v695, %v682
        %v878 = vpack.c.b16 %v696, %v683
        %v879 = vpack.c.b16 %v697, %v684
        %v880 = vpack.c.b16 %v698, %v685
        %v881 = vpack.c.b16 %v699, %v686
        %v882 = vpack.c.b16 %v700, %v687
        %v883 = vpack.c.b16 %v701, %v688
        %v884 = vpack.c.b16 %v702, %v689
        %v885 = vpack.c.b16 %v703, %v690
        %v886 = vpack.c.b16 %v704, %v691
        %v887 = vpack.c.b16 %v705, %v692
        %v888 = vpack.c.b16 %v719, %v706
        %v889 = vpack.c.b16 %v720, %v707
        %v890 = vpack.c.b16 %v721, %v708
        %v891 = vpack.c.b16 %v722, %v709
        %v892 = vpack.c.b16 %v723, %v710
        %v893 = vpack.c.b16 %v724, %v711
        %v894 = vpack.c.b16 %v725, %v712
        %v895 = vpack.c.b16 %v726, %v713
        %v896 = vpack.c.b16 %v727, %v714
        %v897 = vpack.c.b16 %v728, %v715
        %v898 = vpack.c.b16 %v729, %v716
        %v899 = vpack.c.b16 %v730, %v717
        %v900 = vpack.c.b16 %v731, %v718
        %v901 = vpack.c.b16 %v745, %v732
        %v902 = vpack.c.b16 %v746, %v733
        %v903 = vpack.c.b16 %v747, %v734
        %v904 = vpack.c.b16 %v748, %v735
        %v905 = vpack.c.b16 %v749, %v736
        %v906 = vpack.c.b16 %v750, %v737
        %v907 = vpack.c.b16 %v751, %v738
        %v908 = vpack.c.b16 %v752, %v739
        %v909 = vpack.c.b16 %v753, %v740
        %v910 = vpack.c.b16 %v754, %v741
        %v911 = vpack.c.b16 %v755, %v742
        %v912 = vpack.c.b16 %v756, %v743
        %v913 = vpack.c.b16 %v757, %v744
        %v914 = vpack.c.b16 %v771, %v758
        %v915 = vpack.c.b16 %v772, %v759
        %v916 = vpack.c.b16 %v773, %v760
        %v917 = vpack.c.b16 %v774, %v761
        %v918 = vpack.c.b16 %v775, %v762
        %v919 = vpack.c.b16 %v776, %v763
        %v920 = vpack.c.b16 %v777, %v764
        %v921 = vpack.c.b16 %v778, %v765
        %v922 = vpack.c.b16 %v779, %v766
        %v923 = vpack.c.b16 %v780, %v767
        %v924 = vpack.c.b16 %v781, %v768
        %v925 = vpack.c.b16 %v782, %v769
        %v926 = vpack.c.b16 %v783, %v770
        %v927 = vpack.c.b16 %v797, %v784
        %v928 = vpack.c.b16 %v798, %v785
        %v929 = vpack.c.b16 %v799, %v786
        %v930 = vpack.c.b16 %v800, %v787
        %v931 = vpack.c.b16 %v801, %v788
        %v932 = vpack.c.b16 %v802, %v789
        %v933 = vpack.c.b16 %v803, %v790
        %v934 = vpack.c.b16 %v804, %v791
        %v935 = vpack.c.b16 %v805, %v792
        %v936 = vpack.c.b16 %v806, %v793
        %v937 = vpack.c.b16 %v807, %v794
        %v938 = vpack.c.b16 %v808, %v795
        %v939 = vpack.c.b16 %v809, %v796
        %v940 = vpack.c.b16 %v823, %v810
        %v941 = vpack.c.b16 %v824, %v811
        %v942 = vpack.c.b16 %v825, %v812
        %v943 = vpack.c.b16 %v826, %v813
        %v944 = vpack.c.b16 %v827, %v814
        %v945 = vpack.c.b16 %v828, %v815
        %v946 = vpack.c.b16 %v829, %v816
        %v947 = vpack.c.b16 %v830, %v817
        %v948 = vpack.c.b16 %v831, %v818
        %v949 = vpack.c.b16 %v832, %v819
        %v950 = vpack.c.b16 %v833, %v820
        %v951 = vpack.c.b16 %v834, %v821
        %v952 = vpack.c.b16 %v835, %v822
        %v953 = vpack.c.b16 %v849, %v836
        %v954 = vpack.c.b16 %v850, %v837
        %v955 = vpack.c.b16 %v851, %v838
        %v956 = vpack.c.b16 %v852, %v839
        %v957 = vpack.c.b16 %v853, %v840
        %v958 = vpack.c.b16 %v854, %v841
        %v959 = vpack.c.b16 %v855, %v842
        %v960 = vpack.c.b16 %v856, %v843
        %v961 = vpack.c.b16 %v857, %v844
        %v962 = vpack.c.b16 %v858, %v845
        %v963 = vpack.c.b16 %v859, %v846
        %v964 = vpack.c.b16 %v860, %v847
        %v965 = vpack.c.b16 %v861, %v848
        %1070 = vmatprep.subr.bf16.mxu0 %v954
        %1071 = vmatpush1.bf16.msra.mxu0 %v953
        %1072 = vmatprep.subr.bf16.mxu0 %v941
        %1073 = vmatpush1.bf16.msra.mxu0 %v940
        %1074 = vmatprep.subr.bf16.mxu0 %v928
        %1075 = vmatpush1.bf16.msra.mxu0 %v927
        %1076 = vmatprep.subr.bf16.mxu0 %v915
        %1077 = vmatpush1.bf16.msra.mxu0 %v914
        %1078 = vmatprep.subr.bf16.mxu0 %v902
        %1079 = vmatpush1.bf16.msra.mxu0 %v901
        %1080 = vmatprep.subr.bf16.mxu0 %v889
        %1081 = vmatpush1.bf16.msra.mxu0 %v888
        %1082 = vmatprep.subr.bf16.mxu0 %v876
        %1083 = vmatpush1.bf16.msra.mxu0 %v875
        %1084 = vmatprep.subr.bf16.mxu0 %v863
        %1085 = vmatpush1.bf16.msra.mxu0 %v862
        %1086 = vmatprep.subr.bf16.mxu0 0
        %1087 = vmatpush2.bf16.msra.mxu0 0
        %1088 = vmatprep.subr.bf16.mxu0 0
        %1089 = vmatpush2.bf16.msra.mxu0 0
        %1090 = vmatprep.subr.bf16.mxu0 0
        %1091 = vmatpush2.bf16.msra.mxu0 0
        %1092 = vmatprep.subr.bf16.mxu0 0
        %1093 = vmatpush2.bf16.msra.mxu0 0
        %1094 = vmatprep.subr.bf16.mxu0 0
        %1095 = vmatpush2.bf16.msra.mxu0 0
        %1096 = vmatprep.subr.bf16.mxu0 0
        %1097 = vmatpush2.bf16.msra.mxu0 0
        %1098 = vmatprep.subr.bf16.mxu0 0
        %1099 = vmatpush2.bf16.msra.mxu0 0
        %1100 = vmatprep.subr.bf16.mxu0 0
        %1101 = vmatpush2.bf16.msra.mxu0 0
        %1102 = vmatprep.mubr.bf16.mxu0 0
        %1103 = vmatmul.mubr.bf16.gmra.mxu0 %v429
        %v1104 = vpop.f32.mrf.mxu0
        %v1105 = vadd.f32 0.0, %v1104
        %v1106 = vpop.f32.mrf.mxu0
        %v1107 = vadd.f32 0.0, %v1106
        %v1108 = vpop.f32.mrf.mxu0
        %v1109 = vpop.f32.mrf.mxu0
        %1110 = vdwg.mxu0
        %1111 = vmatprep.subr.bf16.mxu0 %v956
        %1112 = vmatpush1.bf16.msra.mxu0 %v955
        %1113 = vmatprep.subr.bf16.mxu0 %v943
        %1114 = vmatpush1.bf16.msra.mxu0 %v942
        %1115 = vmatprep.subr.bf16.mxu0 %v930
        %1116 = vmatpush1.bf16.msra.mxu0 %v929
        %1117 = vmatprep.subr.bf16.mxu0 %v917
        %1118 = vmatpush1.bf16.msra.mxu0 %v916
        %1119 = vmatprep.subr.bf16.mxu0 %v904
        %1120 = vmatpush1.bf16.msra.mxu0 %v903
        %1121 = vmatprep.subr.bf16.mxu0 %v891
        %1122 = vmatpush1.bf16.msra.mxu0 %v890
        %1123 = vmatprep.subr.bf16.mxu0 %v878
        %1124 = vmatpush1.bf16.msra.mxu0 %v877
        %1125 = vmatprep.subr.bf16.mxu0 %v865
        %1126 = vmatpush1.bf16.msra.mxu0 %v864
        %1127 = vmatprep.subr.bf16.mxu0 0
        %1128 = vmatpush2.bf16.msra.mxu0 0
        %1129 = vmatprep.subr.bf16.mxu0 0
        %1130 = vmatpush2.bf16.msra.mxu0 0
        %1131 = vmatprep.subr.bf16.mxu0 0
        %1132 = vmatpush2.bf16.msra.mxu0 0
        %1133 = vmatprep.subr.bf16.mxu0 0
        %1134 = vmatpush2.bf16.msra.mxu0 0
        %1135 = vmatprep.subr.bf16.mxu0 0
        %1136 = vmatpush2.bf16.msra.mxu0 0
        %1137 = vmatprep.subr.bf16.mxu0 0
        %1138 = vmatpush2.bf16.msra.mxu0 0
        %1139 = vmatprep.subr.bf16.mxu0 0
        %1140 = vmatpush2.bf16.msra.mxu0 0
        %1141 = vmatprep.subr.bf16.mxu0 0
        %1142 = vmatpush2.bf16.msra.mxu0 0
        %1143 = vmatprep.mubr.bf16.mxu0 0
        %1144 = vmatmul.mubr.bf16.gmra.mxu0 %v429
        %v1145 = vpop.f32.mrf.mxu0
        %v1146 = vadd.f32 0.0, %v1145
        %v1147 = vpop.f32.mrf.mxu0
        %v1148 = vadd.f32 0.0, %v1147
        %v1149 = vpop.f32.mrf.mxu0
        %v1150 = vpop.f32.mrf.mxu0
        %1151 = vdwg.mxu0
        %1152 = vmatprep.subr.bf16.mxu0 %v958
        %1153 = vmatpush1.bf16.msra.mxu0 %v957
        %1154 = vmatprep.subr.bf16.mxu0 %v945
        %1155 = vmatpush1.bf16.msra.mxu0 %v944
        %1156 = vmatprep.subr.bf16.mxu0 %v932
        %1157 = vmatpush1.bf16.msra.mxu0 %v931
        %1158 = vmatprep.subr.bf16.mxu0 %v919
        %1159 = vmatpush1.bf16.msra.mxu0 %v918
        %1160 = vmatprep.subr.bf16.mxu0 %v906
        %1161 = vmatpush1.bf16.msra.mxu0 %v905
        %1162 = vmatprep.subr.bf16.mxu0 %v893
        %1163 = vmatpush1.bf16.msra.mxu0 %v892
        %1164 = vmatprep.subr.bf16.mxu0 %v880
        %1165 = vmatpush1.bf16.msra.mxu0 %v879
        %1166 = vmatprep.subr.bf16.mxu0 %v867
        %1167 = vmatpush1.bf16.msra.mxu0 %v866
        %1168 = vmatprep.subr.bf16.mxu0 0
        %1169 = vmatpush2.bf16.msra.mxu0 0
        %1170 = vmatprep.subr.bf16.mxu0 0
        %1171 = vmatpush2.bf16.msra.mxu0 0
        %1172 = vmatprep.subr.bf16.mxu0 0
        %1173 = vmatpush2.bf16.msra.mxu0 0
        %1174 = vmatprep.subr.bf16.mxu0 0
        %1175 = vmatpush2.bf16.msra.mxu0 0
        %1176 = vmatprep.subr.bf16.mxu0 0
        %1177 = vmatpush2.bf16.msra.mxu0 0
        %1178 = vmatprep.subr.bf16.mxu0 0
        %1179 = vmatpush2.bf16.msra.mxu0 0
        %1180 = vmatprep.subr.bf16.mxu0 0
        %1181 = vmatpush2.bf16.msra.mxu0 0
        %1182 = vmatprep.subr.bf16.mxu0 0
        %1183 = vmatpush2.bf16.msra.mxu0 0
        %1184 = vmatprep.mubr.bf16.mxu0 0
        %1185 = vmatmul.mubr.bf16.gmra.mxu0 %v429
        %v1186 = vpop.f32.mrf.mxu0
        %v1187 = vadd.f32 0.0, %v1186
        %v1188 = vpop.f32.mrf.mxu0
        %v1189 = vadd.f32 0.0, %v1188
        %v1190 = vpop.f32.mrf.mxu0
        %v1191 = vpop.f32.mrf.mxu0
        %1192 = vdwg.mxu0
        %1193 = vmatprep.subr.bf16.mxu0 %v960
        %1194 = vmatpush1.bf16.msra.mxu0 %v959
        %1195 = vmatprep.subr.bf16.mxu0 %v947
        %1196 = vmatpush1.bf16.msra.mxu0 %v946
        %1197 = vmatprep.subr.bf16.mxu0 %v934
        %1198 = vmatpush1.bf16.msra.mxu0 %v933
        %1199 = vmatprep.subr.bf16.mxu0 %v921
        %1200 = vmatpush1.bf16.msra.mxu0 %v920
        %1201 = vmatprep.subr.bf16.mxu0 %v908
        %1202 = vmatpush1.bf16.msra.mxu0 %v907
        %1203 = vmatprep.subr.bf16.mxu0 %v895
        %1204 = vmatpush1.bf16.msra.mxu0 %v894
        %1205 = vmatprep.subr.bf16.mxu0 %v882
        %1206 = vmatpush1.bf16.msra.mxu0 %v881
        %1207 = vmatprep.subr.bf16.mxu0 %v869
        %1208 = vmatpush1.bf16.msra.mxu0 %v868
        %1209 = vmatprep.subr.bf16.mxu0 0
        %1210 = vmatpush2.bf16.msra.mxu0 0
        %1211 = vmatprep.subr.bf16.mxu0 0
        %1212 = vmatpush2.bf16.msra.mxu0 0
        %1213 = vmatprep.subr.bf16.mxu0 0
        %1214 = vmatpush2.bf16.msra.mxu0 0
        %1215 = vmatprep.subr.bf16.mxu0 0
        %1216 = vmatpush2.bf16.msra.mxu0 0
        %1217 = vmatprep.subr.bf16.mxu0 0
        %1218 = vmatpush2.bf16.msra.mxu0 0
        %1219 = vmatprep.subr.bf16.mxu0 0
        %1220 = vmatpush2.bf16.msra.mxu0 0
        %1221 = vmatprep.subr.bf16.mxu0 0
        %1222 = vmatpush2.bf16.msra.mxu0 0
        %1223 = vmatprep.subr.bf16.mxu0 0
        %1224 = vmatpush2.bf16.msra.mxu0 0
        %1225 = vmatprep.mubr.bf16.mxu0 0
        %1226 = vmatmul.mubr.bf16.gmra.mxu0 %v429
        %v1227 = vpop.f32.mrf.mxu0
        %v1228 = vadd.f32 0.0, %v1227
        %v1229 = vpop.f32.mrf.mxu0
        %v1230 = vadd.f32 0.0, %v1229
        %v1231 = vpop.f32.mrf.mxu0
        %v1232 = vpop.f32.mrf.mxu0
        %1233 = vdwg.mxu0
        %1234 = vmatprep.subr.bf16.mxu0 %v962
        %1235 = vmatpush1.bf16.msra.mxu0 %v961
        %1236 = vmatprep.subr.bf16.mxu0 %v949
        %1237 = vmatpush1.bf16.msra.mxu0 %v948
        %1238 = vmatprep.subr.bf16.mxu0 %v936
        %1239 = vmatpush1.bf16.msra.mxu0 %v935
        %1240 = vmatprep.subr.bf16.mxu0 %v923
        %1241 = vmatpush1.bf16.msra.mxu0 %v922
        %1242 = vmatprep.subr.bf16.mxu0 %v910
        %1243 = vmatpush1.bf16.msra.mxu0 %v909
        %1244 = vmatprep.subr.bf16.mxu0 %v897
        %1245 = vmatpush1.bf16.msra.mxu0 %v896
        %1246 = vmatprep.subr.bf16.mxu0 %v884
        %1247 = vmatpush1.bf16.msra.mxu0 %v883
        %1248 = vmatprep.subr.bf16.mxu0 %v871
        %1249 = vmatpush1.bf16.msra.mxu0 %v870
        %1250 = vmatprep.subr.bf16.mxu0 0
        %1251 = vmatpush2.bf16.msra.mxu0 0
        %1252 = vmatprep.subr.bf16.mxu0 0
        %1253 = vmatpush2.bf16.msra.mxu0 0
        %1254 = vmatprep.subr.bf16.mxu0 0
        %1255 = vmatpush2.bf16.msra.mxu0 0
        %1256 = vmatprep.subr.bf16.mxu0 0
        %1257 = vmatpush2.bf16.msra.mxu0 0
        %1258 = vmatprep.subr.bf16.mxu0 0
        %1259 = vmatpush2.bf16.msra.mxu0 0
        %1260 = vmatprep.subr.bf16.mxu0 0
        %1261 = vmatpush2.bf16.msra.mxu0 0
        %1262 = vmatprep.subr.bf16.mxu0 0
        %1263 = vmatpush2.bf16.msra.mxu0 0
        %1264 = vmatprep.subr.bf16.mxu0 0
        %1265 = vmatpush2.bf16.msra.mxu0 0
        %1266 = vmatprep.mubr.bf16.mxu0 0
        %1267 = vmatmul.mubr.bf16.gmra.mxu0 %v429
        %v1268 = vpop.f32.mrf.mxu0
        %v1269 = vadd.f32 0.0, %v1268
        %v1270 = vpop.f32.mrf.mxu0
        %v1271 = vadd.f32 0.0, %v1270
        %v1272 = vpop.f32.mrf.mxu0
        %v1273 = vpop.f32.mrf.mxu0
        %1274 = vdwg.mxu0
        %1275 = vmatprep.subr.bf16.mxu0 %v964
        %1276 = vmatpush1.bf16.msra.mxu0 %v963
        %1277 = vmatprep.subr.bf16.mxu0 %v951
        %1278 = vmatpush1.bf16.msra.mxu0 %v950
        %1279 = vmatprep.subr.bf16.mxu0 %v938
        %1280 = vmatpush1.bf16.msra.mxu0 %v937
        %1281 = vmatprep.subr.bf16.mxu0 %v925
        %1282 = vmatpush1.bf16.msra.mxu0 %v924
        %1283 = vmatprep.subr.bf16.mxu0 %v912
        %1284 = vmatpush1.bf16.msra.mxu0 %v911
        %1285 = vmatprep.subr.bf16.mxu0 %v899
        %1286 = vmatpush1.bf16.msra.mxu0 %v898
        %1287 = vmatprep.subr.bf16.mxu0 %v886
        %1288 = vmatpush1.bf16.msra.mxu0 %v885
        %1289 = vmatprep.subr.bf16.mxu0 %v873
        %1290 = vmatpush1.bf16.msra.mxu0 %v872
        %1291 = vmatprep.subr.bf16.mxu0 0
        %1292 = vmatpush2.bf16.msra.mxu0 0
        %1293 = vmatprep.subr.bf16.mxu0 0
        %1294 = vmatpush2.bf16.msra.mxu0 0
        %1295 = vmatprep.subr.bf16.mxu0 0
        %1296 = vmatpush2.bf16.msra.mxu0 0
        %1297 = vmatprep.subr.bf16.mxu0 0
        %1298 = vmatpush2.bf16.msra.mxu0 0
        %1299 = vmatprep.subr.bf16.mxu0 0
        %1300 = vmatpush2.bf16.msra.mxu0 0
        %1301 = vmatprep.subr.bf16.mxu0 0
        %1302 = vmatpush2.bf16.msra.mxu0 0
        %1303 = vmatprep.subr.bf16.mxu0 0
        %1304 = vmatpush2.bf16.msra.mxu0 0
        %1305 = vmatprep.subr.bf16.mxu0 0
        %1306 = vmatpush2.bf16.msra.mxu0 0
        %1307 = vmatprep.mubr.bf16.mxu0 0
        %1308 = vmatmul.mubr.bf16.gmra.mxu0 %v429
        %v1309 = vpop.f32.mrf.mxu0
        %v1310 = vadd.f32 0.0, %v1309
        %v1311 = vpop.f32.mrf.mxu0
        %v1312 = vadd.f32 0.0, %v1311
        %v1313 = vpop.f32.mrf.mxu0
        %v1314 = vpop.f32.mrf.mxu0
        %1315 = vdwg.mxu0
        %1316 = vmatprep.subr.bf16.mxu0 0
        %1317 = vmatpush1.bf16.msra.mxu0 %v965
        %1318 = vmatprep.subr.bf16.mxu0 0
        %1319 = vmatpush1.bf16.msra.mxu0 %v952
        %1320 = vmatprep.subr.bf16.mxu0 0
        %1321 = vmatpush1.bf16.msra.mxu0 %v939
        %1322 = vmatprep.subr.bf16.mxu0 0
        %1323 = vmatpush1.bf16.msra.mxu0 %v926
        %1324 = vmatprep.subr.bf16.mxu0 0
        %1325 = vmatpush1.bf16.msra.mxu0 %v913
        %1326 = vmatprep.subr.bf16.mxu0 0
        %1327 = vmatpush1.bf16.msra.mxu0 %v900
        %1328 = vmatprep.subr.bf16.mxu0 0
        %1329 = vmatpush1.bf16.msra.mxu0 %v887
        %1330 = vmatprep.subr.bf16.mxu0 0
        %1331 = vmatpush1.bf16.msra.mxu0 %v874
        %1332 = vmatprep.subr.bf16.mxu0 0
        %1333 = vmatpush2.bf16.msra.mxu0 0
        %1334 = vmatprep.subr.bf16.mxu0 0
        %1335 = vmatpush2.bf16.msra.mxu0 0
        %1336 = vmatprep.subr.bf16.mxu0 0
        %1337 = vmatpush2.bf16.msra.mxu0 0
        %1338 = vmatprep.subr.bf16.mxu0 0
        %1339 = vmatpush2.bf16.msra.mxu0 0
        %1340 = vmatprep.subr.bf16.mxu0 0
        %1341 = vmatpush2.bf16.msra.mxu0 0
        %1342 = vmatprep.subr.bf16.mxu0 0
        %1343 = vmatpush2.bf16.msra.mxu0 0
        %1344 = vmatprep.subr.bf16.mxu0 0
        %1345 = vmatpush2.bf16.msra.mxu0 0
        %1346 = vmatprep.subr.bf16.mxu0 0
        %1347 = vmatpush2.bf16.msra.mxu0 0
        %1348 = vmatprep.mubr.bf16.mxu0 0
        %1349 = vmatmul.mubr.bf16.gmra.mxu0 %v429
        %v1350 = vpop.f32.mrf.mxu0
        %v1351 = vadd.f32 0.0, %v1350
        %v1352 = vpop.f32.mrf.mxu0
        %v1353 = vpop.f32.mrf.mxu0
        %v1354 = vpop.f32.mrf.mxu0
        %1355 = vdwg.mxu0
        %v1369 = vcombine.low %v1105, %v1107
        %v1370 = vcombine.low %v1146, %v1148
        %v1371 = vcombine.low %v1187, %v1189
        %v1372 = vcombine.low %v1228, %v1230
        %v1374 = vunpack.c.l.s4 1966171168
        %v1375 = vunpack.c.0.s8 %v1374
        %v1376 = vlaneseq
        %v1377 = vshrl.u32 %v1376, 7
        %v1378 = vsub.s32 %v1375, %v1377
        %v1379 = vrot.slane %v1369, %v1378
        %v1381 = vunpack.c.l.s4 1966171168
        %v1382 = vunpack.c.0.s8 %v1381
        %v1383 = vlaneseq
        %v1384 = vshrl.u32 %v1383, 7
        %v1385 = vsub.s32 %v1382, %v1384
        %v1386 = vrot.slane %v1370, %v1385
        %v1388 = vunpack.c.l.s4 1966171168
        %v1389 = vunpack.c.0.s8 %v1388
        %v1390 = vlaneseq
        %v1391 = vshrl.u32 %v1390, 7
        %v1392 = vsub.s32 %v1389, %v1391
        %v1393 = vrot.slane %v1371, %v1392
        %v1395 = vunpack.c.l.s4 1966171168
        %v1396 = vunpack.c.0.s8 %v1395
        %v1397 = vlaneseq
        %v1398 = vshrl.u32 %v1397, 7
        %v1399 = vsub.s32 %v1396, %v1398
        %v1400 = vrot.slane %v1372, %v1399
        %v1401 = vcombine.low %v1379, %v1386
        %v1402 = vcombine.low %v1393, %v1400
        %v1404 = vunpack.c.l.s4 1966171168
        %v1405 = vunpack.c.0.s8 %v1404
        %v1406 = vlaneseq
        %v1407 = vshrl.u32 %v1406, 7
        %v1408 = vsub.s32 %v1405, %v1407
        %v1409 = vrot.slane %v1401, %v1408
        %v1411 = vunpack.c.l.s4 1966171168
        %v1412 = vunpack.c.0.s8 %v1411
        %v1413 = vlaneseq
        %v1414 = vshrl.u32 %v1413, 7
        %v1415 = vsub.s32 %v1412, %v1414
        %v1416 = vrot.slane %v1402, %v1415
        %v1417 = vcombine.low %v1409, %v1416
        %v1418 = vcombine.low %v1269, %v1271
        %v1419 = vcombine.low %v1310, %v1312
        %v1421 = vunpack.c.l.s4 1966171168
        %v1422 = vunpack.c.0.s8 %v1421
        %v1423 = vlaneseq
        %v1424 = vshrl.u32 %v1423, 7
        %v1425 = vsub.s32 %v1422, %v1424
        %v1426 = vrot.slane %v1418, %v1425
        %v1428 = vunpack.c.l.s4 1966171168
        %v1429 = vunpack.c.0.s8 %v1428
        %v1430 = vlaneseq
        %v1431 = vshrl.u32 %v1430, 7
        %v1432 = vsub.s32 %v1429, %v1431
        %v1433 = vrot.slane %v1419, %v1432
        %v1435 = vunpack.c.l.s4 1966171168
        %v1436 = vunpack.c.0.s8 %v1435
        %v1437 = vlaneseq
        %v1438 = vshrl.u32 %v1437, 7
        %v1439 = vsub.s32 %v1436, %v1438
        %v1440 = vrot.slane %v1351, %v1439
        %v1441 = vcombine.low %v1426, %v1433
        %v1443 = vunpack.c.l.s4 1966171168
        %v1444 = vunpack.c.0.s8 %v1443
        %v1445 = vlaneseq
        %v1446 = vshrl.u32 %v1445, 7
        %v1447 = vsub.s32 %v1444, %v1446
        %v1448 = vrot.slane %v1441, %v1447
        %v1450 = vunpack.c.l.s4 1966171168
        %v1451 = vunpack.c.0.s8 %v1450
        %v1452 = vlaneseq
        %v1453 = vshrl.u32 %v1452, 7
        %v1454 = vsub.s32 %v1451, %v1453
        %v1455 = vrot.slane %v1440, %v1454
        %v1456 = vcombine.low %v1448, %v1455
        %1459 = vst [vmem:[%s199] sm:$0xff] %v1417
        %v1460 = vlaneseq
        %vm1461 = vcmp.ge.s32.totalorder %v1460, 0
        %vm1462 = vcmp.lt.s32.totalorder %v1460, 640
        %vm1463 = vmand %vm1461, %vm1462
        %1464 = vst.msk [vmem:[%s199 + $0x8] sm:$0x1f] %vm1463, %v1456
      $region40: #{catrsdnet1_forward.2} parent=31 // pred_fallthru
        _
      %p1465 = scmp.lt.s32.totalorder %s18, 1
      %s1466 = scalar_select %p1465, %s18, 1
      %s1467 = smul.addr %s1466, 13
      %s1468 = scalar_lea.vmem %s3, %s1467
      // Predicated region
      $region41: #{catrsdnet1_forward.2} parent=31 // pred_check
        %p1469 = pneg %p114
      $region42: #{catrsdnet1_forward.2} parent=31 // pred_check_branch
        %1471 = sbr.rel (%p1469) target = $region44
      $region43: #{catrsdnet1_forward.2} parent=31 // pred_region
        _
      $region44: #{catrsdnet1_forward.2} parent=31 // pred_fallthru
        _
    $region32: #{catrsdnet1_forward.2} parent=5 // pred_fallthru
      _
    %p1472 = scmp.le.s32.totalorder 2, %s9
    // Predicated region
    $region45: #{catrsdnet1_forward.2} parent=5 // pred_check
      %p1473 = pneg %p1472
    $region46: #{catrsdnet1_forward.2} parent=5 // pred_check_branch
      %1475 = sbr.rel (%p1473) target = $region48
    $region47: #{catrsdnet1_forward.2} parent=5 // pred_region
      %s1476 = ssub.s32 %s9, 2
      // Predicated region
      $region49: #{catrsdnet1_forward.2} parent=47 // pred_check
        %p1477 = pneg %p120
      $region50: #{catrsdnet1_forward.2} parent=47 // pred_check_branch
        %1479 = sbr.rel (%p1477) target = $region52
      $region51: #{catrsdnet1_forward.2} parent=47 // pred_region
        %p1480 = scmp.lt.s32.totalorder %s20, 1
        %s1481 = scalar_select %p1480, %s20, 1
        %s1482 = smul.addr %s1481, 13
        %s1483 = scalar_lea.vmem %s3, %s1482
      $region52: #{catrsdnet1_forward.2} parent=47 // pred_fallthru
        _
    $region48: #{catrsdnet1_forward.2} parent=5 // pred_fallthru
      _
  $region6: #{catrsdnet1_forward.2} parent=0 // loop_footer
    %s13 = sadd.s32 1, %s9
  $region7: #{catrsdnet1_forward.2} parent=0 // loop_footer_branch
    %8 = sbr.rel target = $region3
  $region8: #{catrsdnet1_forward.2} parent=0 // loop_exit
    _

// kernel: catrsdnet1_forward.3
$region0: #{catrsdnet1_forward.3}
  #allocation0 [shape = 'u32[]', space=smem, size = 0x4, offset = 0x4, fixed_abs, tag = 'smem constant byte address 0x4 - core index']
  #allocation1 [shape = 'u32[144,128]{1,0:T(1,128)}', space=vmem, size = 0x12000, scoped, tag = 'internal scratch']
  %s0 = inlined_call_operand.vmem [shape: bf16[2,1664], index: 0, kind: input, shape index: {}]
  %s1 = inlined_call_operand.vmem [shape: bf16[1664,512], index: 1, kind: input, shape index: {}]
  %s2 = inlined_call_operand.vmem [shape: f32[1,512], index: 2, kind: input, shape index: {}]
  %s3 = inlined_call_operand.vmem [shape: bf16[128,512], index: 3, kind: input, shape index: {}]
  %s4 = inlined_call_operand.vmem [shape: f32[1,512], index: 4, kind: input, shape index: {}]
  %s5 = inlined_call_operand.vmem [shape: bf16[128,128], index: 5, kind: input, shape index: {}]
  %s6 = inlined_call_operand.vmem [shape: f32[1,128], index: 6, kind: input, shape index: {}]
  %s7 = inlined_call_operand.vmem [shape: f32[2,128], index: 7, kind: output, shape index: {}]
  %s8 = sld [smem:[#allocation0]]
  $region38: #{catrsdnet1_forward.3} parent=0
    _
  %s10 = ssub.s32 1, %s8
  %s11 = scalar_select 0, %s10, %s8
  // Predicated region
  $region2: #{catrsdnet1_forward.3} parent=0 // pred_check
    _
  $region3: #{catrsdnet1_forward.3} parent=0 // pred_check_branch
    %13 = sbr.rel (0) target = $region5
  $region4: #{catrsdnet1_forward.3} parent=0 // pred_region
    _
  $region5: #{catrsdnet1_forward.3} parent=0 // pred_fallthru
    _
  // Predicated region
  $region6: #{catrsdnet1_forward.3} parent=0 // pred_check
    _
  $region7: #{catrsdnet1_forward.3} parent=0 // pred_check_branch
    %15 = sbr.rel (0) target = $region9
  $region8: #{catrsdnet1_forward.3} parent=0 // pred_region
    _
  $region9: #{catrsdnet1_forward.3} parent=0 // pred_fallthru
    _
  // Predicated region
  $region10: #{catrsdnet1_forward.3} parent=0 // pred_check
    _
  $region11: #{catrsdnet1_forward.3} parent=0 // pred_check_branch
    %17 = sbr.rel (0) target = $region13
  $region12: #{catrsdnet1_forward.3} parent=0 // pred_region
    _
  $region13: #{catrsdnet1_forward.3} parent=0 // pred_fallthru
    _
  // Predicated region
  $region14: #{catrsdnet1_forward.3} parent=0 // pred_check
    _
  $region15: #{catrsdnet1_forward.3} parent=0 // pred_check_branch
    %19 = sbr.rel (0) target = $region17
  $region16: #{catrsdnet1_forward.3} parent=0 // pred_region
    _
  $region17: #{catrsdnet1_forward.3} parent=0 // pred_fallthru
    _
  // Predicated region
  $region18: #{catrsdnet1_forward.3} parent=0 // pred_check
    _
  $region19: #{catrsdnet1_forward.3} parent=0 // pred_check_branch
    %21 = sbr.rel (0) target = $region21
  $region20: #{catrsdnet1_forward.3} parent=0 // pred_region
    _
  $region21: #{catrsdnet1_forward.3} parent=0 // pred_fallthru
    _
  // Predicated region
  $region22: #{catrsdnet1_forward.3} parent=0 // pred_check
    _
  $region23: #{catrsdnet1_forward.3} parent=0 // pred_check_branch
    %23 = sbr.rel (0) target = $region25
  $region24: #{catrsdnet1_forward.3} parent=0 // pred_region
    _
  $region25: #{catrsdnet1_forward.3} parent=0 // pred_fallthru
    _
  // Predicated region
  $region26: #{catrsdnet1_forward.3} parent=0 // pred_check
    _
  $region27: #{catrsdnet1_forward.3} parent=0 // pred_check_branch
    %25 = sbr.rel (0) target = $region29
  $region28: #{catrsdnet1_forward.3} parent=0 // pred_region
    _
  $region29: #{catrsdnet1_forward.3} parent=0 // pred_fallthru
    _
  %v27 = vld [vmem:[%s0] sm:$0xff]
  %v28 = vld [vmem:[%s0 + $0x8] sm:$0x1f]
  %v29 = vld [vmem:[%s1] sm:$0xff]
  %v30 = vld [vmem:[%s1 + $0x8] sm:$0xff]
  %v31 = vld [vmem:[%s1 + $0x10] sm:$0xff]
  %v32 = vld [vmem:[%s1 + $0x18] sm:$0xff]
  %v33 = vld [vmem:[%s1 + $0x20] sm:$0xff]
  %v34 = vld [vmem:[%s1 + $0x28] sm:$0xff]
  %v35 = vld [vmem:[%s1 + $0x30] sm:$0xff]
  %v36 = vld [vmem:[%s1 + $0x38] sm:$0xff]
  %v37 = vld [vmem:[%s1 + $0x40] sm:$0xff]
  %v38 = vld [vmem:[%s1 + $0x48] sm:$0xff]
  %v39 = vld [vmem:[%s1 + $0x50] sm:$0xff]
  %v40 = vld [vmem:[%s1 + $0x58] sm:$0xff]
  %v41 = vld [vmem:[%s1 + $0x60] sm:$0xff]
  %v42 = vld [vmem:[%s1 + $0x68] sm:$0xff]
  %v43 = vld [vmem:[%s1 + $0x70] sm:$0xff]
  %v44 = vld [vmem:[%s1 + $0x78] sm:$0xff]
  %v45 = vld [vmem:[%s1 + $0x80] sm:$0xff]
  %v46 = vld [vmem:[%s1 + $0x88] sm:$0xff]
  %v47 = vld [vmem:[%s1 + $0x90] sm:$0xff]
  %v48 = vld [vmem:[%s1 + $0x98] sm:$0xff]
  %v49 = vld [vmem:[%s1 + $0xa0] sm:$0xff]
  %v50 = vld [vmem:[%s1 + $0xa8] sm:$0xff]
  %v51 = vld [vmem:[%s1 + $0xb0] sm:$0xff]
  %v52 = vld [vmem:[%s1 + $0xb8] sm:$0xff]
  %v53 = vld [vmem:[%s1 + $0xc0] sm:$0xff]
  %v54 = vld [vmem:[%s1 + $0xc8] sm:$0xff]
  %v55 = vld [vmem:[%s1 + $0xd0] sm:$0xff]
  %v56 = vld [vmem:[%s1 + $0xd8] sm:$0xff]
  %v57 = vld [vmem:[%s1 + $0xe0] sm:$0xff]
  %v58 = vld [vmem:[%s1 + $0xe8] sm:$0xff]
  %v59 = vld [vmem:[%s1 + $0xf0] sm:$0xff]
  %v60 = vld [vmem:[%s1 + $0xf8] sm:$0xff]
  %v61 = vld [vmem:[%s1 + $0x100] sm:$0xff]
  %v62 = vld [vmem:[%s1 + $0x108] sm:$0xff]
  %v63 = vld [vmem:[%s1 + $0x110] sm:$0xff]
  %v64 = vld [vmem:[%s1 + $0x118] sm:$0xff]
  %v65 = vld [vmem:[%s1 + $0x120] sm:$0xff]
  %v66 = vld [vmem:[%s1 + $0x128] sm:$0xff]
  %v67 = vld [vmem:[%s1 + $0x130] sm:$0xff]
  %v68 = vld [vmem:[%s1 + $0x138] sm:$0xff]
  %v69 = vld [vmem:[%s1 + $0x140] sm:$0xff]
  %v70 = vld [vmem:[%s1 + $0x148] sm:$0xff]
  %v71 = vld [vmem:[%s1 + $0x150] sm:$0xff]
  %v72 = vld [vmem:[%s1 + $0x158] sm:$0xff]
  %v73 = vld [vmem:[%s1 + $0x160] sm:$0xff]
  %v74 = vld [vmem:[%s1 + $0x168] sm:$0xff]
  %v75 = vld [vmem:[%s1 + $0x170] sm:$0xff]
  %v76 = vld [vmem:[%s1 + $0x178] sm:$0xff]
  %v77 = vld [vmem:[%s1 + $0x180] sm:$0xff]
  %v78 = vld [vmem:[%s1 + $0x188] sm:$0xff]
  %v79 = vld [vmem:[%s1 + $0x190] sm:$0xff]
  %v80 = vld [vmem:[%s1 + $0x198] sm:$0xff]
  %v81 = vld [vmem:[%s1 + $0x1a0] sm:$0xff]
  %v82 = vld [vmem:[%s1 + $0x1a8] sm:$0xff]
  %v83 = vld [vmem:[%s1 + $0x1b0] sm:$0xff]
  %v84 = vld [vmem:[%s1 + $0x1b8] sm:$0xff]
  %v85 = vld [vmem:[%s1 + $0x1c0] sm:$0xff]
  %v86 = vld [vmem:[%s1 + $0x1c8] sm:$0xff]
  %v87 = vld [vmem:[%s1 + $0x1d0] sm:$0xff]
  %v88 = vld [vmem:[%s1 + $0x1d8] sm:$0xff]
  %v89 = vld [vmem:[%s1 + $0x1e0] sm:$0xff]
  %v90 = vld [vmem:[%s1 + $0x1e8] sm:$0xff]
  %v91 = vld [vmem:[%s1 + $0x1f0] sm:$0xff]
  %v92 = vld [vmem:[%s1 + $0x1f8] sm:$0xff]
  %v93 = vld [vmem:[%s1 + $0x200] sm:$0xff]
  %v94 = vld [vmem:[%s1 + $0x208] sm:$0xff]
  %v95 = vld [vmem:[%s1 + $0x210] sm:$0xff]
  %v96 = vld [vmem:[%s1 + $0x218] sm:$0xff]
  %v97 = vld [vmem:[%s1 + $0x220] sm:$0xff]
  %v98 = vld [vmem:[%s1 + $0x228] sm:$0xff]
  %v99 = vld [vmem:[%s1 + $0x230] sm:$0xff]
  %v100 = vld [vmem:[%s1 + $0x238] sm:$0xff]
  %v101 = vld [vmem:[%s1 + $0x240] sm:$0xff]
  %v102 = vld [vmem:[%s1 + $0x248] sm:$0xff]
  %v103 = vld [vmem:[%s1 + $0x250] sm:$0xff]
  %v104 = vld [vmem:[%s1 + $0x258] sm:$0xff]
  %v105 = vld [vmem:[%s1 + $0x260] sm:$0xff]
  %v106 = vld [vmem:[%s1 + $0x268] sm:$0xff]
  %v107 = vld [vmem:[%s1 + $0x270] sm:$0xff]
  %v108 = vld [vmem:[%s1 + $0x278] sm:$0xff]
  %v109 = vld [vmem:[%s1 + $0x280] sm:$0xff]
  %v110 = vld [vmem:[%s1 + $0x288] sm:$0xff]
  %v111 = vld [vmem:[%s1 + $0x290] sm:$0xff]
  %v112 = vld [vmem:[%s1 + $0x298] sm:$0xff]
  %v113 = vld [vmem:[%s1 + $0x2a0] sm:$0xff]
  %v114 = vld [vmem:[%s1 + $0x2a8] sm:$0xff]
  %v115 = vld [vmem:[%s1 + $0x2b0] sm:$0xff]
  %v116 = vld [vmem:[%s1 + $0x2b8] sm:$0xff]
  %v117 = vld [vmem:[%s1 + $0x2c0] sm:$0xff]
  %v118 = vld [vmem:[%s1 + $0x2c8] sm:$0xff]
  %v119 = vld [vmem:[%s1 + $0x2d0] sm:$0xff]
  %v120 = vld [vmem:[%s1 + $0x2d8] sm:$0xff]
  %v121 = vld [vmem:[%s1 + $0x2e0] sm:$0xff]
  %v122 = vld [vmem:[%s1 + $0x2e8] sm:$0xff]
  %v123 = vld [vmem:[%s1 + $0x2f0] sm:$0xff]
  %v124 = vld [vmem:[%s1 + $0x2f8] sm:$0xff]
  %v125 = vld [vmem:[%s1 + $0x300] sm:$0xff]
  %v126 = vld [vmem:[%s1 + $0x308] sm:$0xff]
  %v127 = vld [vmem:[%s1 + $0x310] sm:$0xff]
  %v128 = vld [vmem:[%s1 + $0x318] sm:$0xff]
  %v129 = vld [vmem:[%s1 + $0x320] sm:$0xff]
  %v130 = vld [vmem:[%s1 + $0x328] sm:$0xff]
  %v131 = vld [vmem:[%s1 + $0x330] sm:$0xff]
  %v132 = vld [vmem:[%s1 + $0x338] sm:$0xff]
  %v133 = vld [vmem:[%s1 + $0x340] sm:$0xff]
  %v134 = vld [vmem:[%s1 + $0x348] sm:$0xff]
  %v135 = vld [vmem:[%s1 + $0x350] sm:$0xff]
  %v136 = vld [vmem:[%s1 + $0x358] sm:$0xff]
  %v137 = vld [vmem:[%s1 + $0x360] sm:$0xff]
  %v138 = vld [vmem:[%s1 + $0x368] sm:$0xff]
  %v139 = vld [vmem:[%s1 + $0x370] sm:$0xff]
  %v140 = vld [vmem:[%s1 + $0x378] sm:$0xff]
  %v141 = vld [vmem:[%s1 + $0x380] sm:$0xff]
  %v142 = vld [vmem:[%s1 + $0x388] sm:$0xff]
  %v143 = vld [vmem:[%s1 + $0x390] sm:$0xff]
  %v144 = vld [vmem:[%s1 + $0x398] sm:$0xff]
  %v145 = vld [vmem:[%s1 + $0x3a0] sm:$0xff]
  %v146 = vld [vmem:[%s1 + $0x3a8] sm:$0xff]
  %v147 = vld [vmem:[%s1 + $0x3b0] sm:$0xff]
  %v148 = vld [vmem:[%s1 + $0x3b8] sm:$0xff]
  %v149 = vld [vmem:[%s1 + $0x3c0] sm:$0xff]
  %v150 = vld [vmem:[%s1 + $0x3c8] sm:$0xff]
  %v151 = vld [vmem:[%s1 + $0x3d0] sm:$0xff]
  %v152 = vld [vmem:[%s1 + $0x3d8] sm:$0xff]
  %v153 = vld [vmem:[%s1 + $0x3e0] sm:$0xff]
  %v154 = vld [vmem:[%s1 + $0x3e8] sm:$0xff]
  %v155 = vld [vmem:[%s1 + $0x3f0] sm:$0xff]
  %v156 = vld [vmem:[%s1 + $0x3f8] sm:$0xff]
  %v157 = vld [vmem:[%s1 + $0x400] sm:$0xff]
  %v158 = vld [vmem:[%s1 + $0x408] sm:$0xff]
  %v159 = vld [vmem:[%s1 + $0x410] sm:$0xff]
  %v160 = vld [vmem:[%s1 + $0x418] sm:$0xff]
  %v161 = vld [vmem:[%s1 + $0x420] sm:$0xff]
  %v162 = vld [vmem:[%s1 + $0x428] sm:$0xff]
  %v163 = vld [vmem:[%s1 + $0x430] sm:$0xff]
  %v164 = vld [vmem:[%s1 + $0x438] sm:$0xff]
  %v165 = vld [vmem:[%s1 + $0x440] sm:$0xff]
  %v166 = vld [vmem:[%s1 + $0x448] sm:$0xff]
  %v167 = vld [vmem:[%s1 + $0x450] sm:$0xff]
  %v168 = vld [vmem:[%s1 + $0x458] sm:$0xff]
  %v169 = vld [vmem:[%s1 + $0x460] sm:$0xff]
  %v170 = vld [vmem:[%s1 + $0x468] sm:$0xff]
  %v171 = vld [vmem:[%s1 + $0x470] sm:$0xff]
  %v172 = vld [vmem:[%s1 + $0x478] sm:$0xff]
  %v173 = vld [vmem:[%s1 + $0x480] sm:$0xff]
  %v174 = vld [vmem:[%s1 + $0x488] sm:$0xff]
  %v175 = vld [vmem:[%s1 + $0x490] sm:$0xff]
  %v176 = vld [vmem:[%s1 + $0x498] sm:$0xff]
  %v177 = vld [vmem:[%s1 + $0x4a0] sm:$0xff]
  %v178 = vld [vmem:[%s1 + $0x4a8] sm:$0xff]
  %v179 = vld [vmem:[%s1 + $0x4b0] sm:$0xff]
  %v180 = vld [vmem:[%s1 + $0x4b8] sm:$0xff]
  %v181 = vld [vmem:[%s1 + $0x4c0] sm:$0xff]
  %v182 = vld [vmem:[%s1 + $0x4c8] sm:$0xff]
  %v183 = vld [vmem:[%s1 + $0x4d0] sm:$0xff]
  %v184 = vld [vmem:[%s1 + $0x4d8] sm:$0xff]
  %v185 = vld [vmem:[%s1 + $0x4e0] sm:$0xff]
  %v186 = vld [vmem:[%s1 + $0x4e8] sm:$0xff]
  %v187 = vld [vmem:[%s1 + $0x4f0] sm:$0xff]
  %v188 = vld [vmem:[%s1 + $0x4f8] sm:$0xff]
  %v189 = vld [vmem:[%s1 + $0x500] sm:$0xff]
  %v190 = vld [vmem:[%s1 + $0x508] sm:$0xff]
  %v191 = vld [vmem:[%s1 + $0x510] sm:$0xff]
  %v192 = vld [vmem:[%s1 + $0x518] sm:$0xff]
  %v193 = vld [vmem:[%s1 + $0x520] sm:$0xff]
  %v194 = vld [vmem:[%s1 + $0x528] sm:$0xff]
  %v195 = vld [vmem:[%s1 + $0x530] sm:$0xff]
  %v196 = vld [vmem:[%s1 + $0x538] sm:$0xff]
  %v197 = vld [vmem:[%s1 + $0x540] sm:$0xff]
  %v198 = vld [vmem:[%s1 + $0x548] sm:$0xff]
  %v199 = vld [vmem:[%s1 + $0x550] sm:$0xff]
  %v200 = vld [vmem:[%s1 + $0x558] sm:$0xff]
  %v201 = vld [vmem:[%s1 + $0x560] sm:$0xff]
  %v202 = vld [vmem:[%s1 + $0x568] sm:$0xff]
  %v203 = vld [vmem:[%s1 + $0x570] sm:$0xff]
  %v204 = vld [vmem:[%s1 + $0x578] sm:$0xff]
  %v205 = vld [vmem:[%s1 + $0x580] sm:$0xff]
  %v206 = vld [vmem:[%s1 + $0x588] sm:$0xff]
  %v207 = vld [vmem:[%s1 + $0x590] sm:$0xff]
  %v208 = vld [vmem:[%s1 + $0x598] sm:$0xff]
  %v209 = vld [vmem:[%s1 + $0x5a0] sm:$0xff]
  %v210 = vld [vmem:[%s1 + $0x5a8] sm:$0xff]
  %v211 = vld [vmem:[%s1 + $0x5b0] sm:$0xff]
  %v212 = vld [vmem:[%s1 + $0x5b8] sm:$0xff]
  %v213 = vld [vmem:[%s1 + $0x5c0] sm:$0xff]
  %v214 = vld [vmem:[%s1 + $0x5c8] sm:$0xff]
  %v215 = vld [vmem:[%s1 + $0x5d0] sm:$0xff]
  %v216 = vld [vmem:[%s1 + $0x5d8] sm:$0xff]
  %v217 = vld [vmem:[%s1 + $0x5e0] sm:$0xff]
  %v218 = vld [vmem:[%s1 + $0x5e8] sm:$0xff]
  %v219 = vld [vmem:[%s1 + $0x5f0] sm:$0xff]
  %v220 = vld [vmem:[%s1 + $0x5f8] sm:$0xff]
  %v221 = vld [vmem:[%s1 + $0x600] sm:$0xff]
  %v222 = vld [vmem:[%s1 + $0x608] sm:$0xff]
  %v223 = vld [vmem:[%s1 + $0x610] sm:$0xff]
  %v224 = vld [vmem:[%s1 + $0x618] sm:$0xff]
  %v225 = vld [vmem:[%s1 + $0x620] sm:$0xff]
  %v226 = vld [vmem:[%s1 + $0x628] sm:$0xff]
  %v227 = vld [vmem:[%s1 + $0x630] sm:$0xff]
  %v228 = vld [vmem:[%s1 + $0x638] sm:$0xff]
  %v229 = vld [vmem:[%s1 + $0x640] sm:$0xff]
  %v230 = vld [vmem:[%s1 + $0x648] sm:$0xff]
  %v231 = vld [vmem:[%s1 + $0x650] sm:$0xff]
  %v232 = vld [vmem:[%s1 + $0x658] sm:$0xff]
  %v233 = vld [vmem:[%s1 + $0x660] sm:$0xff]
  %v234 = vld [vmem:[%s1 + $0x668] sm:$0xff]
  %v235 = vld [vmem:[%s1 + $0x670] sm:$0xff]
  %v236 = vld [vmem:[%s1 + $0x678] sm:$0xff]
  %v237 = vld [vmem:[%s1 + $0x680] sm:$0xff]
  %v238 = vld [vmem:[%s1 + $0x688] sm:$0xff]
  %v239 = vld [vmem:[%s1 + $0x690] sm:$0xff]
  %v240 = vld [vmem:[%s1 + $0x698] sm:$0xff]
  %v241 = vld [vmem:[%s1 + $0x6a0] sm:$0xff]
  %v242 = vld [vmem:[%s1 + $0x6a8] sm:$0xff]
  %v243 = vld [vmem:[%s1 + $0x6b0] sm:$0xff]
  %v244 = vld [vmem:[%s1 + $0x6b8] sm:$0xff]
  %v245 = vld [vmem:[%s1 + $0x6c0] sm:$0xff]
  %v246 = vld [vmem:[%s1 + $0x6c8] sm:$0xff]
  %v247 = vld [vmem:[%s1 + $0x6d0] sm:$0xff]
  %v248 = vld [vmem:[%s1 + $0x6d8] sm:$0xff]
  %v249 = vld [vmem:[%s1 + $0x6e0] sm:$0xff]
  %v250 = vld [vmem:[%s1 + $0x6e8] sm:$0xff]
  %v251 = vld [vmem:[%s1 + $0x6f0] sm:$0xff]
  %v252 = vld [vmem:[%s1 + $0x6f8] sm:$0xff]
  %v253 = vld [vmem:[%s1 + $0x700] sm:$0xff]
  %v254 = vld [vmem:[%s1 + $0x708] sm:$0xff]
  %v255 = vld [vmem:[%s1 + $0x710] sm:$0xff]
  %v256 = vld [vmem:[%s1 + $0x718] sm:$0xff]
  %v257 = vld [vmem:[%s1 + $0x720] sm:$0xff]
  %v258 = vld [vmem:[%s1 + $0x728] sm:$0xff]
  %v259 = vld [vmem:[%s1 + $0x730] sm:$0xff]
  %v260 = vld [vmem:[%s1 + $0x738] sm:$0xff]
  %v261 = vld [vmem:[%s1 + $0x740] sm:$0xff]
  %v262 = vld [vmem:[%s1 + $0x748] sm:$0xff]
  %v263 = vld [vmem:[%s1 + $0x750] sm:$0xff]
  %v264 = vld [vmem:[%s1 + $0x758] sm:$0xff]
  %v265 = vld [vmem:[%s1 + $0x760] sm:$0xff]
  %v266 = vld [vmem:[%s1 + $0x768] sm:$0xff]
  %v267 = vld [vmem:[%s1 + $0x770] sm:$0xff]
  %v268 = vld [vmem:[%s1 + $0x778] sm:$0xff]
  %v269 = vld [vmem:[%s1 + $0x780] sm:$0xff]
  %v270 = vld [vmem:[%s1 + $0x788] sm:$0xff]
  %v271 = vld [vmem:[%s1 + $0x790] sm:$0xff]
  %v272 = vld [vmem:[%s1 + $0x798] sm:$0xff]
  %v273 = vld [vmem:[%s1 + $0x7a0] sm:$0xff]
  %v274 = vld [vmem:[%s1 + $0x7a8] sm:$0xff]
  %v275 = vld [vmem:[%s1 + $0x7b0] sm:$0xff]
  %v276 = vld [vmem:[%s1 + $0x7b8] sm:$0xff]
  %v277 = vld [vmem:[%s1 + $0x7c0] sm:$0xff]
  %v278 = vld [vmem:[%s1 + $0x7c8] sm:$0xff]
  %v279 = vld [vmem:[%s1 + $0x7d0] sm:$0xff]
  %v280 = vld [vmem:[%s1 + $0x7d8] sm:$0xff]
  %v281 = vld [vmem:[%s1 + $0x7e0] sm:$0xff]
  %v282 = vld [vmem:[%s1 + $0x7e8] sm:$0xff]
  %v283 = vld [vmem:[%s1 + $0x7f0] sm:$0xff]
  %v284 = vld [vmem:[%s1 + $0x7f8] sm:$0xff]
  %v285 = vld [vmem:[%s1 + $0x800] sm:$0xff]
  %v286 = vld [vmem:[%s1 + $0x808] sm:$0xff]
  %v287 = vld [vmem:[%s1 + $0x810] sm:$0xff]
  %v288 = vld [vmem:[%s1 + $0x818] sm:$0xff]
  %v289 = vld [vmem:[%s1 + $0x820] sm:$0xff]
  %v290 = vld [vmem:[%s1 + $0x828] sm:$0xff]
  %v291 = vld [vmem:[%s1 + $0x830] sm:$0xff]
  %v292 = vld [vmem:[%s1 + $0x838] sm:$0xff]
  %v293 = vld [vmem:[%s1 + $0x840] sm:$0xff]
  %v294 = vld [vmem:[%s1 + $0x848] sm:$0xff]
  %v295 = vld [vmem:[%s1 + $0x850] sm:$0xff]
  %v296 = vld [vmem:[%s1 + $0x858] sm:$0xff]
  %v297 = vld [vmem:[%s1 + $0x860] sm:$0xff]
  %v298 = vld [vmem:[%s1 + $0x868] sm:$0xff]
  %v299 = vld [vmem:[%s1 + $0x870] sm:$0xff]
  %v300 = vld [vmem:[%s1 + $0x878] sm:$0xff]
  %v301 = vld [vmem:[%s1 + $0x880] sm:$0xff]
  %v302 = vld [vmem:[%s1 + $0x888] sm:$0xff]
  %v303 = vld [vmem:[%s1 + $0x890] sm:$0xff]
  %v304 = vld [vmem:[%s1 + $0x898] sm:$0xff]
  %v305 = vld [vmem:[%s1 + $0x8a0] sm:$0xff]
  %v306 = vld [vmem:[%s1 + $0x8a8] sm:$0xff]
  %v307 = vld [vmem:[%s1 + $0x8b0] sm:$0xff]
  %v308 = vld [vmem:[%s1 + $0x8b8] sm:$0xff]
  %v309 = vld [vmem:[%s1 + $0x8c0] sm:$0xff]
  %v310 = vld [vmem:[%s1 + $0x8c8] sm:$0xff]
  %v311 = vld [vmem:[%s1 + $0x8d0] sm:$0xff]
  %v312 = vld [vmem:[%s1 + $0x8d8] sm:$0xff]
  %v313 = vld [vmem:[%s1 + $0x8e0] sm:$0xff]
  %v314 = vld [vmem:[%s1 + $0x8e8] sm:$0xff]
  %v315 = vld [vmem:[%s1 + $0x8f0] sm:$0xff]
  %v316 = vld [vmem:[%s1 + $0x8f8] sm:$0xff]
  %v317 = vld [vmem:[%s1 + $0x900] sm:$0xff]
  %v318 = vld [vmem:[%s1 + $0x908] sm:$0xff]
  %v319 = vld [vmem:[%s1 + $0x910] sm:$0xff]
  %v320 = vld [vmem:[%s1 + $0x918] sm:$0xff]
  %v321 = vld [vmem:[%s1 + $0x920] sm:$0xff]
  %v322 = vld [vmem:[%s1 + $0x928] sm:$0xff]
  %v323 = vld [vmem:[%s1 + $0x930] sm:$0xff]
  %v324 = vld [vmem:[%s1 + $0x938] sm:$0xff]
  %v325 = vld [vmem:[%s1 + $0x940] sm:$0xff]
  %v326 = vld [vmem:[%s1 + $0x948] sm:$0xff]
  %v327 = vld [vmem:[%s1 + $0x950] sm:$0xff]
  %v328 = vld [vmem:[%s1 + $0x958] sm:$0xff]
  %v329 = vld [vmem:[%s1 + $0x960] sm:$0xff]
  %v330 = vld [vmem:[%s1 + $0x968] sm:$0xff]
  %v331 = vld [vmem:[%s1 + $0x970] sm:$0xff]
  %v332 = vld [vmem:[%s1 + $0x978] sm:$0xff]
  %v333 = vld [vmem:[%s1 + $0x980] sm:$0xff]
  %v334 = vld [vmem:[%s1 + $0x988] sm:$0xff]
  %v335 = vld [vmem:[%s1 + $0x990] sm:$0xff]
  %v336 = vld [vmem:[%s1 + $0x998] sm:$0xff]
  %v337 = vld [vmem:[%s1 + $0x9a0] sm:$0xff]
  %v338 = vld [vmem:[%s1 + $0x9a8] sm:$0xff]
  %v339 = vld [vmem:[%s1 + $0x9b0] sm:$0xff]
  %v340 = vld [vmem:[%s1 + $0x9b8] sm:$0xff]
  %v341 = vld [vmem:[%s1 + $0x9c0] sm:$0xff]
  %v342 = vld [vmem:[%s1 + $0x9c8] sm:$0xff]
  %v343 = vld [vmem:[%s1 + $0x9d0] sm:$0xff]
  %v344 = vld [vmem:[%s1 + $0x9d8] sm:$0xff]
  %v345 = vld [vmem:[%s1 + $0x9e0] sm:$0xff]
  %v346 = vld [vmem:[%s1 + $0x9e8] sm:$0xff]
  %v347 = vld [vmem:[%s1 + $0x9f0] sm:$0xff]
  %v348 = vld [vmem:[%s1 + $0x9f8] sm:$0xff]
  %v349 = vld [vmem:[%s1 + $0xa00] sm:$0xff]
  %v350 = vld [vmem:[%s1 + $0xa08] sm:$0xff]
  %v351 = vld [vmem:[%s1 + $0xa10] sm:$0xff]
  %v352 = vld [vmem:[%s1 + $0xa18] sm:$0xff]
  %v353 = vld [vmem:[%s1 + $0xa20] sm:$0xff]
  %v354 = vld [vmem:[%s1 + $0xa28] sm:$0xff]
  %v355 = vld [vmem:[%s1 + $0xa30] sm:$0xff]
  %v356 = vld [vmem:[%s1 + $0xa38] sm:$0xff]
  %v357 = vld [vmem:[%s1 + $0xa40] sm:$0xff]
  %v358 = vld [vmem:[%s1 + $0xa48] sm:$0xff]
  %v359 = vld [vmem:[%s1 + $0xa50] sm:$0xff]
  %v360 = vld [vmem:[%s1 + $0xa58] sm:$0xff]
  %v361 = vld [vmem:[%s1 + $0xa60] sm:$0xff]
  %v362 = vld [vmem:[%s1 + $0xa68] sm:$0xff]
  %v363 = vld [vmem:[%s1 + $0xa70] sm:$0xff]
  %v364 = vld [vmem:[%s1 + $0xa78] sm:$0xff]
  %v365 = vld [vmem:[%s1 + $0xa80] sm:$0xff]
  %v366 = vld [vmem:[%s1 + $0xa88] sm:$0xff]
  %v367 = vld [vmem:[%s1 + $0xa90] sm:$0xff]
  %v368 = vld [vmem:[%s1 + $0xa98] sm:$0xff]
  %v369 = vld [vmem:[%s1 + $0xaa0] sm:$0xff]
  %v370 = vld [vmem:[%s1 + $0xaa8] sm:$0xff]
  %v371 = vld [vmem:[%s1 + $0xab0] sm:$0xff]
  %v372 = vld [vmem:[%s1 + $0xab8] sm:$0xff]
  %v373 = vld [vmem:[%s1 + $0xac0] sm:$0xff]
  %v374 = vld [vmem:[%s1 + $0xac8] sm:$0xff]
  %v375 = vld [vmem:[%s1 + $0xad0] sm:$0xff]
  %v376 = vld [vmem:[%s1 + $0xad8] sm:$0xff]
  %v377 = vld [vmem:[%s1 + $0xae0] sm:$0xff]
  %v378 = vld [vmem:[%s1 + $0xae8] sm:$0xff]
  %v379 = vld [vmem:[%s1 + $0xaf0] sm:$0xff]
  %v380 = vld [vmem:[%s1 + $0xaf8] sm:$0xff]
  %v381 = vld [vmem:[%s1 + $0xb00] sm:$0xff]
  %v382 = vld [vmem:[%s1 + $0xb08] sm:$0xff]
  %v383 = vld [vmem:[%s1 + $0xb10] sm:$0xff]
  %v384 = vld [vmem:[%s1 + $0xb18] sm:$0xff]
  %v385 = vld [vmem:[%s1 + $0xb20] sm:$0xff]
  %v386 = vld [vmem:[%s1 + $0xb28] sm:$0xff]
  %v387 = vld [vmem:[%s1 + $0xb30] sm:$0xff]
  %v388 = vld [vmem:[%s1 + $0xb38] sm:$0xff]
  %v389 = vld [vmem:[%s1 + $0xb40] sm:$0xff]
  %v390 = vld [vmem:[%s1 + $0xb48] sm:$0xff]
  %v391 = vld [vmem:[%s1 + $0xb50] sm:$0xff]
  %v392 = vld [vmem:[%s1 + $0xb58] sm:$0xff]
  %v393 = vld [vmem:[%s1 + $0xb60] sm:$0xff]
  %v394 = vld [vmem:[%s1 + $0xb68] sm:$0xff]
  %v395 = vld [vmem:[%s1 + $0xb70] sm:$0xff]
  %v396 = vld [vmem:[%s1 + $0xb78] sm:$0xff]
  %v397 = vld [vmem:[%s1 + $0xb80] sm:$0xff]
  %v398 = vld [vmem:[%s1 + $0xb88] sm:$0xff]
  %v399 = vld [vmem:[%s1 + $0xb90] sm:$0xff]
  %v400 = vld [vmem:[%s1 + $0xb98] sm:$0xff]
  %v401 = vld [vmem:[%s1 + $0xba0] sm:$0xff]
  %v402 = vld [vmem:[%s1 + $0xba8] sm:$0xff]
  %v403 = vld [vmem:[%s1 + $0xbb0] sm:$0xff]
  %v404 = vld [vmem:[%s1 + $0xbb8] sm:$0xff]
  %v405 = vld [vmem:[%s1 + $0xbc0] sm:$0xff]
  %v406 = vld [vmem:[%s1 + $0xbc8] sm:$0xff]
  %v407 = vld [vmem:[%s1 + $0xbd0] sm:$0xff]
  %v408 = vld [vmem:[%s1 + $0xbd8] sm:$0xff]
  %v409 = vld [vmem:[%s1 + $0xbe0] sm:$0xff]
  %v410 = vld [vmem:[%s1 + $0xbe8] sm:$0xff]
  %v411 = vld [vmem:[%s1 + $0xbf0] sm:$0xff]
  %v412 = vld [vmem:[%s1 + $0xbf8] sm:$0xff]
  %v413 = vld [vmem:[%s1 + $0xc00] sm:$0xff]
  %v414 = vld [vmem:[%s1 + $0xc08] sm:$0xff]
  %v415 = vld [vmem:[%s1 + $0xc10] sm:$0xff]
  %v416 = vld [vmem:[%s1 + $0xc18] sm:$0xff]
  %v417 = vld [vmem:[%s1 + $0xc20] sm:$0xff]
  %v418 = vld [vmem:[%s1 + $0xc28] sm:$0xff]
  %v419 = vld [vmem:[%s1 + $0xc30] sm:$0xff]
  %v420 = vld [vmem:[%s1 + $0xc38] sm:$0xff]
  %v421 = vld [vmem:[%s1 + $0xc40] sm:$0xff]
  %v422 = vld [vmem:[%s1 + $0xc48] sm:$0xff]
  %v423 = vld [vmem:[%s1 + $0xc50] sm:$0xff]
  %v424 = vld [vmem:[%s1 + $0xc58] sm:$0xff]
  %v425 = vld [vmem:[%s1 + $0xc60] sm:$0xff]
  %v426 = vld [vmem:[%s1 + $0xc68] sm:$0xff]
  %v427 = vld [vmem:[%s1 + $0xc70] sm:$0xff]
  %v428 = vld [vmem:[%s1 + $0xc78] sm:$0xff]
  %v429 = vld [vmem:[%s1 + $0xc80] sm:$0xff]
  %v430 = vld [vmem:[%s1 + $0xc88] sm:$0xff]
  %v431 = vld [vmem:[%s1 + $0xc90] sm:$0xff]
  %v432 = vld [vmem:[%s1 + $0xc98] sm:$0xff]
  %v433 = vld [vmem:[%s1 + $0xca0] sm:$0xff]
  %v434 = vld [vmem:[%s1 + $0xca8] sm:$0xff]
  %v435 = vld [vmem:[%s1 + $0xcb0] sm:$0xff]
  %v436 = vld [vmem:[%s1 + $0xcb8] sm:$0xff]
  %v437 = vld [vmem:[%s1 + $0xcc0] sm:$0xff]
  %v438 = vld [vmem:[%s1 + $0xcc8] sm:$0xff]
  %v439 = vld [vmem:[%s1 + $0xcd0] sm:$0xff]
  %v440 = vld [vmem:[%s1 + $0xcd8] sm:$0xff]
  %v441 = vld [vmem:[%s1 + $0xce0] sm:$0xff]
  %v442 = vld [vmem:[%s1 + $0xce8] sm:$0xff]
  %v443 = vld [vmem:[%s1 + $0xcf0] sm:$0xff]
  %v444 = vld [vmem:[%s1 + $0xcf8] sm:$0xff]
  %v445 = vld [vmem:[%s2] sm:$0xf]
  %v447 = vlaneseq
  %v448 = vshrl.u32 %v447, 7
  %v449 = vsub.s32 0, %v448
  %v450 = vrot.slane %v445, %v449
  %v451 = vlaneseq
  %v452 = vshrl.u32 %v451, 7
  %v453 = vsub.s32 1, %v452
  %v454 = vrot.slane %v445, %v453
  %v455 = vlaneseq
  %v456 = vshrl.u32 %v455, 7
  %v457 = vsub.s32 2, %v456
  %v458 = vrot.slane %v445, %v457
  %v459 = vlaneseq
  %v460 = vshrl.u32 %v459, 7
  %v461 = vsub.s32 3, %v460
  %v462 = vrot.slane %v445, %v461
  %v469 = vcombine.high %v27, %v27
  %v471 = vunpack.c.l.s4 1966171168
  %v472 = vunpack.c.0.s8 %v471
  %v473 = vlaneseq
  %v474 = vshrl.u32 %v473, 7
  %v475 = vsub.s32 %v472, %v474
  %v476 = vrot.slane %v27, %v475
  %v478 = vunpack.c.l.s4 1966171168
  %v479 = vunpack.c.0.s8 %v478
  %v480 = vlaneseq
  %v481 = vshrl.u32 %v480, 7
  %v482 = vsub.s32 %v479, %v481
  %v483 = vrot.slane %v469, %v482
  %v484 = vcombine.high %v476, %v476
  %v485 = vcombine.high %v483, %v483
  %v487 = vunpack.c.l.s4 1966171168
  %v488 = vunpack.c.0.s8 %v487
  %v489 = vlaneseq
  %v490 = vshrl.u32 %v489, 7
  %v491 = vsub.s32 %v488, %v490
  %v492 = vrot.slane %v476, %v491
  %v494 = vunpack.c.l.s4 1966171168
  %v495 = vunpack.c.0.s8 %v494
  %v496 = vlaneseq
  %v497 = vshrl.u32 %v496, 7
  %v498 = vsub.s32 %v495, %v497
  %v499 = vrot.slane %v483, %v498
  %v501 = vunpack.c.l.s4 1966171168
  %v502 = vunpack.c.0.s8 %v501
  %v503 = vlaneseq
  %v504 = vshrl.u32 %v503, 7
  %v505 = vsub.s32 %v502, %v504
  %v506 = vrot.slane %v484, %v505
  %v508 = vunpack.c.l.s4 1966171168
  %v509 = vunpack.c.0.s8 %v508
  %v510 = vlaneseq
  %v511 = vshrl.u32 %v510, 7
  %v512 = vsub.s32 %v509, %v511
  %v513 = vrot.slane %v485, %v512
  %v514 = vcombine.high %v492, %v492
  %v515 = vcombine.high %v499, %v499
  %v516 = vcombine.high %v506, %v506
  %v517 = vcombine.high %v513, %v513
  %v518 = vcombine.high %v28, %v28
  %v520 = vunpack.c.l.s4 1966171168
  %v521 = vunpack.c.0.s8 %v520
  %v522 = vlaneseq
  %v523 = vshrl.u32 %v522, 7
  %v524 = vsub.s32 %v521, %v523
  %v525 = vrot.slane %v28, %v524
  %v527 = vunpack.c.l.s4 1966171168
  %v528 = vunpack.c.0.s8 %v527
  %v529 = vlaneseq
  %v530 = vshrl.u32 %v529, 7
  %v531 = vsub.s32 %v528, %v530
  %v532 = vrot.slane %v518, %v531
  %v533 = vcombine.high %v525, %v525
  %v535 = vunpack.c.l.s4 1966171168
  %v536 = vunpack.c.0.s8 %v535
  %v537 = vlaneseq
  %v538 = vshrl.u32 %v537, 7
  %v539 = vsub.s32 %v536, %v538
  %v540 = vrot.slane %v525, %v539
  %v542 = vunpack.c.l.s4 1966171168
  %v543 = vunpack.c.0.s8 %v542
  %v544 = vlaneseq
  %v545 = vshrl.u32 %v544, 7
  %v546 = vsub.s32 %v543, %v545
  %v547 = vrot.slane %v532, %v546
  %v549 = vunpack.c.l.s4 1966171168
  %v550 = vunpack.c.0.s8 %v549
  %v551 = vlaneseq
  %v552 = vshrl.u32 %v551, 7
  %v553 = vsub.s32 %v550, %v552
  %v554 = vrot.slane %v533, %v553
  %v555 = vcombine.high %v540, %v540
  %v556 = vcombine.high %v554, %v554
  %v986 = vunpack.c.l.b16 %v29
  %v987 = vunpack.c.h.b16 %v29
  %v988 = vunpack.c.l.b16 %v30
  %v989 = vunpack.c.h.b16 %v30
  %v990 = vunpack.c.l.b16 %v31
  %v991 = vunpack.c.h.b16 %v31
  %v992 = vunpack.c.l.b16 %v32
  %v993 = vunpack.c.h.b16 %v32
  %v994 = vunpack.c.l.b16 %v33
  %v995 = vunpack.c.h.b16 %v33
  %v996 = vunpack.c.l.b16 %v34
  %v997 = vunpack.c.h.b16 %v34
  %v998 = vunpack.c.l.b16 %v35
  %v999 = vunpack.c.h.b16 %v35
  %v1000 = vunpack.c.l.b16 %v36
  %v1001 = vunpack.c.h.b16 %v36
  %v1002 = vunpack.c.l.b16 %v37
  %v1003 = vunpack.c.h.b16 %v37
  %v1004 = vunpack.c.l.b16 %v38
  %v1005 = vunpack.c.h.b16 %v38
  %v1006 = vunpack.c.l.b16 %v39
  %v1007 = vunpack.c.h.b16 %v39
  %v1008 = vunpack.c.l.b16 %v40
  %v1009 = vunpack.c.h.b16 %v40
  %v1010 = vunpack.c.l.b16 %v41
  %v1011 = vunpack.c.h.b16 %v41
  %v1012 = vunpack.c.l.b16 %v42
  %v1013 = vunpack.c.h.b16 %v42
  %v1014 = vunpack.c.l.b16 %v43
  %v1015 = vunpack.c.h.b16 %v43
  %v1016 = vunpack.c.l.b16 %v44
  %v1017 = vunpack.c.h.b16 %v44
  %v1018 = vunpack.c.l.b16 %v45
  %v1019 = vunpack.c.h.b16 %v45
  %v1020 = vunpack.c.l.b16 %v46
  %v1021 = vunpack.c.h.b16 %v46
  %v1022 = vunpack.c.l.b16 %v47
  %v1023 = vunpack.c.h.b16 %v47
  %v1024 = vunpack.c.l.b16 %v48
  %v1025 = vunpack.c.h.b16 %v48
  %v1026 = vunpack.c.l.b16 %v49
  %v1027 = vunpack.c.h.b16 %v49
  %v1028 = vunpack.c.l.b16 %v50
  %v1029 = vunpack.c.h.b16 %v50
  %v1030 = vunpack.c.l.b16 %v51
  %v1031 = vunpack.c.h.b16 %v51
  %v1032 = vunpack.c.l.b16 %v52
  %v1033 = vunpack.c.h.b16 %v52
  %v1034 = vunpack.c.l.b16 %v53
  %v1035 = vunpack.c.h.b16 %v53
  %v1036 = vunpack.c.l.b16 %v54
  %v1037 = vunpack.c.h.b16 %v54
  %v1038 = vunpack.c.l.b16 %v55
  %v1039 = vunpack.c.h.b16 %v55
  %v1040 = vunpack.c.l.b16 %v56
  %v1041 = vunpack.c.h.b16 %v56
  %v1042 = vunpack.c.l.b16 %v57
  %v1043 = vunpack.c.h.b16 %v57
  %v1044 = vunpack.c.l.b16 %v58
  %v1045 = vunpack.c.h.b16 %v58
  %v1046 = vunpack.c.l.b16 %v59
  %v1047 = vunpack.c.h.b16 %v59
  %v1048 = vunpack.c.l.b16 %v60
  %v1049 = vunpack.c.h.b16 %v60
  %v1050 = vunpack.c.l.b16 %v61
  %v1051 = vunpack.c.h.b16 %v61
  %v1052 = vunpack.c.l.b16 %v62
  %v1053 = vunpack.c.h.b16 %v62
  %v1054 = vunpack.c.l.b16 %v63
  %v1055 = vunpack.c.h.b16 %v63
  %v1056 = vunpack.c.l.b16 %v64
  %v1057 = vunpack.c.h.b16 %v64
  %v1058 = vunpack.c.l.b16 %v65
  %v1059 = vunpack.c.h.b16 %v65
  %v1060 = vunpack.c.l.b16 %v66
  %v1061 = vunpack.c.h.b16 %v66
  %v1062 = vunpack.c.l.b16 %v67
  %v1063 = vunpack.c.h.b16 %v67
  %v1064 = vunpack.c.l.b16 %v68
  %v1065 = vunpack.c.h.b16 %v68
  %v1066 = vunpack.c.l.b16 %v69
  %v1067 = vunpack.c.h.b16 %v69
  %v1068 = vunpack.c.l.b16 %v70
  %v1069 = vunpack.c.h.b16 %v70
  %v1070 = vunpack.c.l.b16 %v71
  %v1071 = vunpack.c.h.b16 %v71
  %v1072 = vunpack.c.l.b16 %v72
  %v1073 = vunpack.c.h.b16 %v72
  %v1074 = vunpack.c.l.b16 %v73
  %v1075 = vunpack.c.h.b16 %v73
  %v1076 = vunpack.c.l.b16 %v74
  %v1077 = vunpack.c.h.b16 %v74
  %v1078 = vunpack.c.l.b16 %v75
  %v1079 = vunpack.c.h.b16 %v75
  %v1080 = vunpack.c.l.b16 %v76
  %v1081 = vunpack.c.h.b16 %v76
  %v1082 = vunpack.c.l.b16 %v77
  %v1083 = vunpack.c.h.b16 %v77
  %v1084 = vunpack.c.l.b16 %v78
  %v1085 = vunpack.c.h.b16 %v78
  %v1086 = vunpack.c.l.b16 %v79
  %v1087 = vunpack.c.h.b16 %v79
  %v1088 = vunpack.c.l.b16 %v80
  %v1089 = vunpack.c.h.b16 %v80
  %v1090 = vunpack.c.l.b16 %v81
  %v1091 = vunpack.c.h.b16 %v81
  %v1092 = vunpack.c.l.b16 %v82
  %v1093 = vunpack.c.h.b16 %v82
  %v1094 = vunpack.c.l.b16 %v83
  %v1095 = vunpack.c.h.b16 %v83
  %v1096 = vunpack.c.l.b16 %v84
  %v1097 = vunpack.c.h.b16 %v84
  %v1098 = vunpack.c.l.b16 %v85
  %v1099 = vunpack.c.h.b16 %v85
  %v1100 = vunpack.c.l.b16 %v86
  %v1101 = vunpack.c.h.b16 %v86
  %v1102 = vunpack.c.l.b16 %v87
  %v1103 = vunpack.c.h.b16 %v87
  %v1104 = vunpack.c.l.b16 %v88
  %v1105 = vunpack.c.h.b16 %v88
  %v1106 = vunpack.c.l.b16 %v89
  %v1107 = vunpack.c.h.b16 %v89
  %v1108 = vunpack.c.l.b16 %v90
  %v1109 = vunpack.c.h.b16 %v90
  %v1110 = vunpack.c.l.b16 %v91
  %v1111 = vunpack.c.h.b16 %v91
  %v1112 = vunpack.c.l.b16 %v92
  %v1113 = vunpack.c.h.b16 %v92
  %v1114 = vunpack.c.l.b16 %v93
  %v1115 = vunpack.c.h.b16 %v93
  %v1116 = vunpack.c.l.b16 %v94
  %v1117 = vunpack.c.h.b16 %v94
  %v1118 = vunpack.c.l.b16 %v95
  %v1119 = vunpack.c.h.b16 %v95
  %v1120 = vunpack.c.l.b16 %v96
  %v1121 = vunpack.c.h.b16 %v96
  %v1122 = vunpack.c.l.b16 %v97
  %v1123 = vunpack.c.h.b16 %v97
  %v1124 = vunpack.c.l.b16 %v98
  %v1125 = vunpack.c.h.b16 %v98
  %v1126 = vunpack.c.l.b16 %v99
  %v1127 = vunpack.c.h.b16 %v99
  %v1128 = vunpack.c.l.b16 %v100
  %v1129 = vunpack.c.h.b16 %v100
  %v1130 = vunpack.c.l.b16 %v101
  %v1131 = vunpack.c.h.b16 %v101
  %v1132 = vunpack.c.l.b16 %v102
  %v1133 = vunpack.c.h.b16 %v102
  %v1134 = vunpack.c.l.b16 %v103
  %v1135 = vunpack.c.h.b16 %v103
  %v1136 = vunpack.c.l.b16 %v104
  %v1137 = vunpack.c.h.b16 %v104
  %v1138 = vunpack.c.l.b16 %v105
  %v1139 = vunpack.c.h.b16 %v105
  %v1140 = vunpack.c.l.b16 %v106
  %v1141 = vunpack.c.h.b16 %v106
  %v1142 = vunpack.c.l.b16 %v107
  %v1143 = vunpack.c.h.b16 %v107
  %v1144 = vunpack.c.l.b16 %v108
  %v1145 = vunpack.c.h.b16 %v108
  %v1146 = vunpack.c.l.b16 %v109
  %v1147 = vunpack.c.h.b16 %v109
  %v1148 = vunpack.c.l.b16 %v110
  %v1149 = vunpack.c.h.b16 %v110
  %v1150 = vunpack.c.l.b16 %v111
  %v1151 = vunpack.c.h.b16 %v111
  %v1152 = vunpack.c.l.b16 %v112
  %v1153 = vunpack.c.h.b16 %v112
  %v1154 = vunpack.c.l.b16 %v113
  %v1155 = vunpack.c.h.b16 %v113
  %v1156 = vunpack.c.l.b16 %v114
  %v1157 = vunpack.c.h.b16 %v114
  %v1158 = vunpack.c.l.b16 %v115
  %v1159 = vunpack.c.h.b16 %v115
  %v1160 = vunpack.c.l.b16 %v116
  %v1161 = vunpack.c.h.b16 %v116
  %v1162 = vunpack.c.l.b16 %v117
  %v1163 = vunpack.c.h.b16 %v117
  %v1164 = vunpack.c.l.b16 %v118
  %v1165 = vunpack.c.h.b16 %v118
  %v1166 = vunpack.c.l.b16 %v119
  %v1167 = vunpack.c.h.b16 %v119
  %v1168 = vunpack.c.l.b16 %v120
  %v1169 = vunpack.c.h.b16 %v120
  %v1170 = vunpack.c.l.b16 %v121
  %v1171 = vunpack.c.h.b16 %v121
  %v1172 = vunpack.c.l.b16 %v122
  %v1173 = vunpack.c.h.b16 %v122
  %v1174 = vunpack.c.l.b16 %v123
  %v1175 = vunpack.c.h.b16 %v123
  %v1176 = vunpack.c.l.b16 %v124
  %v1177 = vunpack.c.h.b16 %v124
  %v1178 = vunpack.c.l.b16 %v125
  %v1179 = vunpack.c.h.b16 %v125
  %v1180 = vunpack.c.l.b16 %v126
  %v1181 = vunpack.c.h.b16 %v126
  %v1182 = vunpack.c.l.b16 %v127
  %v1183 = vunpack.c.h.b16 %v127
  %v1184 = vunpack.c.l.b16 %v128
  %v1185 = vunpack.c.h.b16 %v128
  %v1186 = vunpack.c.l.b16 %v129
  %v1187 = vunpack.c.h.b16 %v129
  %v1188 = vunpack.c.l.b16 %v130
  %v1189 = vunpack.c.h.b16 %v130
  %v1190 = vunpack.c.l.b16 %v131
  %v1191 = vunpack.c.h.b16 %v131
  %v1192 = vunpack.c.l.b16 %v132
  %v1193 = vunpack.c.h.b16 %v132
  %v1194 = vunpack.c.l.b16 %v133
  %v1195 = vunpack.c.h.b16 %v133
  %v1196 = vunpack.c.l.b16 %v134
  %v1197 = vunpack.c.h.b16 %v134
  %v1198 = vunpack.c.l.b16 %v135
  %v1199 = vunpack.c.h.b16 %v135
  %v1200 = vunpack.c.l.b16 %v136
  %v1201 = vunpack.c.h.b16 %v136
  %v1202 = vunpack.c.l.b16 %v137
  %v1203 = vunpack.c.h.b16 %v137
  %v1204 = vunpack.c.l.b16 %v138
  %v1205 = vunpack.c.h.b16 %v138
  %v1206 = vunpack.c.l.b16 %v139
  %v1207 = vunpack.c.h.b16 %v139
  %v1208 = vunpack.c.l.b16 %v140
  %v1209 = vunpack.c.h.b16 %v140
  %v1210 = vunpack.c.l.b16 %v141
  %v1211 = vunpack.c.h.b16 %v141
  %v1212 = vunpack.c.l.b16 %v142
  %v1213 = vunpack.c.h.b16 %v142
  %v1214 = vunpack.c.l.b16 %v143
  %v1215 = vunpack.c.h.b16 %v143
  %v1216 = vunpack.c.l.b16 %v144
  %v1217 = vunpack.c.h.b16 %v144
  %v1218 = vunpack.c.l.b16 %v145
  %v1219 = vunpack.c.h.b16 %v145
  %v1220 = vunpack.c.l.b16 %v146
  %v1221 = vunpack.c.h.b16 %v146
  %v1222 = vunpack.c.l.b16 %v147
  %v1223 = vunpack.c.h.b16 %v147
  %v1224 = vunpack.c.l.b16 %v148
  %v1225 = vunpack.c.h.b16 %v148
  %v1226 = vunpack.c.l.b16 %v149
  %v1227 = vunpack.c.h.b16 %v149
  %v1228 = vunpack.c.l.b16 %v150
  %v1229 = vunpack.c.h.b16 %v150
  %v1230 = vunpack.c.l.b16 %v151
  %v1231 = vunpack.c.h.b16 %v151
  %v1232 = vunpack.c.l.b16 %v152
  %v1233 = vunpack.c.h.b16 %v152
  %v1234 = vunpack.c.l.b16 %v153
  %v1235 = vunpack.c.h.b16 %v153
  %v1236 = vunpack.c.l.b16 %v154
  %v1237 = vunpack.c.h.b16 %v154
  %v1238 = vunpack.c.l.b16 %v155
  %v1239 = vunpack.c.h.b16 %v155
  %v1240 = vunpack.c.l.b16 %v156
  %v1241 = vunpack.c.h.b16 %v156
  %v1242 = vunpack.c.l.b16 %v157
  %v1243 = vunpack.c.h.b16 %v157
  %v1244 = vunpack.c.l.b16 %v158
  %v1245 = vunpack.c.h.b16 %v158
  %v1246 = vunpack.c.l.b16 %v159
  %v1247 = vunpack.c.h.b16 %v159
  %v1248 = vunpack.c.l.b16 %v160
  %v1249 = vunpack.c.h.b16 %v160
  %v1250 = vunpack.c.l.b16 %v161
  %v1251 = vunpack.c.h.b16 %v161
  %v1252 = vunpack.c.l.b16 %v162
  %v1253 = vunpack.c.h.b16 %v162
  %v1254 = vunpack.c.l.b16 %v163
  %v1255 = vunpack.c.h.b16 %v163
  %v1256 = vunpack.c.l.b16 %v164
  %v1257 = vunpack.c.h.b16 %v164
  %v1258 = vunpack.c.l.b16 %v165
  %v1259 = vunpack.c.h.b16 %v165
  %v1260 = vunpack.c.l.b16 %v166
  %v1261 = vunpack.c.h.b16 %v166
  %v1262 = vunpack.c.l.b16 %v167
  %v1263 = vunpack.c.h.b16 %v167
  %v1264 = vunpack.c.l.b16 %v168
  %v1265 = vunpack.c.h.b16 %v168
  %v1266 = vunpack.c.l.b16 %v169
  %v1267 = vunpack.c.h.b16 %v169
  %v1268 = vunpack.c.l.b16 %v170
  %v1269 = vunpack.c.h.b16 %v170
  %v1270 = vunpack.c.l.b16 %v171
  %v1271 = vunpack.c.h.b16 %v171
  %v1272 = vunpack.c.l.b16 %v172
  %v1273 = vunpack.c.h.b16 %v172
  %v1274 = vunpack.c.l.b16 %v173
  %v1275 = vunpack.c.h.b16 %v173
  %v1276 = vunpack.c.l.b16 %v174
  %v1277 = vunpack.c.h.b16 %v174
  %v1278 = vunpack.c.l.b16 %v175
  %v1279 = vunpack.c.h.b16 %v175
  %v1280 = vunpack.c.l.b16 %v176
  %v1281 = vunpack.c.h.b16 %v176
  %v1282 = vunpack.c.l.b16 %v177
  %v1283 = vunpack.c.h.b16 %v177
  %v1284 = vunpack.c.l.b16 %v178
  %v1285 = vunpack.c.h.b16 %v178
  %v1286 = vunpack.c.l.b16 %v179
  %v1287 = vunpack.c.h.b16 %v179
  %v1288 = vunpack.c.l.b16 %v180
  %v1289 = vunpack.c.h.b16 %v180
  %v1290 = vunpack.c.l.b16 %v181
  %v1291 = vunpack.c.h.b16 %v181
  %v1292 = vunpack.c.l.b16 %v182
  %v1293 = vunpack.c.h.b16 %v182
  %v1294 = vunpack.c.l.b16 %v183
  %v1295 = vunpack.c.h.b16 %v183
  %v1296 = vunpack.c.l.b16 %v184
  %v1297 = vunpack.c.h.b16 %v184
  %v1298 = vunpack.c.l.b16 %v185
  %v1299 = vunpack.c.h.b16 %v185
  %v1300 = vunpack.c.l.b16 %v186
  %v1301 = vunpack.c.h.b16 %v186
  %v1302 = vunpack.c.l.b16 %v187
  %v1303 = vunpack.c.h.b16 %v187
  %v1304 = vunpack.c.l.b16 %v188
  %v1305 = vunpack.c.h.b16 %v188
  %v1306 = vunpack.c.l.b16 %v189
  %v1307 = vunpack.c.h.b16 %v189
  %v1308 = vunpack.c.l.b16 %v190
  %v1309 = vunpack.c.h.b16 %v190
  %v1310 = vunpack.c.l.b16 %v191
  %v1311 = vunpack.c.h.b16 %v191
  %v1312 = vunpack.c.l.b16 %v192
  %v1313 = vunpack.c.h.b16 %v192
  %v1314 = vunpack.c.l.b16 %v193
  %v1315 = vunpack.c.h.b16 %v193
  %v1316 = vunpack.c.l.b16 %v194
  %v1317 = vunpack.c.h.b16 %v194
  %v1318 = vunpack.c.l.b16 %v195
  %v1319 = vunpack.c.h.b16 %v195
  %v1320 = vunpack.c.l.b16 %v196
  %v1321 = vunpack.c.h.b16 %v196
  %v1322 = vunpack.c.l.b16 %v197
  %v1323 = vunpack.c.h.b16 %v197
  %v1324 = vunpack.c.l.b16 %v198
  %v1325 = vunpack.c.h.b16 %v198
  %v1326 = vunpack.c.l.b16 %v199
  %v1327 = vunpack.c.h.b16 %v199
  %v1328 = vunpack.c.l.b16 %v200
  %v1329 = vunpack.c.h.b16 %v200
  %v1330 = vunpack.c.l.b16 %v201
  %v1331 = vunpack.c.h.b16 %v201
  %v1332 = vunpack.c.l.b16 %v202
  %v1333 = vunpack.c.h.b16 %v202
  %v1334 = vunpack.c.l.b16 %v203
  %v1335 = vunpack.c.h.b16 %v203
  %v1336 = vunpack.c.l.b16 %v204
  %v1337 = vunpack.c.h.b16 %v204
  %v1338 = vunpack.c.l.b16 %v205
  %v1339 = vunpack.c.h.b16 %v205
  %v1340 = vunpack.c.l.b16 %v206
  %v1341 = vunpack.c.h.b16 %v206
  %v1342 = vunpack.c.l.b16 %v207
  %v1343 = vunpack.c.h.b16 %v207
  %v1344 = vunpack.c.l.b16 %v208
  %v1345 = vunpack.c.h.b16 %v208
  %v1346 = vunpack.c.l.b16 %v209
  %v1347 = vunpack.c.h.b16 %v209
  %v1348 = vunpack.c.l.b16 %v210
  %v1349 = vunpack.c.h.b16 %v210
  %v1350 = vunpack.c.l.b16 %v211
  %v1351 = vunpack.c.h.b16 %v211
  %v1352 = vunpack.c.l.b16 %v212
  %v1353 = vunpack.c.h.b16 %v212
  %v1354 = vunpack.c.l.b16 %v213
  %v1355 = vunpack.c.h.b16 %v213
  %v1356 = vunpack.c.l.b16 %v214
  %v1357 = vunpack.c.h.b16 %v214
  %v1358 = vunpack.c.l.b16 %v215
  %v1359 = vunpack.c.h.b16 %v215
  %v1360 = vunpack.c.l.b16 %v216
  %v1361 = vunpack.c.h.b16 %v216
  %v1362 = vunpack.c.l.b16 %v217
  %v1363 = vunpack.c.h.b16 %v217
  %v1364 = vunpack.c.l.b16 %v218
  %v1365 = vunpack.c.h.b16 %v218
  %v1366 = vunpack.c.l.b16 %v219
  %v1367 = vunpack.c.h.b16 %v219
  %v1368 = vunpack.c.l.b16 %v220
  %v1369 = vunpack.c.h.b16 %v220
  %v1370 = vunpack.c.l.b16 %v221
  %v1371 = vunpack.c.h.b16 %v221
  %v1372 = vunpack.c.l.b16 %v222
  %v1373 = vunpack.c.h.b16 %v222
  %v1374 = vunpack.c.l.b16 %v223
  %v1375 = vunpack.c.h.b16 %v223
  %v1376 = vunpack.c.l.b16 %v224
  %v1377 = vunpack.c.h.b16 %v224
  %v1378 = vunpack.c.l.b16 %v225
  %v1379 = vunpack.c.h.b16 %v225
  %v1380 = vunpack.c.l.b16 %v226
  %v1381 = vunpack.c.h.b16 %v226
  %v1382 = vunpack.c.l.b16 %v227
  %v1383 = vunpack.c.h.b16 %v227
  %v1384 = vunpack.c.l.b16 %v228
  %v1385 = vunpack.c.h.b16 %v228
  %v1386 = vunpack.c.l.b16 %v229
  %v1387 = vunpack.c.h.b16 %v229
  %v1388 = vunpack.c.l.b16 %v230
  %v1389 = vunpack.c.h.b16 %v230
  %v1390 = vunpack.c.l.b16 %v231
  %v1391 = vunpack.c.h.b16 %v231
  %v1392 = vunpack.c.l.b16 %v232
  %v1393 = vunpack.c.h.b16 %v232
  %v1394 = vunpack.c.l.b16 %v233
  %v1395 = vunpack.c.h.b16 %v233
  %v1396 = vunpack.c.l.b16 %v234
  %v1397 = vunpack.c.h.b16 %v234
  %v1398 = vunpack.c.l.b16 %v235
  %v1399 = vunpack.c.h.b16 %v235
  %v1400 = vunpack.c.l.b16 %v236
  %v1401 = vunpack.c.h.b16 %v236
  %v1402 = vunpack.c.l.b16 %v237
  %v1403 = vunpack.c.h.b16 %v237
  %v1404 = vunpack.c.l.b16 %v238
  %v1405 = vunpack.c.h.b16 %v238
  %v1406 = vunpack.c.l.b16 %v239
  %v1407 = vunpack.c.h.b16 %v239
  %v1408 = vunpack.c.l.b16 %v240
  %v1409 = vunpack.c.h.b16 %v240
  %v1410 = vunpack.c.l.b16 %v241
  %v1411 = vunpack.c.h.b16 %v241
  %v1412 = vunpack.c.l.b16 %v242
  %v1413 = vunpack.c.h.b16 %v242
  %v1414 = vunpack.c.l.b16 %v243
  %v1415 = vunpack.c.h.b16 %v243
  %v1416 = vunpack.c.l.b16 %v244
  %v1417 = vunpack.c.h.b16 %v244
  %v1418 = vunpack.c.l.b16 %v245
  %v1419 = vunpack.c.h.b16 %v245
  %v1420 = vunpack.c.l.b16 %v246
  %v1421 = vunpack.c.h.b16 %v246
  %v1422 = vunpack.c.l.b16 %v247
  %v1423 = vunpack.c.h.b16 %v247
  %v1424 = vunpack.c.l.b16 %v248
  %v1425 = vunpack.c.h.b16 %v248
  %v1426 = vunpack.c.l.b16 %v249
  %v1427 = vunpack.c.h.b16 %v249
  %v1428 = vunpack.c.l.b16 %v250
  %v1429 = vunpack.c.h.b16 %v250
  %v1430 = vunpack.c.l.b16 %v251
  %v1431 = vunpack.c.h.b16 %v251
  %v1432 = vunpack.c.l.b16 %v252
  %v1433 = vunpack.c.h.b16 %v252
  %v1434 = vunpack.c.l.b16 %v253
  %v1435 = vunpack.c.h.b16 %v253
  %v1436 = vunpack.c.l.b16 %v254
  %v1437 = vunpack.c.h.b16 %v254
  %v1438 = vunpack.c.l.b16 %v255
  %v1439 = vunpack.c.h.b16 %v255
  %v1440 = vunpack.c.l.b16 %v256
  %v1441 = vunpack.c.h.b16 %v256
  %v1442 = vunpack.c.l.b16 %v257
  %v1443 = vunpack.c.h.b16 %v257
  %v1444 = vunpack.c.l.b16 %v258
  %v1445 = vunpack.c.h.b16 %v258
  %v1446 = vunpack.c.l.b16 %v259
  %v1447 = vunpack.c.h.b16 %v259
  %v1448 = vunpack.c.l.b16 %v260
  %v1449 = vunpack.c.h.b16 %v260
  %v1450 = vunpack.c.l.b16 %v261
  %v1451 = vunpack.c.h.b16 %v261
  %v1452 = vunpack.c.l.b16 %v262
  %v1453 = vunpack.c.h.b16 %v262
  %v1454 = vunpack.c.l.b16 %v263
  %v1455 = vunpack.c.h.b16 %v263
  %v1456 = vunpack.c.l.b16 %v264
  %v1457 = vunpack.c.h.b16 %v264
  %v1458 = vunpack.c.l.b16 %v265
  %v1459 = vunpack.c.h.b16 %v265
  %v1460 = vunpack.c.l.b16 %v266
  %v1461 = vunpack.c.h.b16 %v266
  %v1462 = vunpack.c.l.b16 %v267
  %v1463 = vunpack.c.h.b16 %v267
  %v1464 = vunpack.c.l.b16 %v268
  %v1465 = vunpack.c.h.b16 %v268
  %v1466 = vunpack.c.l.b16 %v269
  %v1467 = vunpack.c.h.b16 %v269
  %v1468 = vunpack.c.l.b16 %v270
  %v1469 = vunpack.c.h.b16 %v270
  %v1470 = vunpack.c.l.b16 %v271
  %v1471 = vunpack.c.h.b16 %v271
  %v1472 = vunpack.c.l.b16 %v272
  %v1473 = vunpack.c.h.b16 %v272
  %v1474 = vunpack.c.l.b16 %v273
  %v1475 = vunpack.c.h.b16 %v273
  %v1476 = vunpack.c.l.b16 %v274
  %v1477 = vunpack.c.h.b16 %v274
  %v1478 = vunpack.c.l.b16 %v275
  %v1479 = vunpack.c.h.b16 %v275
  %v1480 = vunpack.c.l.b16 %v276
  %v1481 = vunpack.c.h.b16 %v276
  %v1482 = vunpack.c.l.b16 %v277
  %v1483 = vunpack.c.h.b16 %v277
  %v1484 = vunpack.c.l.b16 %v278
  %v1485 = vunpack.c.h.b16 %v278
  %v1486 = vunpack.c.l.b16 %v279
  %v1487 = vunpack.c.h.b16 %v279
  %v1488 = vunpack.c.l.b16 %v280
  %v1489 = vunpack.c.h.b16 %v280
  %v1490 = vunpack.c.l.b16 %v281
  %v1491 = vunpack.c.h.b16 %v281
  %v1492 = vunpack.c.l.b16 %v282
  %v1493 = vunpack.c.h.b16 %v282
  %v1494 = vunpack.c.l.b16 %v283
  %v1495 = vunpack.c.h.b16 %v283
  %v1496 = vunpack.c.l.b16 %v284
  %v1497 = vunpack.c.h.b16 %v284
  %v1498 = vunpack.c.l.b16 %v285
  %v1499 = vunpack.c.h.b16 %v285
  %v1500 = vunpack.c.l.b16 %v286
  %v1501 = vunpack.c.h.b16 %v286
  %v1502 = vunpack.c.l.b16 %v287
  %v1503 = vunpack.c.h.b16 %v287
  %v1504 = vunpack.c.l.b16 %v288
  %v1505 = vunpack.c.h.b16 %v288
  %v1506 = vunpack.c.l.b16 %v289
  %v1507 = vunpack.c.h.b16 %v289
  %v1508 = vunpack.c.l.b16 %v290
  %v1509 = vunpack.c.h.b16 %v290
  %v1510 = vunpack.c.l.b16 %v291
  %v1511 = vunpack.c.h.b16 %v291
  %v1512 = vunpack.c.l.b16 %v292
  %v1513 = vunpack.c.h.b16 %v292
  %v1514 = vunpack.c.l.b16 %v293
  %v1515 = vunpack.c.h.b16 %v293
  %v1516 = vunpack.c.l.b16 %v294
  %v1517 = vunpack.c.h.b16 %v294
  %v1518 = vunpack.c.l.b16 %v295
  %v1519 = vunpack.c.h.b16 %v295
  %v1520 = vunpack.c.l.b16 %v296
  %v1521 = vunpack.c.h.b16 %v296
  %v1522 = vunpack.c.l.b16 %v297
  %v1523 = vunpack.c.h.b16 %v297
  %v1524 = vunpack.c.l.b16 %v298
  %v1525 = vunpack.c.h.b16 %v298
  %v1526 = vunpack.c.l.b16 %v299
  %v1527 = vunpack.c.h.b16 %v299
  %v1528 = vunpack.c.l.b16 %v300
  %v1529 = vunpack.c.h.b16 %v300
  %v1530 = vunpack.c.l.b16 %v301
  %v1531 = vunpack.c.h.b16 %v301
  %v1532 = vunpack.c.l.b16 %v302
  %v1533 = vunpack.c.h.b16 %v302
  %v1534 = vunpack.c.l.b16 %v303
  %v1535 = vunpack.c.h.b16 %v303
  %v1536 = vunpack.c.l.b16 %v304
  %v1537 = vunpack.c.h.b16 %v304
  %v1538 = vunpack.c.l.b16 %v305
  %v1539 = vunpack.c.h.b16 %v305
  %v1540 = vunpack.c.l.b16 %v306
  %v1541 = vunpack.c.h.b16 %v306
  %v1542 = vunpack.c.l.b16 %v307
  %v1543 = vunpack.c.h.b16 %v307
  %v1544 = vunpack.c.l.b16 %v308
  %v1545 = vunpack.c.h.b16 %v308
  %v1546 = vunpack.c.l.b16 %v309
  %v1547 = vunpack.c.h.b16 %v309
  %v1548 = vunpack.c.l.b16 %v310
  %v1549 = vunpack.c.h.b16 %v310
  %v1550 = vunpack.c.l.b16 %v311
  %v1551 = vunpack.c.h.b16 %v311
  %v1552 = vunpack.c.l.b16 %v312
  %v1553 = vunpack.c.h.b16 %v312
  %v1554 = vunpack.c.l.b16 %v313
  %v1555 = vunpack.c.h.b16 %v313
  %v1556 = vunpack.c.l.b16 %v314
  %v1557 = vunpack.c.h.b16 %v314
  %v1558 = vunpack.c.l.b16 %v315
  %v1559 = vunpack.c.h.b16 %v315
  %v1560 = vunpack.c.l.b16 %v316
  %v1561 = vunpack.c.h.b16 %v316
  %v1562 = vunpack.c.l.b16 %v317
  %v1563 = vunpack.c.h.b16 %v317
  %v1564 = vunpack.c.l.b16 %v318
  %v1565 = vunpack.c.h.b16 %v318
  %v1566 = vunpack.c.l.b16 %v319
  %v1567 = vunpack.c.h.b16 %v319
  %v1568 = vunpack.c.l.b16 %v320
  %v1569 = vunpack.c.h.b16 %v320
  %v1570 = vunpack.c.l.b16 %v321
  %v1571 = vunpack.c.h.b16 %v321
  %v1572 = vunpack.c.l.b16 %v322
  %v1573 = vunpack.c.h.b16 %v322
  %v1574 = vunpack.c.l.b16 %v323
  %v1575 = vunpack.c.h.b16 %v323
  %v1576 = vunpack.c.l.b16 %v324
  %v1577 = vunpack.c.h.b16 %v324
  %v1578 = vunpack.c.l.b16 %v325
  %v1579 = vunpack.c.h.b16 %v325
  %v1580 = vunpack.c.l.b16 %v326
  %v1581 = vunpack.c.h.b16 %v326
  %v1582 = vunpack.c.l.b16 %v327
  %v1583 = vunpack.c.h.b16 %v327
  %v1584 = vunpack.c.l.b16 %v328
  %v1585 = vunpack.c.h.b16 %v328
  %v1586 = vunpack.c.l.b16 %v329
  %v1587 = vunpack.c.h.b16 %v329
  %v1588 = vunpack.c.l.b16 %v330
  %v1589 = vunpack.c.h.b16 %v330
  %v1590 = vunpack.c.l.b16 %v331
  %v1591 = vunpack.c.h.b16 %v331
  %v1592 = vunpack.c.l.b16 %v332
  %v1593 = vunpack.c.h.b16 %v332
  %v1594 = vunpack.c.l.b16 %v333
  %v1595 = vunpack.c.h.b16 %v333
  %v1596 = vunpack.c.l.b16 %v334
  %v1597 = vunpack.c.h.b16 %v334
  %v1598 = vunpack.c.l.b16 %v335
  %v1599 = vunpack.c.h.b16 %v335
  %v1600 = vunpack.c.l.b16 %v336
  %v1601 = vunpack.c.h.b16 %v336
  %v1602 = vunpack.c.l.b16 %v337
  %v1603 = vunpack.c.h.b16 %v337
  %v1604 = vunpack.c.l.b16 %v338
  %v1605 = vunpack.c.h.b16 %v338
  %v1606 = vunpack.c.l.b16 %v339
  %v1607 = vunpack.c.h.b16 %v339
  %v1608 = vunpack.c.l.b16 %v340
  %v1609 = vunpack.c.h.b16 %v340
  %v1610 = vunpack.c.l.b16 %v341
  %v1611 = vunpack.c.h.b16 %v341
  %v1612 = vunpack.c.l.b16 %v342
  %v1613 = vunpack.c.h.b16 %v342
  %v1614 = vunpack.c.l.b16 %v343
  %v1615 = vunpack.c.h.b16 %v343
  %v1616 = vunpack.c.l.b16 %v344
  %v1617 = vunpack.c.h.b16 %v344
  %v1618 = vunpack.c.l.b16 %v345
  %v1619 = vunpack.c.h.b16 %v345
  %v1620 = vunpack.c.l.b16 %v346
  %v1621 = vunpack.c.h.b16 %v346
  %v1622 = vunpack.c.l.b16 %v347
  %v1623 = vunpack.c.h.b16 %v347
  %v1624 = vunpack.c.l.b16 %v348
  %v1625 = vunpack.c.h.b16 %v348
  %v1626 = vunpack.c.l.b16 %v349
  %v1627 = vunpack.c.h.b16 %v349
  %v1628 = vunpack.c.l.b16 %v350
  %v1629 = vunpack.c.h.b16 %v350
  %v1630 = vunpack.c.l.b16 %v351
  %v1631 = vunpack.c.h.b16 %v351
  %v1632 = vunpack.c.l.b16 %v352
  %v1633 = vunpack.c.h.b16 %v352
  %v1634 = vunpack.c.l.b16 %v353
  %v1635 = vunpack.c.h.b16 %v353
  %v1636 = vunpack.c.l.b16 %v354
  %v1637 = vunpack.c.h.b16 %v354
  %v1638 = vunpack.c.l.b16 %v355
  %v1639 = vunpack.c.h.b16 %v355
  %v1640 = vunpack.c.l.b16 %v356
  %v1641 = vunpack.c.h.b16 %v356
  %v1642 = vunpack.c.l.b16 %v357
  %v1643 = vunpack.c.h.b16 %v357
  %v1644 = vunpack.c.l.b16 %v358
  %v1645 = vunpack.c.h.b16 %v358
  %v1646 = vunpack.c.l.b16 %v359
  %v1647 = vunpack.c.h.b16 %v359
  %v1648 = vunpack.c.l.b16 %v360
  %v1649 = vunpack.c.h.b16 %v360
  %v1650 = vunpack.c.l.b16 %v361
  %v1651 = vunpack.c.h.b16 %v361
  %v1652 = vunpack.c.l.b16 %v362
  %v1653 = vunpack.c.h.b16 %v362
  %v1654 = vunpack.c.l.b16 %v363
  %v1655 = vunpack.c.h.b16 %v363
  %v1656 = vunpack.c.l.b16 %v364
  %v1657 = vunpack.c.h.b16 %v364
  %v1658 = vunpack.c.l.b16 %v365
  %v1659 = vunpack.c.h.b16 %v365
  %v1660 = vunpack.c.l.b16 %v366
  %v1661 = vunpack.c.h.b16 %v366
  %v1662 = vunpack.c.l.b16 %v367
  %v1663 = vunpack.c.h.b16 %v367
  %v1664 = vunpack.c.l.b16 %v368
  %v1665 = vunpack.c.h.b16 %v368
  %v1666 = vunpack.c.l.b16 %v369
  %v1667 = vunpack.c.h.b16 %v369
  %v1668 = vunpack.c.l.b16 %v370
  %v1669 = vunpack.c.h.b16 %v370
  %v1670 = vunpack.c.l.b16 %v371
  %v1671 = vunpack.c.h.b16 %v371
  %v1672 = vunpack.c.l.b16 %v372
  %v1673 = vunpack.c.h.b16 %v372
  %v1674 = vunpack.c.l.b16 %v373
  %v1675 = vunpack.c.h.b16 %v373
  %v1676 = vunpack.c.l.b16 %v374
  %v1677 = vunpack.c.h.b16 %v374
  %v1678 = vunpack.c.l.b16 %v375
  %v1679 = vunpack.c.h.b16 %v375
  %v1680 = vunpack.c.l.b16 %v376
  %v1681 = vunpack.c.h.b16 %v376
  %v1682 = vunpack.c.l.b16 %v377
  %v1683 = vunpack.c.h.b16 %v377
  %v1684 = vunpack.c.l.b16 %v378
  %v1685 = vunpack.c.h.b16 %v378
  %v1686 = vunpack.c.l.b16 %v379
  %v1687 = vunpack.c.h.b16 %v379
  %v1688 = vunpack.c.l.b16 %v380
  %v1689 = vunpack.c.h.b16 %v380
  %v1690 = vunpack.c.l.b16 %v381
  %v1691 = vunpack.c.h.b16 %v381
  %v1692 = vunpack.c.l.b16 %v382
  %v1693 = vunpack.c.h.b16 %v382
  %v1694 = vunpack.c.l.b16 %v383
  %v1695 = vunpack.c.h.b16 %v383
  %v1696 = vunpack.c.l.b16 %v384
  %v1697 = vunpack.c.h.b16 %v384
  %v1698 = vunpack.c.l.b16 %v385
  %v1699 = vunpack.c.h.b16 %v385
  %v1700 = vunpack.c.l.b16 %v386
  %v1701 = vunpack.c.h.b16 %v386
  %v1702 = vunpack.c.l.b16 %v387
  %v1703 = vunpack.c.h.b16 %v387
  %v1704 = vunpack.c.l.b16 %v388
  %v1705 = vunpack.c.h.b16 %v388
  %v1706 = vunpack.c.l.b16 %v389
  %v1707 = vunpack.c.h.b16 %v389
  %v1708 = vunpack.c.l.b16 %v390
  %v1709 = vunpack.c.h.b16 %v390
  %v1710 = vunpack.c.l.b16 %v391
  %v1711 = vunpack.c.h.b16 %v391
  %v1712 = vunpack.c.l.b16 %v392
  %v1713 = vunpack.c.h.b16 %v392
  %v1714 = vunpack.c.l.b16 %v393
  %v1715 = vunpack.c.h.b16 %v393
  %v1716 = vunpack.c.l.b16 %v394
  %v1717 = vunpack.c.h.b16 %v394
  %v1718 = vunpack.c.l.b16 %v395
  %v1719 = vunpack.c.h.b16 %v395
  %v1720 = vunpack.c.l.b16 %v396
  %v1721 = vunpack.c.h.b16 %v396
  %v1722 = vunpack.c.l.b16 %v397
  %v1723 = vunpack.c.h.b16 %v397
  %v1724 = vunpack.c.l.b16 %v398
  %v1725 = vunpack.c.h.b16 %v398
  %v1726 = vunpack.c.l.b16 %v399
  %v1727 = vunpack.c.h.b16 %v399
  %v1728 = vunpack.c.l.b16 %v400
  %v1729 = vunpack.c.h.b16 %v400
  %v1730 = vunpack.c.l.b16 %v401
  %v1731 = vunpack.c.h.b16 %v401
  %v1732 = vunpack.c.l.b16 %v402
  %v1733 = vunpack.c.h.b16 %v402
  %v1734 = vunpack.c.l.b16 %v403
  %v1735 = vunpack.c.h.b16 %v403
  %v1736 = vunpack.c.l.b16 %v404
  %v1737 = vunpack.c.h.b16 %v404
  %v1738 = vunpack.c.l.b16 %v405
  %v1739 = vunpack.c.h.b16 %v405
  %v1740 = vunpack.c.l.b16 %v406
  %v1741 = vunpack.c.h.b16 %v406
  %v1742 = vunpack.c.l.b16 %v407
  %v1743 = vunpack.c.h.b16 %v407
  %v1744 = vunpack.c.l.b16 %v408
  %v1745 = vunpack.c.h.b16 %v408
  %v1746 = vunpack.c.l.b16 %v409
  %v1747 = vunpack.c.h.b16 %v409
  %v1748 = vunpack.c.l.b16 %v410
  %v1749 = vunpack.c.h.b16 %v410
  %v1750 = vunpack.c.l.b16 %v411
  %v1751 = vunpack.c.h.b16 %v411
  %v1752 = vunpack.c.l.b16 %v412
  %v1753 = vunpack.c.h.b16 %v412
  %v1754 = vunpack.c.l.b16 %v413
  %v1755 = vunpack.c.h.b16 %v413
  %v1756 = vunpack.c.l.b16 %v414
  %v1757 = vunpack.c.h.b16 %v414
  %v1758 = vunpack.c.l.b16 %v415
  %v1759 = vunpack.c.h.b16 %v415
  %v1760 = vunpack.c.l.b16 %v416
  %v1761 = vunpack.c.h.b16 %v416
  %v1762 = vunpack.c.l.b16 %v417
  %v1763 = vunpack.c.h.b16 %v417
  %v1764 = vunpack.c.l.b16 %v418
  %v1765 = vunpack.c.h.b16 %v418
  %v1766 = vunpack.c.l.b16 %v419
  %v1767 = vunpack.c.h.b16 %v419
  %v1768 = vunpack.c.l.b16 %v420
  %v1769 = vunpack.c.h.b16 %v420
  %v1770 = vunpack.c.l.b16 %v421
  %v1771 = vunpack.c.h.b16 %v421
  %v1772 = vunpack.c.l.b16 %v422
  %v1773 = vunpack.c.h.b16 %v422
  %v1774 = vunpack.c.l.b16 %v423
  %v1775 = vunpack.c.h.b16 %v423
  %v1776 = vunpack.c.l.b16 %v424
  %v1777 = vunpack.c.h.b16 %v424
  %v1778 = vunpack.c.l.b16 %v425
  %v1779 = vunpack.c.h.b16 %v425
  %v1780 = vunpack.c.l.b16 %v426
  %v1781 = vunpack.c.h.b16 %v426
  %v1782 = vunpack.c.l.b16 %v427
  %v1783 = vunpack.c.h.b16 %v427
  %v1784 = vunpack.c.l.b16 %v428
  %v1785 = vunpack.c.h.b16 %v428
  %v1786 = vunpack.c.l.b16 %v429
  %v1787 = vunpack.c.h.b16 %v429
  %v1788 = vunpack.c.l.b16 %v430
  %v1789 = vunpack.c.h.b16 %v430
  %v1790 = vunpack.c.l.b16 %v431
  %v1791 = vunpack.c.h.b16 %v431
  %v1792 = vunpack.c.l.b16 %v432
  %v1793 = vunpack.c.h.b16 %v432
  %v1794 = vunpack.c.l.b16 %v433
  %v1795 = vunpack.c.h.b16 %v433
  %v1796 = vunpack.c.l.b16 %v434
  %v1797 = vunpack.c.h.b16 %v434
  %v1798 = vunpack.c.l.b16 %v435
  %v1799 = vunpack.c.h.b16 %v435
  %v1800 = vunpack.c.l.b16 %v436
  %v1801 = vunpack.c.h.b16 %v436
  %v1802 = vunpack.c.l.b16 %v437
  %v1803 = vunpack.c.h.b16 %v437
  %v1804 = vunpack.c.l.b16 %v438
  %v1805 = vunpack.c.h.b16 %v438
  %v1806 = vunpack.c.l.b16 %v439
  %v1807 = vunpack.c.h.b16 %v439
  %v1808 = vunpack.c.l.b16 %v440
  %v1809 = vunpack.c.h.b16 %v440
  %v1810 = vunpack.c.l.b16 %v441
  %v1811 = vunpack.c.h.b16 %v441
  %v1812 = vunpack.c.l.b16 %v442
  %v1813 = vunpack.c.h.b16 %v442
  %v1814 = vunpack.c.l.b16 %v443
  %v1815 = vunpack.c.h.b16 %v443
  %v1816 = vunpack.c.l.b16 %v444
  %v1817 = vunpack.c.h.b16 %v444
  %v1818 = vpack.c.b16 %v990, %v986
  %v1819 = vpack.c.b16 %v991, %v987
  %v1820 = vpack.c.b16 %v992, %v988
  %v1821 = vpack.c.b16 %v993, %v989
  %v1822 = vpack.c.b16 %v998, %v994
  %v1823 = vpack.c.b16 %v999, %v995
  %v1824 = vpack.c.b16 %v1000, %v996
  %v1825 = vpack.c.b16 %v1001, %v997
  %v1826 = vpack.c.b16 %v1006, %v1002
  %v1827 = vpack.c.b16 %v1007, %v1003
  %v1828 = vpack.c.b16 %v1008, %v1004
  %v1829 = vpack.c.b16 %v1009, %v1005
  %v1830 = vpack.c.b16 %v1014, %v1010
  %v1831 = vpack.c.b16 %v1015, %v1011
  %v1832 = vpack.c.b16 %v1016, %v1012
  %v1833 = vpack.c.b16 %v1017, %v1013
  %v1834 = vpack.c.b16 %v1022, %v1018
  %v1835 = vpack.c.b16 %v1023, %v1019
  %v1836 = vpack.c.b16 %v1024, %v1020
  %v1837 = vpack.c.b16 %v1025, %v1021
  %v1838 = vpack.c.b16 %v1030, %v1026
  %v1839 = vpack.c.b16 %v1031, %v1027
  %v1840 = vpack.c.b16 %v1032, %v1028
  %v1841 = vpack.c.b16 %v1033, %v1029
  %v1842 = vpack.c.b16 %v1038, %v1034
  %v1843 = vpack.c.b16 %v1039, %v1035
  %v1844 = vpack.c.b16 %v1040, %v1036
  %v1845 = vpack.c.b16 %v1041, %v1037
  %v1846 = vpack.c.b16 %v1046, %v1042
  %v1847 = vpack.c.b16 %v1047, %v1043
  %v1848 = vpack.c.b16 %v1048, %v1044
  %v1849 = vpack.c.b16 %v1049, %v1045
  %v1850 = vpack.c.b16 %v1054, %v1050
  %v1851 = vpack.c.b16 %v1055, %v1051
  %v1852 = vpack.c.b16 %v1056, %v1052
  %v1853 = vpack.c.b16 %v1057, %v1053
  %v1854 = vpack.c.b16 %v1062, %v1058
  %v1855 = vpack.c.b16 %v1063, %v1059
  %v1856 = vpack.c.b16 %v1064, %v1060
  %v1857 = vpack.c.b16 %v1065, %v1061
  %v1858 = vpack.c.b16 %v1070, %v1066
  %v1859 = vpack.c.b16 %v1071, %v1067
  %v1860 = vpack.c.b16 %v1072, %v1068
  %v1861 = vpack.c.b16 %v1073, %v1069
  %v1862 = vpack.c.b16 %v1078, %v1074
  %v1863 = vpack.c.b16 %v1079, %v1075
  %v1864 = vpack.c.b16 %v1080, %v1076
  %v1865 = vpack.c.b16 %v1081, %v1077
  %v1866 = vpack.c.b16 %v1086, %v1082
  %v1867 = vpack.c.b16 %v1087, %v1083
  %v1868 = vpack.c.b16 %v1088, %v1084
  %v1869 = vpack.c.b16 %v1089, %v1085
  %v1870 = vpack.c.b16 %v1094, %v1090
  %v1871 = vpack.c.b16 %v1095, %v1091
  %v1872 = vpack.c.b16 %v1096, %v1092
  %v1873 = vpack.c.b16 %v1097, %v1093
  %v1874 = vpack.c.b16 %v1102, %v1098
  %v1875 = vpack.c.b16 %v1103, %v1099
  %v1876 = vpack.c.b16 %v1104, %v1100
  %v1877 = vpack.c.b16 %v1105, %v1101
  %v1878 = vpack.c.b16 %v1110, %v1106
  %v1879 = vpack.c.b16 %v1111, %v1107
  %v1880 = vpack.c.b16 %v1112, %v1108
  %v1881 = vpack.c.b16 %v1113, %v1109
  %v1882 = vpack.c.b16 %v1118, %v1114
  %v1883 = vpack.c.b16 %v1119, %v1115
  %v1884 = vpack.c.b16 %v1120, %v1116
  %v1885 = vpack.c.b16 %v1121, %v1117
  %v1886 = vpack.c.b16 %v1126, %v1122
  %v1887 = vpack.c.b16 %v1127, %v1123
  %v1888 = vpack.c.b16 %v1128, %v1124
  %v1889 = vpack.c.b16 %v1129, %v1125
  %v1890 = vpack.c.b16 %v1134, %v1130
  %v1891 = vpack.c.b16 %v1135, %v1131
  %v1892 = vpack.c.b16 %v1136, %v1132
  %v1893 = vpack.c.b16 %v1137, %v1133
  %v1894 = vpack.c.b16 %v1142, %v1138
  %v1895 = vpack.c.b16 %v1143, %v1139
  %v1896 = vpack.c.b16 %v1144, %v1140
  %v1897 = vpack.c.b16 %v1145, %v1141
  %v1898 = vpack.c.b16 %v1150, %v1146
  %v1899 = vpack.c.b16 %v1151, %v1147
  %v1900 = vpack.c.b16 %v1152, %v1148
  %v1901 = vpack.c.b16 %v1153, %v1149
  %v1902 = vpack.c.b16 %v1158, %v1154
  %v1903 = vpack.c.b16 %v1159, %v1155
  %v1904 = vpack.c.b16 %v1160, %v1156
  %v1905 = vpack.c.b16 %v1161, %v1157
  %v1906 = vpack.c.b16 %v1166, %v1162
  %v1907 = vpack.c.b16 %v1167, %v1163
  %v1908 = vpack.c.b16 %v1168, %v1164
  %v1909 = vpack.c.b16 %v1169, %v1165
  %v1910 = vpack.c.b16 %v1174, %v1170
  %v1911 = vpack.c.b16 %v1175, %v1171
  %v1912 = vpack.c.b16 %v1176, %v1172
  %v1913 = vpack.c.b16 %v1177, %v1173
  %v1914 = vpack.c.b16 %v1182, %v1178
  %v1915 = vpack.c.b16 %v1183, %v1179
  %v1916 = vpack.c.b16 %v1184, %v1180
  %v1917 = vpack.c.b16 %v1185, %v1181
  %v1918 = vpack.c.b16 %v1190, %v1186
  %v1919 = vpack.c.b16 %v1191, %v1187
  %v1920 = vpack.c.b16 %v1192, %v1188
  %v1921 = vpack.c.b16 %v1193, %v1189
  %v1922 = vpack.c.b16 %v1198, %v1194
  %v1923 = vpack.c.b16 %v1199, %v1195
  %v1924 = vpack.c.b16 %v1200, %v1196
  %v1925 = vpack.c.b16 %v1201, %v1197
  %v1926 = vpack.c.b16 %v1206, %v1202
  %v1927 = vpack.c.b16 %v1207, %v1203
  %v1928 = vpack.c.b16 %v1208, %v1204
  %v1929 = vpack.c.b16 %v1209, %v1205
  %v1930 = vpack.c.b16 %v1214, %v1210
  %v1931 = vpack.c.b16 %v1215, %v1211
  %v1932 = vpack.c.b16 %v1216, %v1212
  %v1933 = vpack.c.b16 %v1217, %v1213
  %v1934 = vpack.c.b16 %v1222, %v1218
  %v1935 = vpack.c.b16 %v1223, %v1219
  %v1936 = vpack.c.b16 %v1224, %v1220
  %v1937 = vpack.c.b16 %v1225, %v1221
  %v1938 = vpack.c.b16 %v1230, %v1226
  %v1939 = vpack.c.b16 %v1231, %v1227
  %v1940 = vpack.c.b16 %v1232, %v1228
  %v1941 = vpack.c.b16 %v1233, %v1229
  %v1942 = vpack.c.b16 %v1238, %v1234
  %v1943 = vpack.c.b16 %v1239, %v1235
  %v1944 = vpack.c.b16 %v1240, %v1236
  %v1945 = vpack.c.b16 %v1241, %v1237
  %v1946 = vpack.c.b16 %v1246, %v1242
  %v1947 = vpack.c.b16 %v1247, %v1243
  %v1948 = vpack.c.b16 %v1248, %v1244
  %v1949 = vpack.c.b16 %v1249, %v1245
  %v1950 = vpack.c.b16 %v1254, %v1250
  %v1951 = vpack.c.b16 %v1255, %v1251
  %v1952 = vpack.c.b16 %v1256, %v1252
  %v1953 = vpack.c.b16 %v1257, %v1253
  %v1954 = vpack.c.b16 %v1262, %v1258
  %v1955 = vpack.c.b16 %v1263, %v1259
  %v1956 = vpack.c.b16 %v1264, %v1260
  %v1957 = vpack.c.b16 %v1265, %v1261
  %v1958 = vpack.c.b16 %v1270, %v1266
  %v1959 = vpack.c.b16 %v1271, %v1267
  %v1960 = vpack.c.b16 %v1272, %v1268
  %v1961 = vpack.c.b16 %v1273, %v1269
  %v1962 = vpack.c.b16 %v1278, %v1274
  %v1963 = vpack.c.b16 %v1279, %v1275
  %v1964 = vpack.c.b16 %v1280, %v1276
  %v1965 = vpack.c.b16 %v1281, %v1277
  %v1966 = vpack.c.b16 %v1286, %v1282
  %v1967 = vpack.c.b16 %v1287, %v1283
  %v1968 = vpack.c.b16 %v1288, %v1284
  %v1969 = vpack.c.b16 %v1289, %v1285
  %v1970 = vpack.c.b16 %v1294, %v1290
  %v1971 = vpack.c.b16 %v1295, %v1291
  %v1972 = vpack.c.b16 %v1296, %v1292
  %v1973 = vpack.c.b16 %v1297, %v1293
  %v1974 = vpack.c.b16 %v1302, %v1298
  %v1975 = vpack.c.b16 %v1303, %v1299
  %v1976 = vpack.c.b16 %v1304, %v1300
  %v1977 = vpack.c.b16 %v1305, %v1301
  %v1978 = vpack.c.b16 %v1310, %v1306
  %v1979 = vpack.c.b16 %v1311, %v1307
  %v1980 = vpack.c.b16 %v1312, %v1308
  %v1981 = vpack.c.b16 %v1313, %v1309
  %v1982 = vpack.c.b16 %v1318, %v1314
  %v1983 = vpack.c.b16 %v1319, %v1315
  %v1984 = vpack.c.b16 %v1320, %v1316
  %v1985 = vpack.c.b16 %v1321, %v1317
  %v1986 = vpack.c.b16 %v1326, %v1322
  %v1987 = vpack.c.b16 %v1327, %v1323
  %v1988 = vpack.c.b16 %v1328, %v1324
  %v1989 = vpack.c.b16 %v1329, %v1325
  %v1990 = vpack.c.b16 %v1334, %v1330
  %v1991 = vpack.c.b16 %v1335, %v1331
  %v1992 = vpack.c.b16 %v1336, %v1332
  %v1993 = vpack.c.b16 %v1337, %v1333
  %v1994 = vpack.c.b16 %v1342, %v1338
  %v1995 = vpack.c.b16 %v1343, %v1339
  %v1996 = vpack.c.b16 %v1344, %v1340
  %v1997 = vpack.c.b16 %v1345, %v1341
  %v1998 = vpack.c.b16 %v1350, %v1346
  %v1999 = vpack.c.b16 %v1351, %v1347
  %v2000 = vpack.c.b16 %v1352, %v1348
  %v2001 = vpack.c.b16 %v1353, %v1349
  %v2002 = vpack.c.b16 %v1358, %v1354
  %v2003 = vpack.c.b16 %v1359, %v1355
  %v2004 = vpack.c.b16 %v1360, %v1356
  %v2005 = vpack.c.b16 %v1361, %v1357
  %v2006 = vpack.c.b16 %v1366, %v1362
  %v2007 = vpack.c.b16 %v1367, %v1363
  %v2008 = vpack.c.b16 %v1368, %v1364
  %v2009 = vpack.c.b16 %v1369, %v1365
  %v2010 = vpack.c.b16 %v1374, %v1370
  %v2011 = vpack.c.b16 %v1375, %v1371
  %v2012 = vpack.c.b16 %v1376, %v1372
  %v2013 = vpack.c.b16 %v1377, %v1373
  %v2014 = vpack.c.b16 %v1382, %v1378
  %v2015 = vpack.c.b16 %v1383, %v1379
  %v2016 = vpack.c.b16 %v1384, %v1380
  %v2017 = vpack.c.b16 %v1385, %v1381
  %v2018 = vpack.c.b16 %v1390, %v1386
  %v2019 = vpack.c.b16 %v1391, %v1387
  %v2020 = vpack.c.b16 %v1392, %v1388
  %v2021 = vpack.c.b16 %v1393, %v1389
  %v2022 = vpack.c.b16 %v1398, %v1394
  %v2023 = vpack.c.b16 %v1399, %v1395
  %v2024 = vpack.c.b16 %v1400, %v1396
  %v2025 = vpack.c.b16 %v1401, %v1397
  %v2026 = vpack.c.b16 %v1406, %v1402
  %v2027 = vpack.c.b16 %v1407, %v1403
  %v2028 = vpack.c.b16 %v1408, %v1404
  %v2029 = vpack.c.b16 %v1409, %v1405
  %v2030 = vpack.c.b16 %v1414, %v1410
  %v2031 = vpack.c.b16 %v1415, %v1411
  %v2032 = vpack.c.b16 %v1416, %v1412
  %v2033 = vpack.c.b16 %v1417, %v1413
  %v2034 = vpack.c.b16 %v1422, %v1418
  %v2035 = vpack.c.b16 %v1423, %v1419
  %v2036 = vpack.c.b16 %v1424, %v1420
  %v2037 = vpack.c.b16 %v1425, %v1421
  %v2038 = vpack.c.b16 %v1430, %v1426
  %v2039 = vpack.c.b16 %v1431, %v1427
  %v2040 = vpack.c.b16 %v1432, %v1428
  %v2041 = vpack.c.b16 %v1433, %v1429
  %v2042 = vpack.c.b16 %v1438, %v1434
  %v2043 = vpack.c.b16 %v1439, %v1435
  %v2044 = vpack.c.b16 %v1440, %v1436
  %v2045 = vpack.c.b16 %v1441, %v1437
  %v2046 = vpack.c.b16 %v1446, %v1442
  %v2047 = vpack.c.b16 %v1447, %v1443
  %v2048 = vpack.c.b16 %v1448, %v1444
  %v2049 = vpack.c.b16 %v1449, %v1445
  %v2050 = vpack.c.b16 %v1454, %v1450
  %v2051 = vpack.c.b16 %v1455, %v1451
  %v2052 = vpack.c.b16 %v1456, %v1452
  %v2053 = vpack.c.b16 %v1457, %v1453
  %v2054 = vpack.c.b16 %v1462, %v1458
  %v2055 = vpack.c.b16 %v1463, %v1459
  %v2056 = vpack.c.b16 %v1464, %v1460
  %v2057 = vpack.c.b16 %v1465, %v1461
  %v2058 = vpack.c.b16 %v1470, %v1466
  %v2059 = vpack.c.b16 %v1471, %v1467
  %v2060 = vpack.c.b16 %v1472, %v1468
  %v2061 = vpack.c.b16 %v1473, %v1469
  %v2062 = vpack.c.b16 %v1478, %v1474
  %v2063 = vpack.c.b16 %v1479, %v1475
  %v2064 = vpack.c.b16 %v1480, %v1476
  %v2065 = vpack.c.b16 %v1481, %v1477
  %v2066 = vpack.c.b16 %v1486, %v1482
  %v2067 = vpack.c.b16 %v1487, %v1483
  %v2068 = vpack.c.b16 %v1488, %v1484
  %v2069 = vpack.c.b16 %v1489, %v1485
  %v2070 = vpack.c.b16 %v1494, %v1490
  %v2071 = vpack.c.b16 %v1495, %v1491
  %v2072 = vpack.c.b16 %v1496, %v1492
  %v2073 = vpack.c.b16 %v1497, %v1493
  %v2074 = vpack.c.b16 %v1502, %v1498
  %v2075 = vpack.c.b16 %v1503, %v1499
  %v2076 = vpack.c.b16 %v1504, %v1500
  %v2077 = vpack.c.b16 %v1505, %v1501
  %v2078 = vpack.c.b16 %v1510, %v1506
  %v2079 = vpack.c.b16 %v1511, %v1507
  %v2080 = vpack.c.b16 %v1512, %v1508
  %v2081 = vpack.c.b16 %v1513, %v1509
  %v2082 = vpack.c.b16 %v1518, %v1514
  %v2083 = vpack.c.b16 %v1519, %v1515
  %v2084 = vpack.c.b16 %v1520, %v1516
  %v2085 = vpack.c.b16 %v1521, %v1517
  %v2086 = vpack.c.b16 %v1526, %v1522
  %v2087 = vpack.c.b16 %v1527, %v1523
  %v2088 = vpack.c.b16 %v1528, %v1524
  %v2089 = vpack.c.b16 %v1529, %v1525
  %v2090 = vpack.c.b16 %v1534, %v1530
  %v2091 = vpack.c.b16 %v1535, %v1531
  %v2092 = vpack.c.b16 %v1536, %v1532
  %v2093 = vpack.c.b16 %v1537, %v1533
  %v2094 = vpack.c.b16 %v1542, %v1538
  %v2095 = vpack.c.b16 %v1543, %v1539
  %v2096 = vpack.c.b16 %v1544, %v1540
  %v2097 = vpack.c.b16 %v1545, %v1541
  %v2098 = vpack.c.b16 %v1550, %v1546
  %v2099 = vpack.c.b16 %v1551, %v1547
  %v2100 = vpack.c.b16 %v1552, %v1548
  %v2101 = vpack.c.b16 %v1553, %v1549
  %v2102 = vpack.c.b16 %v1558, %v1554
  %v2103 = vpack.c.b16 %v1559, %v1555
  %v2104 = vpack.c.b16 %v1560, %v1556
  %v2105 = vpack.c.b16 %v1561, %v1557
  %v2106 = vpack.c.b16 %v1566, %v1562
  %v2107 = vpack.c.b16 %v1567, %v1563
  %v2108 = vpack.c.b16 %v1568, %v1564
  %v2109 = vpack.c.b16 %v1569, %v1565
  %v2110 = vpack.c.b16 %v1574, %v1570
  %v2111 = vpack.c.b16 %v1575, %v1571
  %v2112 = vpack.c.b16 %v1576, %v1572
  %v2113 = vpack.c.b16 %v1577, %v1573
  %v2114 = vpack.c.b16 %v1582, %v1578
  %v2115 = vpack.c.b16 %v1583, %v1579
  %v2116 = vpack.c.b16 %v1584, %v1580
  %v2117 = vpack.c.b16 %v1585, %v1581
  %v2118 = vpack.c.b16 %v1590, %v1586
  %v2119 = vpack.c.b16 %v1591, %v1587
  %v2120 = vpack.c.b16 %v1592, %v1588
  %v2121 = vpack.c.b16 %v1593, %v1589
  %v2122 = vpack.c.b16 %v1598, %v1594
  %v2123 = vpack.c.b16 %v1599, %v1595
  %v2124 = vpack.c.b16 %v1600, %v1596
  %v2125 = vpack.c.b16 %v1601, %v1597
  %v2126 = vpack.c.b16 %v1606, %v1602
  %v2127 = vpack.c.b16 %v1607, %v1603
  %v2128 = vpack.c.b16 %v1608, %v1604
  %v2129 = vpack.c.b16 %v1609, %v1605
  %v2130 = vpack.c.b16 %v1614, %v1610
  %v2131 = vpack.c.b16 %v1615, %v1611
  %v2132 = vpack.c.b16 %v1616, %v1612
  %v2133 = vpack.c.b16 %v1617, %v1613
  %v2134 = vpack.c.b16 %v1622, %v1618
  %v2135 = vpack.c.b16 %v1623, %v1619
  %v2136 = vpack.c.b16 %v1624, %v1620
  %v2137 = vpack.c.b16 %v1625, %v1621
  %v2138 = vpack.c.b16 %v1630, %v1626
  %v2139 = vpack.c.b16 %v1631, %v1627
  %v2140 = vpack.c.b16 %v1632, %v1628
  %v2141 = vpack.c.b16 %v1633, %v1629
  %v2142 = vpack.c.b16 %v1638, %v1634
  %v2143 = vpack.c.b16 %v1639, %v1635
  %v2144 = vpack.c.b16 %v1640, %v1636
  %v2145 = vpack.c.b16 %v1641, %v1637
  %v2146 = vpack.c.b16 %v1646, %v1642
  %v2147 = vpack.c.b16 %v1647, %v1643
  %v2148 = vpack.c.b16 %v1648, %v1644
  %v2149 = vpack.c.b16 %v1649, %v1645
  %v2150 = vpack.c.b16 %v1654, %v1650
  %v2151 = vpack.c.b16 %v1655, %v1651
  %v2152 = vpack.c.b16 %v1656, %v1652
  %v2153 = vpack.c.b16 %v1657, %v1653
  %v2154 = vpack.c.b16 %v1662, %v1658
  %v2155 = vpack.c.b16 %v1663, %v1659
  %v2156 = vpack.c.b16 %v1664, %v1660
  %v2157 = vpack.c.b16 %v1665, %v1661
  %v2158 = vpack.c.b16 %v1670, %v1666
  %v2159 = vpack.c.b16 %v1671, %v1667
  %v2160 = vpack.c.b16 %v1672, %v1668
  %v2161 = vpack.c.b16 %v1673, %v1669
  %v2162 = vpack.c.b16 %v1678, %v1674
  %v2163 = vpack.c.b16 %v1679, %v1675
  %v2164 = vpack.c.b16 %v1680, %v1676
  %v2165 = vpack.c.b16 %v1681, %v1677
  %v2166 = vpack.c.b16 %v1686, %v1682
  %v2167 = vpack.c.b16 %v1687, %v1683
  %v2168 = vpack.c.b16 %v1688, %v1684
  %v2169 = vpack.c.b16 %v1689, %v1685
  %v2170 = vpack.c.b16 %v1694, %v1690
  %v2171 = vpack.c.b16 %v1695, %v1691
  %v2172 = vpack.c.b16 %v1696, %v1692
  %v2173 = vpack.c.b16 %v1697, %v1693
  %v2174 = vpack.c.b16 %v1702, %v1698
  %v2175 = vpack.c.b16 %v1703, %v1699
  %v2176 = vpack.c.b16 %v1704, %v1700
  %v2177 = vpack.c.b16 %v1705, %v1701
  %v2178 = vpack.c.b16 %v1710, %v1706
  %v2179 = vpack.c.b16 %v1711, %v1707
  %v2180 = vpack.c.b16 %v1712, %v1708
  %v2181 = vpack.c.b16 %v1713, %v1709
  %v2182 = vpack.c.b16 %v1718, %v1714
  %v2183 = vpack.c.b16 %v1719, %v1715
  %v2184 = vpack.c.b16 %v1720, %v1716
  %v2185 = vpack.c.b16 %v1721, %v1717
  %v2186 = vpack.c.b16 %v1726, %v1722
  %v2187 = vpack.c.b16 %v1727, %v1723
  %v2188 = vpack.c.b16 %v1728, %v1724
  %v2189 = vpack.c.b16 %v1729, %v1725
  %v2190 = vpack.c.b16 %v1734, %v1730
  %v2191 = vpack.c.b16 %v1735, %v1731
  %v2192 = vpack.c.b16 %v1736, %v1732
  %v2193 = vpack.c.b16 %v1737, %v1733
  %v2194 = vpack.c.b16 %v1742, %v1738
  %v2195 = vpack.c.b16 %v1743, %v1739
  %v2196 = vpack.c.b16 %v1744, %v1740
  %v2197 = vpack.c.b16 %v1745, %v1741
  %v2198 = vpack.c.b16 %v1750, %v1746
  %v2199 = vpack.c.b16 %v1751, %v1747
  %v2200 = vpack.c.b16 %v1752, %v1748
  %v2201 = vpack.c.b16 %v1753, %v1749
  %v2202 = vpack.c.b16 %v1758, %v1754
  %v2203 = vpack.c.b16 %v1759, %v1755
  %v2204 = vpack.c.b16 %v1760, %v1756
  %v2205 = vpack.c.b16 %v1761, %v1757
  %v2206 = vpack.c.b16 %v1766, %v1762
  %v2207 = vpack.c.b16 %v1767, %v1763
  %v2208 = vpack.c.b16 %v1768, %v1764
  %v2209 = vpack.c.b16 %v1769, %v1765
  %v2210 = vpack.c.b16 %v1774, %v1770
  %v2211 = vpack.c.b16 %v1775, %v1771
  %v2212 = vpack.c.b16 %v1776, %v1772
  %v2213 = vpack.c.b16 %v1777, %v1773
  %v2214 = vpack.c.b16 %v1782, %v1778
  %v2215 = vpack.c.b16 %v1783, %v1779
  %v2216 = vpack.c.b16 %v1784, %v1780
  %v2217 = vpack.c.b16 %v1785, %v1781
  %v2218 = vpack.c.b16 %v1790, %v1786
  %v2219 = vpack.c.b16 %v1791, %v1787
  %v2220 = vpack.c.b16 %v1792, %v1788
  %v2221 = vpack.c.b16 %v1793, %v1789
  %v2222 = vpack.c.b16 %v1798, %v1794
  %v2223 = vpack.c.b16 %v1799, %v1795
  %v2224 = vpack.c.b16 %v1800, %v1796
  %v2225 = vpack.c.b16 %v1801, %v1797
  %v2226 = vpack.c.b16 %v1806, %v1802
  %v2227 = vpack.c.b16 %v1807, %v1803
  %v2228 = vpack.c.b16 %v1808, %v1804
  %v2229 = vpack.c.b16 %v1809, %v1805
  %v2230 = vpack.c.b16 %v1814, %v1810
  %v2231 = vpack.c.b16 %v1815, %v1811
  %v2232 = vpack.c.b16 %v1816, %v1812
  %v2233 = vpack.c.b16 %v1817, %v1813
  %2650 = vmatprep.subr.bf16.mxu0 %v1847
  %2651 = vmatpush1.bf16.msra.mxu0 %v1846
  %2652 = vmatprep.subr.bf16.mxu0 %v1843
  %2653 = vmatpush1.bf16.msra.mxu0 %v1842
  %2654 = vmatprep.subr.bf16.mxu0 %v1839
  %2655 = vmatpush1.bf16.msra.mxu0 %v1838
  %2656 = vmatprep.subr.bf16.mxu0 %v1835
  %2657 = vmatpush1.bf16.msra.mxu0 %v1834
  %2658 = vmatprep.subr.bf16.mxu0 %v1831
  %2659 = vmatpush1.bf16.msra.mxu0 %v1830
  %2660 = vmatprep.subr.bf16.mxu0 %v1827
  %2661 = vmatpush1.bf16.msra.mxu0 %v1826
  %2662 = vmatprep.subr.bf16.mxu0 %v1823
  %2663 = vmatpush1.bf16.msra.mxu0 %v1822
  %2664 = vmatprep.subr.bf16.mxu0 %v1819
  %2665 = vmatpush1.bf16.msra.mxu0 %v1818
  %2666 = vmatprep.subr.bf16.mxu0 %v1879
  %2667 = vmatpush2.bf16.msra.mxu0 %v1878
  %2668 = vmatprep.subr.bf16.mxu0 %v1875
  %2669 = vmatpush2.bf16.msra.mxu0 %v1874
  %2670 = vmatprep.subr.bf16.mxu0 %v1871
  %2671 = vmatpush2.bf16.msra.mxu0 %v1870
  %2672 = vmatprep.subr.bf16.mxu0 %v1867
  %2673 = vmatpush2.bf16.msra.mxu0 %v1866
  %2674 = vmatprep.subr.bf16.mxu0 %v1863
  %2675 = vmatpush2.bf16.msra.mxu0 %v1862
  %2676 = vmatprep.subr.bf16.mxu0 %v1859
  %2677 = vmatpush2.bf16.msra.mxu0 %v1858
  %2678 = vmatprep.subr.bf16.mxu0 %v1855
  %2679 = vmatpush2.bf16.msra.mxu0 %v1854
  %2680 = vmatprep.subr.bf16.mxu0 %v1851
  %2681 = vmatpush2.bf16.msra.mxu0 %v1850
  %2682 = vmatprep.mubr.bf16.mxu0 %v506
  %2683 = vmatmul.mubr.bf16.gmra.mxu0 %v492
  %v2684 = vpop.f32.mrf.mxu0
  %v2685 = vadd.f32 %v450, %v2684
  %v2686 = vpop.f32.mrf.mxu0
  %v2687 = vadd.f32 %v454, %v2686
  %v2688 = vpop.f32.mrf.mxu0
  %v2689 = vpop.f32.mrf.mxu0
  %2690 = vdwg.mxu0
  %2691 = vmatprep.subr.bf16.mxu0 %v1911
  %2692 = vmatpush1.bf16.msra.mxu0 %v1910
  %2693 = vmatprep.subr.bf16.mxu0 %v1907
  %2694 = vmatpush1.bf16.msra.mxu0 %v1906
  %2695 = vmatprep.subr.bf16.mxu0 %v1903
  %2696 = vmatpush1.bf16.msra.mxu0 %v1902
  %2697 = vmatprep.subr.bf16.mxu0 %v1899
  %2698 = vmatpush1.bf16.msra.mxu0 %v1898
  %2699 = vmatprep.subr.bf16.mxu0 %v1895
  %2700 = vmatpush1.bf16.msra.mxu0 %v1894
  %2701 = vmatprep.subr.bf16.mxu0 %v1891
  %2702 = vmatpush1.bf16.msra.mxu0 %v1890
  %2703 = vmatprep.subr.bf16.mxu0 %v1887
  %2704 = vmatpush1.bf16.msra.mxu0 %v1886
  %2705 = vmatprep.subr.bf16.mxu0 %v1883
  %2706 = vmatpush1.bf16.msra.mxu0 %v1882
  %2707 = vmatprep.subr.bf16.mxu0 %v1943
  %2708 = vmatpush2.bf16.msra.mxu0 %v1942
  %2709 = vmatprep.subr.bf16.mxu0 %v1939
  %2710 = vmatpush2.bf16.msra.mxu0 %v1938
  %2711 = vmatprep.subr.bf16.mxu0 %v1935
  %2712 = vmatpush2.bf16.msra.mxu0 %v1934
  %2713 = vmatprep.subr.bf16.mxu0 %v1931
  %2714 = vmatpush2.bf16.msra.mxu0 %v1930
  %2715 = vmatprep.subr.bf16.mxu0 %v1927
  %2716 = vmatpush2.bf16.msra.mxu0 %v1926
  %2717 = vmatprep.subr.bf16.mxu0 %v1923
  %2718 = vmatpush2.bf16.msra.mxu0 %v1922
  %2719 = vmatprep.subr.bf16.mxu0 %v1919
  %2720 = vmatpush2.bf16.msra.mxu0 %v1918
  %2721 = vmatprep.subr.bf16.mxu0 %v1915
  %2722 = vmatpush2.bf16.msra.mxu0 %v1914
  %2723 = vmatprep.mubr.bf16.mxu0 %v516
  %2724 = vmatmul.mubr.bf16.gmra.mxu0 %v514
  %v2725 = vpop.f32.mrf.mxu0
  %v2726 = vadd.f32 %v2685, %v2725
  %v2727 = vpop.f32.mrf.mxu0
  %v2728 = vadd.f32 %v2687, %v2727
  %v2729 = vpop.f32.mrf.mxu0
  %v2730 = vpop.f32.mrf.mxu0
  %2731 = vdwg.mxu0
  %2732 = vmatprep.subr.bf16.mxu0 %v1975
  %2733 = vmatpush1.bf16.msra.mxu0 %v1974
  %2734 = vmatprep.subr.bf16.mxu0 %v1971
  %2735 = vmatpush1.bf16.msra.mxu0 %v1970
  %2736 = vmatprep.subr.bf16.mxu0 %v1967
  %2737 = vmatpush1.bf16.msra.mxu0 %v1966
  %2738 = vmatprep.subr.bf16.mxu0 %v1963
  %2739 = vmatpush1.bf16.msra.mxu0 %v1962
  %2740 = vmatprep.subr.bf16.mxu0 %v1959
  %2741 = vmatpush1.bf16.msra.mxu0 %v1958
  %2742 = vmatprep.subr.bf16.mxu0 %v1955
  %2743 = vmatpush1.bf16.msra.mxu0 %v1954
  %2744 = vmatprep.subr.bf16.mxu0 %v1951
  %2745 = vmatpush1.bf16.msra.mxu0 %v1950
  %2746 = vmatprep.subr.bf16.mxu0 %v1947
  %2747 = vmatpush1.bf16.msra.mxu0 %v1946
  %2748 = vmatprep.subr.bf16.mxu0 %v2007
  %2749 = vmatpush2.bf16.msra.mxu0 %v2006
  %2750 = vmatprep.subr.bf16.mxu0 %v2003
  %2751 = vmatpush2.bf16.msra.mxu0 %v2002
  %2752 = vmatprep.subr.bf16.mxu0 %v1999
  %2753 = vmatpush2.bf16.msra.mxu0 %v1998
  %2754 = vmatprep.subr.bf16.mxu0 %v1995
  %2755 = vmatpush2.bf16.msra.mxu0 %v1994
  %2756 = vmatprep.subr.bf16.mxu0 %v1991
  %2757 = vmatpush2.bf16.msra.mxu0 %v1990
  %2758 = vmatprep.subr.bf16.mxu0 %v1987
  %2759 = vmatpush2.bf16.msra.mxu0 %v1986
  %2760 = vmatprep.subr.bf16.mxu0 %v1983
  %2761 = vmatpush2.bf16.msra.mxu0 %v1982
  %2762 = vmatprep.subr.bf16.mxu0 %v1979
  %2763 = vmatpush2.bf16.msra.mxu0 %v1978
  %2764 = vmatprep.mubr.bf16.mxu0 %v513
  %2765 = vmatmul.mubr.bf16.gmra.mxu0 %v499
  %v2766 = vpop.f32.mrf.mxu0
  %v2767 = vadd.f32 %v2726, %v2766
  %v2768 = vpop.f32.mrf.mxu0
  %v2769 = vadd.f32 %v2728, %v2768
  %v2770 = vpop.f32.mrf.mxu0
  %v2771 = vpop.f32.mrf.mxu0
  %2772 = vdwg.mxu0
  %2773 = vmatprep.subr.bf16.mxu0 %v2039
  %2774 = vmatpush1.bf16.msra.mxu0 %v2038
  %2775 = vmatprep.subr.bf16.mxu0 %v2035
  %2776 = vmatpush1.bf16.msra.mxu0 %v2034
  %2777 = vmatprep.subr.bf16.mxu0 %v2031
  %2778 = vmatpush1.bf16.msra.mxu0 %v2030
  %2779 = vmatprep.subr.bf16.mxu0 %v2027
  %2780 = vmatpush1.bf16.msra.mxu0 %v2026
  %2781 = vmatprep.subr.bf16.mxu0 %v2023
  %2782 = vmatpush1.bf16.msra.mxu0 %v2022
  %2783 = vmatprep.subr.bf16.mxu0 %v2019
  %2784 = vmatpush1.bf16.msra.mxu0 %v2018
  %2785 = vmatprep.subr.bf16.mxu0 %v2015
  %2786 = vmatpush1.bf16.msra.mxu0 %v2014
  %2787 = vmatprep.subr.bf16.mxu0 %v2011
  %2788 = vmatpush1.bf16.msra.mxu0 %v2010
  %2789 = vmatprep.subr.bf16.mxu0 %v2071
  %2790 = vmatpush2.bf16.msra.mxu0 %v2070
  %2791 = vmatprep.subr.bf16.mxu0 %v2067
  %2792 = vmatpush2.bf16.msra.mxu0 %v2066
  %2793 = vmatprep.subr.bf16.mxu0 %v2063
  %2794 = vmatpush2.bf16.msra.mxu0 %v2062
  %2795 = vmatprep.subr.bf16.mxu0 %v2059
  %2796 = vmatpush2.bf16.msra.mxu0 %v2058
  %2797 = vmatprep.subr.bf16.mxu0 %v2055
  %2798 = vmatpush2.bf16.msra.mxu0 %v2054
  %2799 = vmatprep.subr.bf16.mxu0 %v2051
  %2800 = vmatpush2.bf16.msra.mxu0 %v2050
  %2801 = vmatprep.subr.bf16.mxu0 %v2047
  %2802 = vmatpush2.bf16.msra.mxu0 %v2046
  %2803 = vmatprep.subr.bf16.mxu0 %v2043
  %2804 = vmatpush2.bf16.msra.mxu0 %v2042
  %2805 = vmatprep.mubr.bf16.mxu0 %v517
  %2806 = vmatmul.mubr.bf16.gmra.mxu0 %v515
  %v2807 = vpop.f32.mrf.mxu0
  %v2808 = vadd.f32 %v2767, %v2807
  %v2809 = vpop.f32.mrf.mxu0
  %v2810 = vadd.f32 %v2769, %v2809
  %v2811 = vpop.f32.mrf.mxu0
  %v2812 = vpop.f32.mrf.mxu0
  %2813 = vdwg.mxu0
  %2814 = vmatprep.subr.bf16.mxu0 %v2103
  %2815 = vmatpush1.bf16.msra.mxu0 %v2102
  %2816 = vmatprep.subr.bf16.mxu0 %v2099
  %2817 = vmatpush1.bf16.msra.mxu0 %v2098
  %2818 = vmatprep.subr.bf16.mxu0 %v2095
  %2819 = vmatpush1.bf16.msra.mxu0 %v2094
  %2820 = vmatprep.subr.bf16.mxu0 %v2091
  %2821 = vmatpush1.bf16.msra.mxu0 %v2090
  %2822 = vmatprep.subr.bf16.mxu0 %v2087
  %2823 = vmatpush1.bf16.msra.mxu0 %v2086
  %2824 = vmatprep.subr.bf16.mxu0 %v2083
  %2825 = vmatpush1.bf16.msra.mxu0 %v2082
  %2826 = vmatprep.subr.bf16.mxu0 %v2079
  %2827 = vmatpush1.bf16.msra.mxu0 %v2078
  %2828 = vmatprep.subr.bf16.mxu0 %v2075
  %2829 = vmatpush1.bf16.msra.mxu0 %v2074
  %2830 = vmatprep.subr.bf16.mxu0 %v2135
  %2831 = vmatpush2.bf16.msra.mxu0 %v2134
  %2832 = vmatprep.subr.bf16.mxu0 %v2131
  %2833 = vmatpush2.bf16.msra.mxu0 %v2130
  %2834 = vmatprep.subr.bf16.mxu0 %v2127
  %2835 = vmatpush2.bf16.msra.mxu0 %v2126
  %2836 = vmatprep.subr.bf16.mxu0 %v2123
  %2837 = vmatpush2.bf16.msra.mxu0 %v2122
  %2838 = vmatprep.subr.bf16.mxu0 %v2119
  %2839 = vmatpush2.bf16.msra.mxu0 %v2118
  %2840 = vmatprep.subr.bf16.mxu0 %v2115
  %2841 = vmatpush2.bf16.msra.mxu0 %v2114
  %2842 = vmatprep.subr.bf16.mxu0 %v2111
  %2843 = vmatpush2.bf16.msra.mxu0 %v2110
  %2844 = vmatprep.subr.bf16.mxu0 %v2107
  %2845 = vmatpush2.bf16.msra.mxu0 %v2106
  %2846 = vmatprep.mubr.bf16.mxu0 %v554
  %2847 = vmatmul.mubr.bf16.gmra.mxu0 %v540
  %v2848 = vpop.f32.mrf.mxu0
  %v2849 = vadd.f32 %v2808, %v2848
  %v2850 = vpop.f32.mrf.mxu0
  %v2851 = vadd.f32 %v2810, %v2850
  %v2852 = vpop.f32.mrf.mxu0
  %v2853 = vpop.f32.mrf.mxu0
  %2854 = vdwg.mxu0
  %2855 = vmatprep.subr.bf16.mxu0 %v2167
  %2856 = vmatpush1.bf16.msra.mxu0 %v2166
  %2857 = vmatprep.subr.bf16.mxu0 %v2163
  %2858 = vmatpush1.bf16.msra.mxu0 %v2162
  %2859 = vmatprep.subr.bf16.mxu0 %v2159
  %2860 = vmatpush1.bf16.msra.mxu0 %v2158
  %2861 = vmatprep.subr.bf16.mxu0 %v2155
  %2862 = vmatpush1.bf16.msra.mxu0 %v2154
  %2863 = vmatprep.subr.bf16.mxu0 %v2151
  %2864 = vmatpush1.bf16.msra.mxu0 %v2150
  %2865 = vmatprep.subr.bf16.mxu0 %v2147
  %2866 = vmatpush1.bf16.msra.mxu0 %v2146
  %2867 = vmatprep.subr.bf16.mxu0 %v2143
  %2868 = vmatpush1.bf16.msra.mxu0 %v2142
  %2869 = vmatprep.subr.bf16.mxu0 %v2139
  %2870 = vmatpush1.bf16.msra.mxu0 %v2138
  %2871 = vmatprep.subr.bf16.mxu0 %v2199
  %2872 = vmatpush2.bf16.msra.mxu0 %v2198
  %2873 = vmatprep.subr.bf16.mxu0 %v2195
  %2874 = vmatpush2.bf16.msra.mxu0 %v2194
  %2875 = vmatprep.subr.bf16.mxu0 %v2191
  %2876 = vmatpush2.bf16.msra.mxu0 %v2190
  %2877 = vmatprep.subr.bf16.mxu0 %v2187
  %2878 = vmatpush2.bf16.msra.mxu0 %v2186
  %2879 = vmatprep.subr.bf16.mxu0 %v2183
  %2880 = vmatpush2.bf16.msra.mxu0 %v2182
  %2881 = vmatprep.subr.bf16.mxu0 %v2179
  %2882 = vmatpush2.bf16.msra.mxu0 %v2178
  %2883 = vmatprep.subr.bf16.mxu0 %v2175
  %2884 = vmatpush2.bf16.msra.mxu0 %v2174
  %2885 = vmatprep.subr.bf16.mxu0 %v2171
  %2886 = vmatpush2.bf16.msra.mxu0 %v2170
  %2887 = vmatprep.mubr.bf16.mxu0 %v556
  %2888 = vmatmul.mubr.bf16.gmra.mxu0 %v555
  %v2889 = vpop.f32.mrf.mxu0
  %v2890 = vadd.f32 %v2849, %v2889
  %v2891 = vpop.f32.mrf.mxu0
  %v2892 = vadd.f32 %v2851, %v2891
  %v2893 = vpop.f32.mrf.mxu0
  %v2894 = vpop.f32.mrf.mxu0
  %2895 = vdwg.mxu0
  %2896 = vmatprep.subr.bf16.mxu0 %v2231
  %2897 = vmatpush1.bf16.msra.mxu0 %v2230
  %2898 = vmatprep.subr.bf16.mxu0 %v2227
  %2899 = vmatpush1.bf16.msra.mxu0 %v2226
  %2900 = vmatprep.subr.bf16.mxu0 %v2223
  %2901 = vmatpush1.bf16.msra.mxu0 %v2222
  %2902 = vmatprep.subr.bf16.mxu0 %v2219
  %2903 = vmatpush1.bf16.msra.mxu0 %v2218
  %2904 = vmatprep.subr.bf16.mxu0 %v2215
  %2905 = vmatpush1.bf16.msra.mxu0 %v2214
  %2906 = vmatprep.subr.bf16.mxu0 %v2211
  %2907 = vmatpush1.bf16.msra.mxu0 %v2210
  %2908 = vmatprep.subr.bf16.mxu0 %v2207
  %2909 = vmatpush1.bf16.msra.mxu0 %v2206
  %2910 = vmatprep.subr.bf16.mxu0 %v2203
  %2911 = vmatpush1.bf16.msra.mxu0 %v2202
  %2912 = vmatprep.subr.bf16.mxu0 0
  %2913 = vmatpush2.bf16.msra.mxu0 0
  %2914 = vmatprep.subr.bf16.mxu0 0
  %2915 = vmatpush2.bf16.msra.mxu0 0
  %2916 = vmatprep.subr.bf16.mxu0 0
  %2917 = vmatpush2.bf16.msra.mxu0 0
  %2918 = vmatprep.subr.bf16.mxu0 0
  %2919 = vmatpush2.bf16.msra.mxu0 0
  %2920 = vmatprep.subr.bf16.mxu0 0
  %2921 = vmatpush2.bf16.msra.mxu0 0
  %2922 = vmatprep.subr.bf16.mxu0 0
  %2923 = vmatpush2.bf16.msra.mxu0 0
  %2924 = vmatprep.subr.bf16.mxu0 0
  %2925 = vmatpush2.bf16.msra.mxu0 0
  %2926 = vmatprep.subr.bf16.mxu0 0
  %2927 = vmatpush2.bf16.msra.mxu0 0
  %2928 = vmatprep.mubr.bf16.mxu0 0
  %2929 = vmatmul.mubr.bf16.gmra.mxu0 %v547
  %v2930 = vpop.f32.mrf.mxu0
  %v2931 = vadd.f32 %v2890, %v2930
  %v2932 = vpop.f32.mrf.mxu0
  %v2933 = vadd.f32 %v2892, %v2932
  %v2934 = vpop.f32.mrf.mxu0
  %v2935 = vpop.f32.mrf.mxu0
  %2936 = vdwg.mxu0
  %2937 = vmatprep.subr.bf16.mxu0 %v1849
  %2938 = vmatpush1.bf16.msra.mxu0 %v1848
  %2939 = vmatprep.subr.bf16.mxu0 %v1845
  %2940 = vmatpush1.bf16.msra.mxu0 %v1844
  %2941 = vmatprep.subr.bf16.mxu0 %v1841
  %2942 = vmatpush1.bf16.msra.mxu0 %v1840
  %2943 = vmatprep.subr.bf16.mxu0 %v1837
  %2944 = vmatpush1.bf16.msra.mxu0 %v1836
  %2945 = vmatprep.subr.bf16.mxu0 %v1833
  %2946 = vmatpush1.bf16.msra.mxu0 %v1832
  %2947 = vmatprep.subr.bf16.mxu0 %v1829
  %2948 = vmatpush1.bf16.msra.mxu0 %v1828
  %2949 = vmatprep.subr.bf16.mxu0 %v1825
  %2950 = vmatpush1.bf16.msra.mxu0 %v1824
  %2951 = vmatprep.subr.bf16.mxu0 %v1821
  %2952 = vmatpush1.bf16.msra.mxu0 %v1820
  %2953 = vmatprep.subr.bf16.mxu0 %v1881
  %2954 = vmatpush2.bf16.msra.mxu0 %v1880
  %2955 = vmatprep.subr.bf16.mxu0 %v1877
  %2956 = vmatpush2.bf16.msra.mxu0 %v1876
  %2957 = vmatprep.subr.bf16.mxu0 %v1873
  %2958 = vmatpush2.bf16.msra.mxu0 %v1872
  %2959 = vmatprep.subr.bf16.mxu0 %v1869
  %2960 = vmatpush2.bf16.msra.mxu0 %v1868
  %2961 = vmatprep.subr.bf16.mxu0 %v1865
  %2962 = vmatpush2.bf16.msra.mxu0 %v1864
  %2963 = vmatprep.subr.bf16.mxu0 %v1861
  %2964 = vmatpush2.bf16.msra.mxu0 %v1860
  %2965 = vmatprep.subr.bf16.mxu0 %v1857
  %2966 = vmatpush2.bf16.msra.mxu0 %v1856
  %2967 = vmatprep.subr.bf16.mxu0 %v1853
  %2968 = vmatpush2.bf16.msra.mxu0 %v1852
  %2969 = vmatprep.mubr.bf16.mxu0 %v506
  %2970 = vmatmul.mubr.bf16.gmra.mxu0 %v492
  %v2971 = vpop.f32.mrf.mxu0
  %v2972 = vadd.f32 %v458, %v2971
  %v2973 = vpop.f32.mrf.mxu0
  %v2974 = vadd.f32 %v462, %v2973
  %v2975 = vpop.f32.mrf.mxu0
  %v2976 = vpop.f32.mrf.mxu0
  %2977 = vdwg.mxu0
  %2978 = vmatprep.subr.bf16.mxu0 %v1913
  %2979 = vmatpush1.bf16.msra.mxu0 %v1912
  %2980 = vmatprep.subr.bf16.mxu0 %v1909
  %2981 = vmatpush1.bf16.msra.mxu0 %v1908
  %2982 = vmatprep.subr.bf16.mxu0 %v1905
  %2983 = vmatpush1.bf16.msra.mxu0 %v1904
  %2984 = vmatprep.subr.bf16.mxu0 %v1901
  %2985 = vmatpush1.bf16.msra.mxu0 %v1900
  %2986 = vmatprep.subr.bf16.mxu0 %v1897
  %2987 = vmatpush1.bf16.msra.mxu0 %v1896
  %2988 = vmatprep.subr.bf16.mxu0 %v1893
  %2989 = vmatpush1.bf16.msra.mxu0 %v1892
  %2990 = vmatprep.subr.bf16.mxu0 %v1889
  %2991 = vmatpush1.bf16.msra.mxu0 %v1888
  %2992 = vmatprep.subr.bf16.mxu0 %v1885
  %2993 = vmatpush1.bf16.msra.mxu0 %v1884
  %2994 = vmatprep.subr.bf16.mxu0 %v1945
  %2995 = vmatpush2.bf16.msra.mxu0 %v1944
  %2996 = vmatprep.subr.bf16.mxu0 %v1941
  %2997 = vmatpush2.bf16.msra.mxu0 %v1940
  %2998 = vmatprep.subr.bf16.mxu0 %v1937
  %2999 = vmatpush2.bf16.msra.mxu0 %v1936
  %3000 = vmatprep.subr.bf16.mxu0 %v1933
  %3001 = vmatpush2.bf16.msra.mxu0 %v1932
  %3002 = vmatprep.subr.bf16.mxu0 %v1929
  %3003 = vmatpush2.bf16.msra.mxu0 %v1928
  %3004 = vmatprep.subr.bf16.mxu0 %v1925
  %3005 = vmatpush2.bf16.msra.mxu0 %v1924
  %3006 = vmatprep.subr.bf16.mxu0 %v1921
  %3007 = vmatpush2.bf16.msra.mxu0 %v1920
  %3008 = vmatprep.subr.bf16.mxu0 %v1917
  %3009 = vmatpush2.bf16.msra.mxu0 %v1916
  %3010 = vmatprep.mubr.bf16.mxu0 %v516
  %3011 = vmatmul.mubr.bf16.gmra.mxu0 %v514
  %v3012 = vpop.f32.mrf.mxu0
  %v3013 = vadd.f32 %v2972, %v3012
  %v3014 = vpop.f32.mrf.mxu0
  %v3015 = vadd.f32 %v2974, %v3014
  %v3016 = vpop.f32.mrf.mxu0
  %v3017 = vpop.f32.mrf.mxu0
  %3018 = vdwg.mxu0
  %3019 = vmatprep.subr.bf16.mxu0 %v1977
  %3020 = vmatpush1.bf16.msra.mxu0 %v1976
  %3021 = vmatprep.subr.bf16.mxu0 %v1973
  %3022 = vmatpush1.bf16.msra.mxu0 %v1972
  %3023 = vmatprep.subr.bf16.mxu0 %v1969
  %3024 = vmatpush1.bf16.msra.mxu0 %v1968
  %3025 = vmatprep.subr.bf16.mxu0 %v1965
  %3026 = vmatpush1.bf16.msra.mxu0 %v1964
  %3027 = vmatprep.subr.bf16.mxu0 %v1961
  %3028 = vmatpush1.bf16.msra.mxu0 %v1960
  %3029 = vmatprep.subr.bf16.mxu0 %v1957
  %3030 = vmatpush1.bf16.msra.mxu0 %v1956
  %3031 = vmatprep.subr.bf16.mxu0 %v1953
  %3032 = vmatpush1.bf16.msra.mxu0 %v1952
  %3033 = vmatprep.subr.bf16.mxu0 %v1949
  %3034 = vmatpush1.bf16.msra.mxu0 %v1948
  %3035 = vmatprep.subr.bf16.mxu0 %v2009
  %3036 = vmatpush2.bf16.msra.mxu0 %v2008
  %3037 = vmatprep.subr.bf16.mxu0 %v2005
  %3038 = vmatpush2.bf16.msra.mxu0 %v2004
  %3039 = vmatprep.subr.bf16.mxu0 %v2001
  %3040 = vmatpush2.bf16.msra.mxu0 %v2000
  %3041 = vmatprep.subr.bf16.mxu0 %v1997
  %3042 = vmatpush2.bf16.msra.mxu0 %v1996
  %3043 = vmatprep.subr.bf16.mxu0 %v1993
  %3044 = vmatpush2.bf16.msra.mxu0 %v1992
  %3045 = vmatprep.subr.bf16.mxu0 %v1989
  %3046 = vmatpush2.bf16.msra.mxu0 %v1988
  %3047 = vmatprep.subr.bf16.mxu0 %v1985
  %3048 = vmatpush2.bf16.msra.mxu0 %v1984
  %3049 = vmatprep.subr.bf16.mxu0 %v1981
  %3050 = vmatpush2.bf16.msra.mxu0 %v1980
  %3051 = vmatprep.mubr.bf16.mxu0 %v513
  %3052 = vmatmul.mubr.bf16.gmra.mxu0 %v499
  %v3053 = vpop.f32.mrf.mxu0
  %v3054 = vadd.f32 %v3013, %v3053
  %v3055 = vpop.f32.mrf.mxu0
  %v3056 = vadd.f32 %v3015, %v3055
  %v3057 = vpop.f32.mrf.mxu0
  %v3058 = vpop.f32.mrf.mxu0
  %3059 = vdwg.mxu0
  %3060 = vmatprep.subr.bf16.mxu0 %v2041
  %3061 = vmatpush1.bf16.msra.mxu0 %v2040
  %3062 = vmatprep.subr.bf16.mxu0 %v2037
  %3063 = vmatpush1.bf16.msra.mxu0 %v2036
  %3064 = vmatprep.subr.bf16.mxu0 %v2033
  %3065 = vmatpush1.bf16.msra.mxu0 %v2032
  %3066 = vmatprep.subr.bf16.mxu0 %v2029
  %3067 = vmatpush1.bf16.msra.mxu0 %v2028
  %3068 = vmatprep.subr.bf16.mxu0 %v2025
  %3069 = vmatpush1.bf16.msra.mxu0 %v2024
  %3070 = vmatprep.subr.bf16.mxu0 %v2021
  %3071 = vmatpush1.bf16.msra.mxu0 %v2020
  %3072 = vmatprep.subr.bf16.mxu0 %v2017
  %3073 = vmatpush1.bf16.msra.mxu0 %v2016
  %3074 = vmatprep.subr.bf16.mxu0 %v2013
  %3075 = vmatpush1.bf16.msra.mxu0 %v2012
  %3076 = vmatprep.subr.bf16.mxu0 %v2073
  %3077 = vmatpush2.bf16.msra.mxu0 %v2072
  %3078 = vmatprep.subr.bf16.mxu0 %v2069
  %3079 = vmatpush2.bf16.msra.mxu0 %v2068
  %3080 = vmatprep.subr.bf16.mxu0 %v2065
  %3081 = vmatpush2.bf16.msra.mxu0 %v2064
  %3082 = vmatprep.subr.bf16.mxu0 %v2061
  %3083 = vmatpush2.bf16.msra.mxu0 %v2060
  %3084 = vmatprep.subr.bf16.mxu0 %v2057
  %3085 = vmatpush2.bf16.msra.mxu0 %v2056
  %3086 = vmatprep.subr.bf16.mxu0 %v2053
  %3087 = vmatpush2.bf16.msra.mxu0 %v2052
  %3088 = vmatprep.subr.bf16.mxu0 %v2049
  %3089 = vmatpush2.bf16.msra.mxu0 %v2048
  %3090 = vmatprep.subr.bf16.mxu0 %v2045
  %3091 = vmatpush2.bf16.msra.mxu0 %v2044
  %3092 = vmatprep.mubr.bf16.mxu0 %v517
  %3093 = vmatmul.mubr.bf16.gmra.mxu0 %v515
  %v3094 = vpop.f32.mrf.mxu0
  %v3095 = vadd.f32 %v3054, %v3094
  %v3096 = vpop.f32.mrf.mxu0
  %v3097 = vadd.f32 %v3056, %v3096
  %v3098 = vpop.f32.mrf.mxu0
  %v3099 = vpop.f32.mrf.mxu0
  %3100 = vdwg.mxu0
  %3101 = vmatprep.subr.bf16.mxu0 %v2105
  %3102 = vmatpush1.bf16.msra.mxu0 %v2104
  %3103 = vmatprep.subr.bf16.mxu0 %v2101
  %3104 = vmatpush1.bf16.msra.mxu0 %v2100
  %3105 = vmatprep.subr.bf16.mxu0 %v2097
  %3106 = vmatpush1.bf16.msra.mxu0 %v2096
  %3107 = vmatprep.subr.bf16.mxu0 %v2093
  %3108 = vmatpush1.bf16.msra.mxu0 %v2092
  %3109 = vmatprep.subr.bf16.mxu0 %v2089
  %3110 = vmatpush1.bf16.msra.mxu0 %v2088
  %3111 = vmatprep.subr.bf16.mxu0 %v2085
  %3112 = vmatpush1.bf16.msra.mxu0 %v2084
  %3113 = vmatprep.subr.bf16.mxu0 %v2081
  %3114 = vmatpush1.bf16.msra.mxu0 %v2080
  %3115 = vmatprep.subr.bf16.mxu0 %v2077
  %3116 = vmatpush1.bf16.msra.mxu0 %v2076
  %3117 = vmatprep.subr.bf16.mxu0 %v2137
  %3118 = vmatpush2.bf16.msra.mxu0 %v2136
  %3119 = vmatprep.subr.bf16.mxu0 %v2133
  %3120 = vmatpush2.bf16.msra.mxu0 %v2132
  %3121 = vmatprep.subr.bf16.mxu0 %v2129
  %3122 = vmatpush2.bf16.msra.mxu0 %v2128
  %3123 = vmatprep.subr.bf16.mxu0 %v2125
  %3124 = vmatpush2.bf16.msra.mxu0 %v2124
  %3125 = vmatprep.subr.bf16.mxu0 %v2121
  %3126 = vmatpush2.bf16.msra.mxu0 %v2120
  %3127 = vmatprep.subr.bf16.mxu0 %v2117
  %3128 = vmatpush2.bf16.msra.mxu0 %v2116
  %3129 = vmatprep.subr.bf16.mxu0 %v2113
  %3130 = vmatpush2.bf16.msra.mxu0 %v2112
  %3131 = vmatprep.subr.bf16.mxu0 %v2109
  %3132 = vmatpush2.bf16.msra.mxu0 %v2108
  %3133 = vmatprep.mubr.bf16.mxu0 %v554
  %3134 = vmatmul.mubr.bf16.gmra.mxu0 %v540
  %v3135 = vpop.f32.mrf.mxu0
  %v3136 = vadd.f32 %v3095, %v3135
  %v3137 = vpop.f32.mrf.mxu0
  %v3138 = vadd.f32 %v3097, %v3137
  %v3139 = vpop.f32.mrf.mxu0
  %v3140 = vpop.f32.mrf.mxu0
  %3141 = vdwg.mxu0
  %3142 = vmatprep.subr.bf16.mxu0 %v2169
  %3143 = vmatpush1.bf16.msra.mxu0 %v2168
  %3144 = vmatprep.subr.bf16.mxu0 %v2165
  %3145 = vmatpush1.bf16.msra.mxu0 %v2164
  %3146 = vmatprep.subr.bf16.mxu0 %v2161
  %3147 = vmatpush1.bf16.msra.mxu0 %v2160
  %3148 = vmatprep.subr.bf16.mxu0 %v2157
  %3149 = vmatpush1.bf16.msra.mxu0 %v2156
  %3150 = vmatprep.subr.bf16.mxu0 %v2153
  %3151 = vmatpush1.bf16.msra.mxu0 %v2152
  %3152 = vmatprep.subr.bf16.mxu0 %v2149
  %3153 = vmatpush1.bf16.msra.mxu0 %v2148
  %3154 = vmatprep.subr.bf16.mxu0 %v2145
  %3155 = vmatpush1.bf16.msra.mxu0 %v2144
  %3156 = vmatprep.subr.bf16.mxu0 %v2141
  %3157 = vmatpush1.bf16.msra.mxu0 %v2140
  %3158 = vmatprep.subr.bf16.mxu0 %v2201
  %3159 = vmatpush2.bf16.msra.mxu0 %v2200
  %3160 = vmatprep.subr.bf16.mxu0 %v2197
  %3161 = vmatpush2.bf16.msra.mxu0 %v2196
  %3162 = vmatprep.subr.bf16.mxu0 %v2193
  %3163 = vmatpush2.bf16.msra.mxu0 %v2192
  %3164 = vmatprep.subr.bf16.mxu0 %v2189
  %3165 = vmatpush2.bf16.msra.mxu0 %v2188
  %3166 = vmatprep.subr.bf16.mxu0 %v2185
  %3167 = vmatpush2.bf16.msra.mxu0 %v2184
  %3168 = vmatprep.subr.bf16.mxu0 %v2181
  %3169 = vmatpush2.bf16.msra.mxu0 %v2180
  %3170 = vmatprep.subr.bf16.mxu0 %v2177
  %3171 = vmatpush2.bf16.msra.mxu0 %v2176
  %3172 = vmatprep.subr.bf16.mxu0 %v2173
  %3173 = vmatpush2.bf16.msra.mxu0 %v2172
  %3174 = vmatprep.mubr.bf16.mxu0 %v556
  %3175 = vmatmul.mubr.bf16.gmra.mxu0 %v555
  %v3176 = vpop.f32.mrf.mxu0
  %v3177 = vadd.f32 %v3136, %v3176
  %v3178 = vpop.f32.mrf.mxu0
  %v3179 = vadd.f32 %v3138, %v3178
  %v3180 = vpop.f32.mrf.mxu0
  %v3181 = vpop.f32.mrf.mxu0
  %3182 = vdwg.mxu0
  %3183 = vmatprep.subr.bf16.mxu0 %v2233
  %3184 = vmatpush1.bf16.msra.mxu0 %v2232
  %3185 = vmatprep.subr.bf16.mxu0 %v2229
  %3186 = vmatpush1.bf16.msra.mxu0 %v2228
  %3187 = vmatprep.subr.bf16.mxu0 %v2225
  %3188 = vmatpush1.bf16.msra.mxu0 %v2224
  %3189 = vmatprep.subr.bf16.mxu0 %v2221
  %3190 = vmatpush1.bf16.msra.mxu0 %v2220
  %3191 = vmatprep.subr.bf16.mxu0 %v2217
  %3192 = vmatpush1.bf16.msra.mxu0 %v2216
  %3193 = vmatprep.subr.bf16.mxu0 %v2213
  %3194 = vmatpush1.bf16.msra.mxu0 %v2212
  %3195 = vmatprep.subr.bf16.mxu0 %v2209
  %3196 = vmatpush1.bf16.msra.mxu0 %v2208
  %3197 = vmatprep.subr.bf16.mxu0 %v2205
  %3198 = vmatpush1.bf16.msra.mxu0 %v2204
  %3199 = vmatprep.subr.bf16.mxu0 0
  %3200 = vmatpush2.bf16.msra.mxu0 0
  %3201 = vmatprep.subr.bf16.mxu0 0
  %3202 = vmatpush2.bf16.msra.mxu0 0
  %3203 = vmatprep.subr.bf16.mxu0 0
  %3204 = vmatpush2.bf16.msra.mxu0 0
  %3205 = vmatprep.subr.bf16.mxu0 0
  %3206 = vmatpush2.bf16.msra.mxu0 0
  %3207 = vmatprep.subr.bf16.mxu0 0
  %3208 = vmatpush2.bf16.msra.mxu0 0
  %3209 = vmatprep.subr.bf16.mxu0 0
  %3210 = vmatpush2.bf16.msra.mxu0 0
  %3211 = vmatprep.subr.bf16.mxu0 0
  %3212 = vmatpush2.bf16.msra.mxu0 0
  %3213 = vmatprep.subr.bf16.mxu0 0
  %3214 = vmatpush2.bf16.msra.mxu0 0
  %3215 = vmatprep.mubr.bf16.mxu0 0
  %3216 = vmatmul.mubr.bf16.gmra.mxu0 %v547
  %v3217 = vpop.f32.mrf.mxu0
  %v3218 = vadd.f32 %v3177, %v3217
  %v3219 = vpop.f32.mrf.mxu0
  %v3220 = vadd.f32 %v3179, %v3219
  %v3221 = vpop.f32.mrf.mxu0
  %v3222 = vpop.f32.mrf.mxu0
  %3223 = vdwg.mxu0
  %v3224 = vld [vmem:[%s3] sm:$0xff]
  %v3225 = vld [vmem:[%s3 + $0x8] sm:$0xff]
  %v3226 = vld [vmem:[%s3 + $0x10] sm:$0xff]
  %v3227 = vld [vmem:[%s3 + $0x18] sm:$0xff]
  %v3228 = vld [vmem:[%s3 + $0x20] sm:$0xff]
  %v3229 = vld [vmem:[%s3 + $0x28] sm:$0xff]
  %v3230 = vld [vmem:[%s3 + $0x30] sm:$0xff]
  %v3231 = vld [vmem:[%s3 + $0x38] sm:$0xff]
  %v3232 = vld [vmem:[%s3 + $0x40] sm:$0xff]
  %v3233 = vld [vmem:[%s3 + $0x48] sm:$0xff]
  %v3234 = vld [vmem:[%s3 + $0x50] sm:$0xff]
  %v3235 = vld [vmem:[%s3 + $0x58] sm:$0xff]
  %v3236 = vld [vmem:[%s3 + $0x60] sm:$0xff]
  %v3237 = vld [vmem:[%s3 + $0x68] sm:$0xff]
  %v3238 = vld [vmem:[%s3 + $0x70] sm:$0xff]
  %v3239 = vld [vmem:[%s3 + $0x78] sm:$0xff]
  %v3240 = vld [vmem:[%s3 + $0x80] sm:$0xff]
  %v3241 = vld [vmem:[%s3 + $0x88] sm:$0xff]
  %v3242 = vld [vmem:[%s3 + $0x90] sm:$0xff]
  %v3243 = vld [vmem:[%s3 + $0x98] sm:$0xff]
  %v3244 = vld [vmem:[%s3 + $0xa0] sm:$0xff]
  %v3245 = vld [vmem:[%s3 + $0xa8] sm:$0xff]
  %v3246 = vld [vmem:[%s3 + $0xb0] sm:$0xff]
  %v3247 = vld [vmem:[%s3 + $0xb8] sm:$0xff]
  %v3248 = vld [vmem:[%s3 + $0xc0] sm:$0xff]
  %v3249 = vld [vmem:[%s3 + $0xc8] sm:$0xff]
  %v3250 = vld [vmem:[%s3 + $0xd0] sm:$0xff]
  %v3251 = vld [vmem:[%s3 + $0xd8] sm:$0xff]
  %v3252 = vld [vmem:[%s3 + $0xe0] sm:$0xff]
  %v3253 = vld [vmem:[%s3 + $0xe8] sm:$0xff]
  %v3254 = vld [vmem:[%s3 + $0xf0] sm:$0xff]
  %v3255 = vld [vmem:[%s3 + $0xf8] sm:$0xff]
  %v3288 = vunpack.c.l.b16 %v3224
  %v3289 = vunpack.c.h.b16 %v3224
  %v3290 = vunpack.c.l.b16 %v3225
  %v3291 = vunpack.c.h.b16 %v3225
  %v3292 = vunpack.c.l.b16 %v3226
  %v3293 = vunpack.c.h.b16 %v3226
  %v3294 = vunpack.c.l.b16 %v3227
  %v3295 = vunpack.c.h.b16 %v3227
  %v3296 = vunpack.c.l.b16 %v3228
  %v3297 = vunpack.c.h.b16 %v3228
  %v3298 = vunpack.c.l.b16 %v3229
  %v3299 = vunpack.c.h.b16 %v3229
  %v3300 = vunpack.c.l.b16 %v3230
  %v3301 = vunpack.c.h.b16 %v3230
  %v3302 = vunpack.c.l.b16 %v3231
  %v3303 = vunpack.c.h.b16 %v3231
  %v3304 = vunpack.c.l.b16 %v3232
  %v3305 = vunpack.c.h.b16 %v3232
  %v3306 = vunpack.c.l.b16 %v3233
  %v3307 = vunpack.c.h.b16 %v3233
  %v3308 = vunpack.c.l.b16 %v3234
  %v3309 = vunpack.c.h.b16 %v3234
  %v3310 = vunpack.c.l.b16 %v3235
  %v3311 = vunpack.c.h.b16 %v3235
  %v3312 = vunpack.c.l.b16 %v3236
  %v3313 = vunpack.c.h.b16 %v3236
  %v3314 = vunpack.c.l.b16 %v3237
  %v3315 = vunpack.c.h.b16 %v3237
  %v3316 = vunpack.c.l.b16 %v3238
  %v3317 = vunpack.c.h.b16 %v3238
  %v3318 = vunpack.c.l.b16 %v3239
  %v3319 = vunpack.c.h.b16 %v3239
  %v3320 = vunpack.c.l.b16 %v3240
  %v3321 = vunpack.c.h.b16 %v3240
  %v3322 = vunpack.c.l.b16 %v3241
  %v3323 = vunpack.c.h.b16 %v3241
  %v3324 = vunpack.c.l.b16 %v3242
  %v3325 = vunpack.c.h.b16 %v3242
  %v3326 = vunpack.c.l.b16 %v3243
  %v3327 = vunpack.c.h.b16 %v3243
  %v3328 = vunpack.c.l.b16 %v3244
  %v3329 = vunpack.c.h.b16 %v3244
  %v3330 = vunpack.c.l.b16 %v3245
  %v3331 = vunpack.c.h.b16 %v3245
  %v3332 = vunpack.c.l.b16 %v3246
  %v3333 = vunpack.c.h.b16 %v3246
  %v3334 = vunpack.c.l.b16 %v3247
  %v3335 = vunpack.c.h.b16 %v3247
  %v3336 = vunpack.c.l.b16 %v3248
  %v3337 = vunpack.c.h.b16 %v3248
  %v3338 = vunpack.c.l.b16 %v3249
  %v3339 = vunpack.c.h.b16 %v3249
  %v3340 = vunpack.c.l.b16 %v3250
  %v3341 = vunpack.c.h.b16 %v3250
  %v3342 = vunpack.c.l.b16 %v3251
  %v3343 = vunpack.c.h.b16 %v3251
  %v3344 = vunpack.c.l.b16 %v3252
  %v3345 = vunpack.c.h.b16 %v3252
  %v3346 = vunpack.c.l.b16 %v3253
  %v3347 = vunpack.c.h.b16 %v3253
  %v3348 = vunpack.c.l.b16 %v3254
  %v3349 = vunpack.c.h.b16 %v3254
  %v3350 = vunpack.c.l.b16 %v3255
  %v3351 = vunpack.c.h.b16 %v3255
  %v3352 = vpack.c.b16 %v3292, %v3288
  %v3353 = vpack.c.b16 %v3293, %v3289
  %v3354 = vpack.c.b16 %v3294, %v3290
  %v3355 = vpack.c.b16 %v3295, %v3291
  %v3356 = vpack.c.b16 %v3300, %v3296
  %v3357 = vpack.c.b16 %v3301, %v3297
  %v3358 = vpack.c.b16 %v3302, %v3298
  %v3359 = vpack.c.b16 %v3303, %v3299
  %v3360 = vpack.c.b16 %v3308, %v3304
  %v3361 = vpack.c.b16 %v3309, %v3305
  %v3362 = vpack.c.b16 %v3310, %v3306
  %v3363 = vpack.c.b16 %v3311, %v3307
  %v3364 = vpack.c.b16 %v3316, %v3312
  %v3365 = vpack.c.b16 %v3317, %v3313
  %v3366 = vpack.c.b16 %v3318, %v3314
  %v3367 = vpack.c.b16 %v3319, %v3315
  %v3368 = vpack.c.b16 %v3324, %v3320
  %v3369 = vpack.c.b16 %v3325, %v3321
  %v3370 = vpack.c.b16 %v3326, %v3322
  %v3371 = vpack.c.b16 %v3327, %v3323
  %v3372 = vpack.c.b16 %v3332, %v3328
  %v3373 = vpack.c.b16 %v3333, %v3329
  %v3374 = vpack.c.b16 %v3334, %v3330
  %v3375 = vpack.c.b16 %v3335, %v3331
  %v3376 = vpack.c.b16 %v3340, %v3336
  %v3377 = vpack.c.b16 %v3341, %v3337
  %v3378 = vpack.c.b16 %v3342, %v3338
  %v3379 = vpack.c.b16 %v3343, %v3339
  %v3380 = vpack.c.b16 %v3348, %v3344
  %v3381 = vpack.c.b16 %v3349, %v3345
  %v3382 = vpack.c.b16 %v3350, %v3346
  %v3383 = vpack.c.b16 %v3351, %v3347
  %3416 = vmatprep.subr.bf16.mxu0 %v3381
  %3417 = vmatpush1.bf16.msra.mxu0 %v3380
  %3418 = vmatprep.subr.bf16.mxu0 %v3377
  %3419 = vmatpush1.bf16.msra.mxu0 %v3376
  %3420 = vmatprep.subr.bf16.mxu0 %v3373
  %3421 = vmatpush1.bf16.msra.mxu0 %v3372
  %3422 = vmatprep.subr.bf16.mxu0 %v3369
  %3423 = vmatpush1.bf16.msra.mxu0 %v3368
  %3424 = vmatprep.subr.bf16.mxu0 %v3365
  %3425 = vmatpush1.bf16.msra.mxu0 %v3364
  %3426 = vmatprep.subr.bf16.mxu0 %v3361
  %3427 = vmatpush1.bf16.msra.mxu0 %v3360
  %3428 = vmatprep.subr.bf16.mxu0 %v3357
  %3429 = vmatpush1.bf16.msra.mxu0 %v3356
  %3430 = vmatprep.subr.bf16.mxu0 %v3353
  %3431 = vmatpush1.bf16.msra.mxu0 %v3352
  %3432 = vmatprep.subr.bf16.mxu0 0
  %3433 = vmatpush2.bf16.msra.mxu0 0
  %3434 = vmatprep.subr.bf16.mxu0 0
  %3435 = vmatpush2.bf16.msra.mxu0 0
  %3436 = vmatprep.subr.bf16.mxu0 0
  %3437 = vmatpush2.bf16.msra.mxu0 0
  %3438 = vmatprep.subr.bf16.mxu0 0
  %3439 = vmatpush2.bf16.msra.mxu0 0
  %3440 = vmatprep.subr.bf16.mxu0 0
  %3441 = vmatpush2.bf16.msra.mxu0 0
  %3442 = vmatprep.subr.bf16.mxu0 0
  %3443 = vmatpush2.bf16.msra.mxu0 0
  %3444 = vmatprep.subr.bf16.mxu0 0
  %3445 = vmatpush2.bf16.msra.mxu0 0
  %3446 = vmatprep.subr.bf16.mxu0 0
  %3447 = vmatpush2.bf16.msra.mxu0 0
  %3448 = vmatprep.mubr.bf16.mxu0 0
  %3449 = vmatmul.mubr.bf16.gmra.mxu0 0
  %v3450 = vpop.f32.mrf.mxu0
  %v3451 = vadd.f32 0.0, %v3450
  %v3452 = vpop.f32.mrf.mxu0
  %v3453 = vadd.f32 0.0, %v3452
  %v3454 = vpop.f32.mrf.mxu0
  %v3455 = vpop.f32.mrf.mxu0
  %3456 = vdwg.mxu0
  %3457 = vmatprep.subr.bf16.mxu0 %v3383
  %3458 = vmatpush1.bf16.msra.mxu0 %v3382
  %3459 = vmatprep.subr.bf16.mxu0 %v3379
  %3460 = vmatpush1.bf16.msra.mxu0 %v3378
  %3461 = vmatprep.subr.bf16.mxu0 %v3375
  %3462 = vmatpush1.bf16.msra.mxu0 %v3374
  %3463 = vmatprep.subr.bf16.mxu0 %v3371
  %3464 = vmatpush1.bf16.msra.mxu0 %v3370
  %3465 = vmatprep.subr.bf16.mxu0 %v3367
  %3466 = vmatpush1.bf16.msra.mxu0 %v3366
  %3467 = vmatprep.subr.bf16.mxu0 %v3363
  %3468 = vmatpush1.bf16.msra.mxu0 %v3362
  %3469 = vmatprep.subr.bf16.mxu0 %v3359
  %3470 = vmatpush1.bf16.msra.mxu0 %v3358
  %3471 = vmatprep.subr.bf16.mxu0 %v3355
  %3472 = vmatpush1.bf16.msra.mxu0 %v3354
  %3473 = vmatprep.subr.bf16.mxu0 0
  %3474 = vmatpush2.bf16.msra.mxu0 0
  %3475 = vmatprep.subr.bf16.mxu0 0
  %3476 = vmatpush2.bf16.msra.mxu0 0
  %3477 = vmatprep.subr.bf16.mxu0 0
  %3478 = vmatpush2.bf16.msra.mxu0 0
  %3479 = vmatprep.subr.bf16.mxu0 0
  %3480 = vmatpush2.bf16.msra.mxu0 0
  %3481 = vmatprep.subr.bf16.mxu0 0
  %3482 = vmatpush2.bf16.msra.mxu0 0
  %3483 = vmatprep.subr.bf16.mxu0 0
  %3484 = vmatpush2.bf16.msra.mxu0 0
  %3485 = vmatprep.subr.bf16.mxu0 0
  %3486 = vmatpush2.bf16.msra.mxu0 0
  %3487 = vmatprep.subr.bf16.mxu0 0
  %3488 = vmatpush2.bf16.msra.mxu0 0
  %3489 = vmatprep.mubr.bf16.mxu0 0
  %3490 = vmatmul.mubr.bf16.gmra.mxu0 0
  %v3491 = vpop.f32.mrf.mxu0
  %v3492 = vadd.f32 0.0, %v3491
  %v3493 = vpop.f32.mrf.mxu0
  %v3494 = vadd.f32 0.0, %v3493
  %v3495 = vpop.f32.mrf.mxu0
  %v3496 = vpop.f32.mrf.mxu0
  %3497 = vdwg.mxu0
  %v3498 = vadd.f32 %v2931, %v3451
  %v3499 = vadd.f32 %v2933, %v3453
  %v3500 = vadd.f32 %v3218, %v3492
  %v3501 = vadd.f32 %v3220, %v3494
  %v3502 = vld [vmem:[%s4] sm:$0xf]
  %v3504 = vlaneseq
  %v3505 = vshrl.u32 %v3504, 7
  %v3506 = vsub.s32 0, %v3505
  %v3507 = vrot.slane %v3502, %v3506
  %v3508 = vlaneseq
  %v3509 = vshrl.u32 %v3508, 7
  %v3510 = vsub.s32 1, %v3509
  %v3511 = vrot.slane %v3502, %v3510
  %v3512 = vlaneseq
  %v3513 = vshrl.u32 %v3512, 7
  %v3514 = vsub.s32 2, %v3513
  %v3515 = vrot.slane %v3502, %v3514
  %v3516 = vlaneseq
  %v3517 = vshrl.u32 %v3516, 7
  %v3518 = vsub.s32 3, %v3517
  %v3519 = vrot.slane %v3502, %v3518
  %v3524 = vadd.f32 %v3498, %v3507
  %v3525 = vadd.f32 %v3499, %v3511
  %v3526 = vadd.f32 %v3500, %v3515
  %v3527 = vadd.f32 %v3501, %v3519
  %v3528 = vxor.u32 %v3524, 2147483648
  %v3529 = vmul.f32 %v3528, 1.442695
  %v3530 = vpow.pop %v3529
  %v3531 = vadd.f32 %v3530, 1.0
  %v3532 = vrcp.pop %v3531
  %v3533 = vmul.f32 1.0, %v3532
  %v3534 = vxor.u32 %v3525, 2147483648
  %v3535 = vmul.f32 %v3534, 1.442695
  %v3536 = vpow.pop %v3535
  %v3537 = vadd.f32 %v3536, 1.0
  %v3538 = vrcp.pop %v3537
  %v3539 = vmul.f32 1.0, %v3538
  %v3540 = vtanh.pop %v3526
  %v3541 = vxor.u32 %v3527, 2147483648
  %v3542 = vmul.f32 %v3541, 1.442695
  %v3543 = vpow.pop %v3542
  %v3544 = vadd.f32 %v3543, 1.0
  %v3545 = vrcp.pop %v3544
  %v3546 = vmul.f32 1.0, %v3545
  %v3547 = vmul.f32 %v3539, 0.0
  %v3548 = vmul.f32 %v3533, %v3540
  %v3549 = vadd.f32 %v3547, %v3548
  %v3550 = vtanh.pop %v3549
  %v3551 = vmul.f32 %v3546, %v3550
  %v3552 = vpack.c.bf16 %v3551, %v3551
  %3553 = vmatprep.subr.bf16.mxu0 %v3381
  %3554 = vmatpush1.bf16.msra.mxu0 %v3380
  %3555 = vmatprep.subr.bf16.mxu0 %v3377
  %3556 = vmatpush1.bf16.msra.mxu0 %v3376
  %3557 = vmatprep.subr.bf16.mxu0 %v3373
  %3558 = vmatpush1.bf16.msra.mxu0 %v3372
  %3559 = vmatprep.subr.bf16.mxu0 %v3369
  %3560 = vmatpush1.bf16.msra.mxu0 %v3368
  %3561 = vmatprep.subr.bf16.mxu0 %v3365
  %3562 = vmatpush1.bf16.msra.mxu0 %v3364
  %3563 = vmatprep.subr.bf16.mxu0 %v3361
  %3564 = vmatpush1.bf16.msra.mxu0 %v3360
  %3565 = vmatprep.subr.bf16.mxu0 %v3357
  %3566 = vmatpush1.bf16.msra.mxu0 %v3356
  %3567 = vmatprep.subr.bf16.mxu0 %v3353
  %3568 = vmatpush1.bf16.msra.mxu0 %v3352
  %3569 = vmatprep.subr.bf16.mxu0 0
  %3570 = vmatpush2.bf16.msra.mxu0 0
  %3571 = vmatprep.subr.bf16.mxu0 0
  %3572 = vmatpush2.bf16.msra.mxu0 0
  %3573 = vmatprep.subr.bf16.mxu0 0
  %3574 = vmatpush2.bf16.msra.mxu0 0
  %3575 = vmatprep.subr.bf16.mxu0 0
  %3576 = vmatpush2.bf16.msra.mxu0 0
  %3577 = vmatprep.subr.bf16.mxu0 0
  %3578 = vmatpush2.bf16.msra.mxu0 0
  %3579 = vmatprep.subr.bf16.mxu0 0
  %3580 = vmatpush2.bf16.msra.mxu0 0
  %3581 = vmatprep.subr.bf16.mxu0 0
  %3582 = vmatpush2.bf16.msra.mxu0 0
  %3583 = vmatprep.subr.bf16.mxu0 0
  %3584 = vmatpush2.bf16.msra.mxu0 0
  %3585 = vmatprep.mubr.bf16.mxu0 0
  %3586 = vmatmul.mubr.bf16.gmra.mxu0 %v3552
  %v3587 = vpop.f32.mrf.mxu0
  %v3588 = vadd.f32 0.0, %v3587
  %v3589 = vpop.f32.mrf.mxu0
  %v3590 = vadd.f32 0.0, %v3589
  %v3591 = vpop.f32.mrf.mxu0
  %v3592 = vpop.f32.mrf.mxu0
  %3593 = vdwg.mxu0
  %3594 = vmatprep.subr.bf16.mxu0 %v3383
  %3595 = vmatpush1.bf16.msra.mxu0 %v3382
  %3596 = vmatprep.subr.bf16.mxu0 %v3379
  %3597 = vmatpush1.bf16.msra.mxu0 %v3378
  %3598 = vmatprep.subr.bf16.mxu0 %v3375
  %3599 = vmatpush1.bf16.msra.mxu0 %v3374
  %3600 = vmatprep.subr.bf16.mxu0 %v3371
  %3601 = vmatpush1.bf16.msra.mxu0 %v3370
  %3602 = vmatprep.subr.bf16.mxu0 %v3367
  %3603 = vmatpush1.bf16.msra.mxu0 %v3366
  %3604 = vmatprep.subr.bf16.mxu0 %v3363
  %3605 = vmatpush1.bf16.msra.mxu0 %v3362
  %3606 = vmatprep.subr.bf16.mxu0 %v3359
  %3607 = vmatpush1.bf16.msra.mxu0 %v3358
  %3608 = vmatprep.subr.bf16.mxu0 %v3355
  %3609 = vmatpush1.bf16.msra.mxu0 %v3354
  %3610 = vmatprep.subr.bf16.mxu0 0
  %3611 = vmatpush2.bf16.msra.mxu0 0
  %3612 = vmatprep.subr.bf16.mxu0 0
  %3613 = vmatpush2.bf16.msra.mxu0 0
  %3614 = vmatprep.subr.bf16.mxu0 0
  %3615 = vmatpush2.bf16.msra.mxu0 0
  %3616 = vmatprep.subr.bf16.mxu0 0
  %3617 = vmatpush2.bf16.msra.mxu0 0
  %3618 = vmatprep.subr.bf16.mxu0 0
  %3619 = vmatpush2.bf16.msra.mxu0 0
  %3620 = vmatprep.subr.bf16.mxu0 0
  %3621 = vmatpush2.bf16.msra.mxu0 0
  %3622 = vmatprep.subr.bf16.mxu0 0
  %3623 = vmatpush2.bf16.msra.mxu0 0
  %3624 = vmatprep.subr.bf16.mxu0 0
  %3625 = vmatpush2.bf16.msra.mxu0 0
  %3626 = vmatprep.mubr.bf16.mxu0 0
  %3627 = vmatmul.mubr.bf16.gmra.mxu0 %v3552
  %v3628 = vpop.f32.mrf.mxu0
  %v3629 = vadd.f32 0.0, %v3628
  %v3630 = vpop.f32.mrf.mxu0
  %v3631 = vadd.f32 0.0, %v3630
  %v3632 = vpop.f32.mrf.mxu0
  %v3633 = vpop.f32.mrf.mxu0
  %3634 = vdwg.mxu0
  %v3639 = vrot.slane %v3588, 7
  %v3640 = vrot.slane %v3590, 7
  %v3641 = vrot.slane %v3629, 7
  %v3642 = vrot.slane %v3631, 7
  %v3647 = vadd.f32 %v2931, %v3639
  %v3648 = vadd.f32 %v2933, %v3640
  %v3649 = vadd.f32 %v3218, %v3641
  %v3650 = vadd.f32 %v3220, %v3642
  %v3651 = vadd.f32 %v3647, %v3507
  %v3652 = vadd.f32 %v3648, %v3511
  %v3653 = vadd.f32 %v3649, %v3515
  %v3654 = vadd.f32 %v3650, %v3519
  %v3655 = vxor.u32 %v3651, 2147483648
  %v3656 = vmul.f32 %v3655, 1.442695
  %v3657 = vpow.pop %v3656
  %v3658 = vadd.f32 %v3657, 1.0
  %v3659 = vrcp.pop %v3658
  %v3660 = vmul.f32 1.0, %v3659
  %v3661 = vxor.u32 %v3652, 2147483648
  %v3662 = vmul.f32 %v3661, 1.442695
  %v3663 = vpow.pop %v3662
  %v3664 = vadd.f32 %v3663, 1.0
  %v3665 = vrcp.pop %v3664
  %v3666 = vmul.f32 1.0, %v3665
  %v3667 = vtanh.pop %v3653
  %v3668 = vxor.u32 %v3654, 2147483648
  %v3669 = vmul.f32 %v3668, 1.442695
  %v3670 = vpow.pop %v3669
  %v3671 = vadd.f32 %v3670, 1.0
  %v3672 = vrcp.pop %v3671
  %v3673 = vmul.f32 1.0, %v3672
  %v3675 = vrot.slane %v3549, 7
  %v3677 = vmul.f32 %v3666, %v3675
  %v3678 = vmul.f32 %v3660, %v3667
  %v3679 = vadd.f32 %v3677, %v3678
  %v3680 = vtanh.pop %v3679
  %v3681 = vmul.f32 %v3673, %v3680
  %vm3682 = vcmask 1040384
  %v3683 = vsel %vm3682, %v3551, %v3681
  %v3684 = vpack.c.bf16 %v3683, %v3683
  %v3685 = vld [vmem:[%s5] sm:$0xf]
  %v3686 = vld [vmem:[%s5 + $0x4] sm:$0xf]
  %v3687 = vld [vmem:[%s5 + $0x8] sm:$0xf]
  %v3688 = vld [vmem:[%s5 + $0xc] sm:$0xf]
  %v3689 = vld [vmem:[%s5 + $0x10] sm:$0xf]
  %v3690 = vld [vmem:[%s5 + $0x14] sm:$0xf]
  %v3691 = vld [vmem:[%s5 + $0x18] sm:$0xf]
  %v3692 = vld [vmem:[%s5 + $0x1c] sm:$0xf]
  %v3693 = vld [vmem:[%s5 + $0x20] sm:$0xf]
  %v3694 = vld [vmem:[%s5 + $0x24] sm:$0xf]
  %v3695 = vld [vmem:[%s5 + $0x28] sm:$0xf]
  %v3696 = vld [vmem:[%s5 + $0x2c] sm:$0xf]
  %v3697 = vld [vmem:[%s5 + $0x30] sm:$0xf]
  %v3698 = vld [vmem:[%s5 + $0x34] sm:$0xf]
  %v3699 = vld [vmem:[%s5 + $0x38] sm:$0xf]
  %v3700 = vld [vmem:[%s5 + $0x3c] sm:$0xf]
  %v3701 = vld [vmem:[%s6] sm:$0x1]
  %v3703 = vlaneseq
  %v3704 = vshrl.u32 %v3703, 7
  %v3705 = vsub.s32 0, %v3704
  %v3706 = vrot.slane %v3701, %v3705
  %v3724 = vunpack.c.l.b16 %v3685
  %v3725 = vunpack.c.l.b16 %v3686
  %v3726 = vunpack.c.l.b16 %v3687
  %v3727 = vunpack.c.l.b16 %v3688
  %v3728 = vunpack.c.l.b16 %v3689
  %v3729 = vunpack.c.l.b16 %v3690
  %v3730 = vunpack.c.l.b16 %v3691
  %v3731 = vunpack.c.l.b16 %v3692
  %v3732 = vunpack.c.l.b16 %v3693
  %v3733 = vunpack.c.l.b16 %v3694
  %v3734 = vunpack.c.l.b16 %v3695
  %v3735 = vunpack.c.l.b16 %v3696
  %v3736 = vunpack.c.l.b16 %v3697
  %v3737 = vunpack.c.l.b16 %v3698
  %v3738 = vunpack.c.l.b16 %v3699
  %v3739 = vunpack.c.l.b16 %v3700
  %v3740 = vpack.c.b16 %v3725, %v3724
  %v3741 = vpack.c.b16 %v3727, %v3726
  %v3742 = vpack.c.b16 %v3729, %v3728
  %v3743 = vpack.c.b16 %v3731, %v3730
  %v3744 = vpack.c.b16 %v3733, %v3732
  %v3745 = vpack.c.b16 %v3735, %v3734
  %v3746 = vpack.c.b16 %v3737, %v3736
  %v3747 = vpack.c.b16 %v3739, %v3738
  %3756 = vmatprep.subr.bf16.mxu0 0
  %3757 = vmatpush1.bf16.msra.mxu0 %v3747
  %3758 = vmatprep.subr.bf16.mxu0 0
  %3759 = vmatpush1.bf16.msra.mxu0 %v3746
  %3760 = vmatprep.subr.bf16.mxu0 0
  %3761 = vmatpush1.bf16.msra.mxu0 %v3745
  %3762 = vmatprep.subr.bf16.mxu0 0
  %3763 = vmatpush1.bf16.msra.mxu0 %v3744
  %3764 = vmatprep.subr.bf16.mxu0 0
  %3765 = vmatpush1.bf16.msra.mxu0 %v3743
  %3766 = vmatprep.subr.bf16.mxu0 0
  %3767 = vmatpush1.bf16.msra.mxu0 %v3742
  %3768 = vmatprep.subr.bf16.mxu0 0
  %3769 = vmatpush1.bf16.msra.mxu0 %v3741
  %3770 = vmatprep.subr.bf16.mxu0 0
  %3771 = vmatpush1.bf16.msra.mxu0 %v3740
  %3772 = vmatprep.subr.bf16.mxu0 0
  %3773 = vmatpush2.bf16.msra.mxu0 0
  %3774 = vmatprep.subr.bf16.mxu0 0
  %3775 = vmatpush2.bf16.msra.mxu0 0
  %3776 = vmatprep.subr.bf16.mxu0 0
  %3777 = vmatpush2.bf16.msra.mxu0 0
  %3778 = vmatprep.subr.bf16.mxu0 0
  %3779 = vmatpush2.bf16.msra.mxu0 0
  %3780 = vmatprep.subr.bf16.mxu0 0
  %3781 = vmatpush2.bf16.msra.mxu0 0
  %3782 = vmatprep.subr.bf16.mxu0 0
  %3783 = vmatpush2.bf16.msra.mxu0 0
  %3784 = vmatprep.subr.bf16.mxu0 0
  %3785 = vmatpush2.bf16.msra.mxu0 0
  %3786 = vmatprep.subr.bf16.mxu0 0
  %3787 = vmatpush2.bf16.msra.mxu0 0
  %3788 = vmatprep.mubr.bf16.mxu0 0
  %3789 = vmatmul.mubr.bf16.gmra.mxu0 %v3684
  %v3790 = vpop.f32.mrf.mxu0
  %v3791 = vadd.f32 %v3706, %v3790
  %v3792 = vpop.f32.mrf.mxu0
  %v3793 = vpop.f32.mrf.mxu0
  %v3794 = vpop.f32.mrf.mxu0
  %3795 = vdwg.mxu0
  %3796 = vst [vmem:[%s7] sm:$0x3] %v3791
  // Predicated region
  $region30: #{catrsdnet1_forward.3} parent=0 // pred_check
    _
  $region31: #{catrsdnet1_forward.3} parent=0 // pred_check_branch
    %3798 = sbr.rel (0) target = $region33
  $region32: #{catrsdnet1_forward.3} parent=0 // pred_region
    _
  $region33: #{catrsdnet1_forward.3} parent=0 // pred_fallthru
    _
  // Predicated region
  $region34: #{catrsdnet1_forward.3} parent=0 // pred_check
    _
  $region35: #{catrsdnet1_forward.3} parent=0 // pred_check_branch
    %3800 = sbr.rel (0) target = $region37
  $region36: #{catrsdnet1_forward.3} parent=0 // pred_region
    _
  $region37: #{catrsdnet1_forward.3} parent=0 // pred_fallthru
    _

</llo_original>
